<compile_context>
chip_gen: v6e
topology: v6e:2x2x1
jax: 0.10.0
libtpu: 0.0.40
codegen_flags: <defaults>
</compile_context>

<pallas_src>
from functools import partial

import jax
import jax.numpy as jnp
from jax.experimental import pallas as pl
from jax.experimental.pallas import tpu as pltpu

BN_EPS = 1e-5   # PyTorch BatchNorm1d default
LANE = 128
# Conservative per-kernel VMEM budget for deciding whether the whole adjacency
# row slab (tm, N) can be double-buffered (v7x scoped default is 32 MiB).
_ADJ_SLAB_BUDGET = 12 * 1024 * 1024


def _round_up(x, m):
    return ((x + m - 1) // m) * m


def _pick_tile(n, candidates=(512, 256, 128, 64, 32, 16, 8)):
    # Prefer >= 2 row tiles so the "parallel" row axis shards across v7x's two
    # TensorCores; extra tiles cost nothing on single-TC v5e/v6e.
    for c in candidates:
        if n % c == 0 and n // c >= 2:
            return c
    for c in candidates:
        if n % c == 0:
            return c
    return n  # fall back to a single full-extent block


def _pad2(a, rows, cols):
    """Zero-pad a 2-D array up to (rows, cols) in f32."""
    a = a.astype(jnp.float32)
    return jnp.zeros((rows, cols), jnp.float32).at[: a.shape[0], : a.shape[1]].set(a)


# --------------------------------------------------------------------------
# Kernel 1a (collapsed k): agg = adj @ x over a full adjacency row slab,
# plus per-row-tile column sum / sum-of-squares of agg (for BN1 batch stats).
# --------------------------------------------------------------------------
def _spmm_stats_full_kernel(adj_ref, x_ref, agg_ref, stats_ref):
    adj = adj_ref[...].astype(jnp.bfloat16)      # int8 0/1 -> bf16 (exact)
    acc = jnp.dot(adj, x_ref[...], preferred_element_type=jnp.float32)
    agg_ref[...] = acc.astype(agg_ref.dtype)
    stats_ref[...] = jnp.zeros_like(stats_ref)
    stats_ref[0:1, :] = jnp.sum(acc, axis=0, keepdims=True)
    stats_ref[1:2, :] = jnp.sum(acc * acc, axis=0, keepdims=True)


# --------------------------------------------------------------------------
# Kernel 1b (k-tiled fallback for large N): same result, f32 VMEM accumulator.
# --------------------------------------------------------------------------
def _spmm_stats_tiled_kernel(adj_ref, x_ref, agg_ref, stats_ref, acc_ref):
    k = pl.program_id(1)

    @pl.when(k == 0)
    def _():
        acc_ref[...] = jnp.zeros_like(acc_ref)

    acc_ref[...] += jnp.dot(adj_ref[...].astype(jnp.bfloat16), x_ref[...],
                            preferred_element_type=jnp.float32)

    @pl.when(k == pl.num_programs(1) - 1)
    def _():
        acc = acc_ref[...]
        agg_ref[...] = acc.astype(agg_ref.dtype)
        stats_ref[...] = jnp.zeros_like(stats_ref)
        stats_ref[0:1, :] = jnp.sum(acc, axis=0, keepdims=True)
        stats_ref[1:2, :] = jnp.sum(acc * acc, axis=0, keepdims=True)


# --------------------------------------------------------------------------
# Kernel 2: h = x @ W1a_eff + agg @ W1b_eff + shift1   (BN1 pre-folded)
#           + per-row-tile column stats of h (for BN2).  h written in bf16.
# --------------------------------------------------------------------------
def _hidden_kernel(x_ref, agg_ref, w1a_ref, w1b_ref, b1_ref, h_ref, stats_ref):
    h = jnp.dot(x_ref[...], w1a_ref[...], preferred_element_type=jnp.float32)
    h = h + jnp.dot(agg_ref[...], w1b_ref[...], preferred_element_type=jnp.float32)
    h = h + b1_ref[0:1, :]                       # folded BN1 shift + Linear1 bias
    h_ref[...] = h.astype(h_ref.dtype)           # bf16 writeback (stats stay f32)
    stats_ref[...] = jnp.zeros_like(stats_ref)
    stats_ref[0:1, :] = jnp.sum(h, axis=0, keepdims=True)
    stats_ref[1:2, :] = jnp.sum(h * h, axis=0, keepdims=True)


# --------------------------------------------------------------------------
# Kernel 3: out = ReLU(BN2(h)) @ W2 + b2   (BN2 pre-folded into scale/shift)
# --------------------------------------------------------------------------
def _head_kernel(h_ref, w2_ref, bn2_ref, b2_ref, out_ref):
    h = h_ref[...].astype(jnp.float32) * bn2_ref[0:1, :] + bn2_ref[1:2, :]
    h = jnp.maximum(h, 0.0)                      # ReLU; Dropout(p=0) is a no-op
    out = jnp.dot(h.astype(jnp.bfloat16), w2_ref[...],
                  preferred_element_type=jnp.float32)
    out_ref[...] = (out + b2_ref[0:1, :]).astype(out_ref.dtype)


# --------------------------------------------------------------------------
# One-time (outside the per-call jitted path) parameter packing / padding.
# --------------------------------------------------------------------------
def prepack_params(params, in_features):
    cat_dim, h1 = params["w1"].shape
    h2 = params["w2"].shape[1]
    f_in = in_features
    f_pad = _round_up(max(f_in, cat_dim - f_in), LANE)
    h1_pad = _round_up(h1, LANE)
    h2_pad = _round_up(h2, LANE)

    w1a, w1b = params["w1"][:f_in, :], params["w1"][f_in:, :]
    g1a, g1b = params["g1"][:, :f_in], params["g1"][:, f_in:]
    be1a, be1b = params["be1"][:, :f_in], params["be1"][:, f_in:]

    packed = {
        "w1a_p": _pad2(w1a, f_pad, h1_pad),
        "w1b_p": _pad2(w1b, f_pad, h1_pad),
        "g1a_p": _pad2(g1a, 1, f_pad),
        "g1b_p": _pad2(g1b, 1, f_pad),
        "be1a_p": _pad2(be1a, 1, f_pad),
        "be1b_p": _pad2(be1b, 1, f_pad),
        "b1_p": _pad2(params["b1"], 1, h1_pad),
        "g2_p": _pad2(params["g2"], 1, h1_pad),
        "be2_p": _pad2(params["be2"], 1, h1_pad),
        "w2_p": _pad2(params["w2"], h1_pad, h2_pad).astype(jnp.bfloat16),
        "b2_slab": jnp.zeros((8, h2_pad), jnp.float32).at[0:1, :].set(
            _pad2(params["b2"], 1, h2_pad)),
    }
    return packed, (f_pad, h1_pad, h2_pad)


# --------------------------------------------------------------------------
# Forward wrapper (adjacency already int8, parameters already packed/padded)
# --------------------------------------------------------------------------
@partial(jax.jit, static_argnames=("out_features",))
def dgnn_layer_forward(inp, adj_i8, packed, *, out_features):
    n, f_in = inp.shape
    f_pad = packed["g1a_p"].shape[1]
    h1_pad = packed["b1_p"].shape[1]
    h2_pad = packed["b2_slab"].shape[1]

    tm = _pick_tile(n)
    n_row = n // tm

    # ---- lane-dense bf16 x (tiny: N * f_pad * 2 bytes) ---------------------
    x_pad = jnp.zeros((n, f_pad), jnp.float32).at[:, :f_in].set(inp)
    x_bf16 = x_pad.astype(jnp.bfloat16)

    # ---- kernel 1: spmm + agg column stats ---------------------------------
    out_shapes = (
        jax.ShapeDtypeStruct((n, f_pad), jnp.bfloat16),
        jax.ShapeDtypeStruct((n_row * 8, f_pad), jnp.float32),
    )
    out_specs = (
        pl.BlockSpec((tm, f_pad), lambda i, *_: (i, 0)),
        pl.BlockSpec((8, f_pad), lambda i, *_: (i, 0)),
    )
    # Collapse the k axis when the double-buffered (tm, N) int8 slab + the
    # resident x fit comfortably in VMEM (true for every demo-sized N).
    if 2 * tm * n + n * f_pad * 2 <= _ADJ_SLAB_BUDGET:
        agg_bf16, agg_stats = pl.pallas_call(
            _spmm_stats_full_kernel,
            grid=(n_row,),
            in_specs=[
                pl.BlockSpec((tm, n), lambda i: (i, 0)),      # int8 adj row slab
                pl.BlockSpec((n, f_pad), lambda i: (0, 0)),   # x VMEM-resident
            ],
            out_specs=out_specs,
            out_shape=out_shapes,
            compiler_params=pltpu.CompilerParams(
                dimension_semantics=("parallel",)),
        )(adj_i8, x_bf16)
    else:
        tk = tm
        n_k = n // tk
        agg_bf16, agg_stats = pl.pallas_call(
            _spmm_stats_tiled_kernel,
            grid=(n_row, n_k),
            in_specs=[
                pl.BlockSpec((tm, tk), lambda i, k: (i, k)),      # adj stream
                pl.BlockSpec((tk, f_pad), lambda i, k: (k, 0)),   # x slab per k
            ],
            out_specs=out_specs,
            out_shape=out_shapes,
            scratch_shapes=[pltpu.VMEM((tm, f_pad), jnp.float32)],
            compiler_params=pltpu.CompilerParams(
                dimension_semantics=("parallel", "arbitrary")),
        )(adj_i8, x_bf16)

    # ---- finalize BN1 batch stats & fold BN1 into Linear1 (tiny tensors) ---
    mean_x = jnp.mean(x_pad, axis=0, keepdims=True)
    var_x = jnp.mean(jnp.square(x_pad - mean_x), axis=0, keepdims=True)

    stats = agg_stats.reshape(n_row, 8, f_pad)
    mean_a = jnp.sum(stats[:, 0, :], axis=0, keepdims=True) / n
    var_a = jnp.maximum(jnp.sum(stats[:, 1, :], axis=0, keepdims=True) / n
                        - jnp.square(mean_a), 0.0)

    s1a = packed["g1a_p"] * jax.lax.rsqrt(var_x + BN_EPS)
    s1b = packed["g1b_p"] * jax.lax.rsqrt(var_a + BN_EPS)
    w1a_eff = (packed["w1a_p"] * s1a.T).astype(jnp.bfloat16)
    w1b_eff = (packed["w1b_p"] * s1b.T).astype(jnp.bfloat16)
    shift1 = ((packed["be1a_p"] - mean_x * s1a) @ packed["w1a_p"]
              + (packed["be1b_p"] - mean_a * s1b) @ packed["w1b_p"]
              + packed["b1_p"])
    b1_slab = jnp.zeros((8, h1_pad), jnp.float32).at[0:1, :].set(shift1)

    # NOTE: BN1 stats for agg come from the f32 accumulator while the folded
    # Linear1 consumes the bf16-rounded agg — small, intentional inconsistency
    # inside the 5e-2 tolerance.

    # ---- kernel 2: hidden layer + h column stats (h stored bf16) -----------
    h_bf16, h_stats = pl.pallas_call(
        _hidden_kernel,
        grid=(n_row,),
        in_specs=[
            pl.BlockSpec((tm, f_pad), lambda i: (i, 0)),
            pl.BlockSpec((tm, f_pad), lambda i: (i, 0)),
            pl.BlockSpec((f_pad, h1_pad), lambda i: (0, 0)),   # VMEM-resident weights
            pl.BlockSpec((f_pad, h1_pad), lambda i: (0, 0)),
            pl.BlockSpec((8, h1_pad), lambda i: (0, 0)),       # packed param slab
        ],
        out_specs=(
            pl.BlockSpec((tm, h1_pad), lambda i: (i, 0)),
            pl.BlockSpec((8, h1_pad), lambda i: (i, 0)),
        ),
        out_shape=(
            jax.ShapeDtypeStruct((n, h1_pad), jnp.bfloat16),
            jax.ShapeDtypeStruct((n_row * 8, h1_pad), jnp.float32),
        ),
        compiler_params=pltpu.CompilerParams(dimension_semantics=("parallel",)),
    )(x_bf16, agg_bf16, w1a_eff, w1b_eff, b1_slab)

    # ---- finalize BN2 batch stats, fold into scale/shift -------------------
    hs = h_stats.reshape(n_row, 8, h1_pad)
    mean_h = jnp.sum(hs[:, 0, :], axis=0, keepdims=True) / n
    var_h = jnp.maximum(jnp.sum(hs[:, 1, :], axis=0, keepdims=True) / n
                        - jnp.square(mean_h), 0.0)
    s2 = packed["g2_p"] * jax.lax.rsqrt(var_h + BN_EPS)
    shift2 = packed["be2_p"] - mean_h * s2
    bn2_slab = (jnp.zeros((8, h1_pad), jnp.float32)
                .at[0:1, :].set(s2).at[1:2, :].set(shift2))

    # ---- kernel 3: BN2 -> ReLU -> Linear2 (bf16 lane-dense output) ---------
    out_pad = pl.pallas_call(
        _head_kernel,
        grid=(n_row,),
        in_specs=[
            pl.BlockSpec((tm, h1_pad), lambda i: (i, 0)),
            pl.BlockSpec((h1_pad, h2_pad), lambda i: (0, 0)),
            pl.BlockSpec((8, h1_pad), lambda i: (0, 0)),
            pl.BlockSpec((8, h2_pad), lambda i: (0, 0)),
        ],
        out_specs=pl.BlockSpec((tm, h2_pad), lambda i: (i, 0)),
        out_shape=jax.ShapeDtypeStruct((n, h2_pad), jnp.bfloat16),
        compiler_params=pltpu.CompilerParams(dimension_semantics=("parallel",)),
    )(h_bf16, packed["w2_p"], bn2_slab, packed["b2_slab"])

    # TODO(synk): ragged N (not a multiple of 8) would need zero-row padding
    # plus row masking in the BN statistics; not required for this demo.
    return out_pad[:, :out_features].astype(jnp.float32)


# --------------------------------------------------------------------------
# Parameters + pure-JAX reference (PyTorch semantics, training-mode BN)
# --------------------------------------------------------------------------
def make_params(key, in_features, phi_features, out_dims):
    cat = in_features + phi_features
    k1, k2, k3, k4 = jax.random.split(key, 4)
    s1 = 1.0 / jnp.sqrt(cat)
    s2 = 1.0 / jnp.sqrt(out_dims[0])
    w1 = jax.random.uniform(k1, (cat, out_dims[0]), jnp.float32, -s1, s1)
    b1 = jax.random.uniform(k2, (1, out_dims[0]), jnp.float32, -s1, s1)
    w2 = jax.random.uniform(k3, (out_dims[0], out_dims[1]), jnp.float32, -s2, s2)
    b2 = jax.random.uniform(k4, (1, out_dims[1]), jnp.float32, -s2, s2)
    # Round weights to bf16-representable f32 so the kernel-vs-f32-reference
    # check isolates accumulation error rather than input quantization.
    w1, b1, w2, b2 = (a.astype(jnp.bfloat16).astype(jnp.float32)
                      for a in (w1, b1, w2, b2))
    return {
        "w1": w1, "b1": b1, "w2": w2, "b2": b2,
        "g1": jnp.ones((1, cat), jnp.float32),
        "be1": jnp.zeros((1, cat), jnp.float32),
        "g2": jnp.ones((1, out_dims[0]), jnp.float32),
        "be2": jnp.zeros((1, out_dims[0]), jnp.float32),
    }


def _bn_train(h, gamma, beta):
    mean = jnp.mean(h, axis=0, keepdims=True)
    var = jnp.mean(jnp.square(h - mean), axis=0, keepdims=True)
    return (h - mean) * jax.lax.rsqrt(var + BN_EPS) * gamma + beta


def reference_forward(inp, adj, p):
    agg = adj @ inp
    h = jnp.concatenate([inp, agg], axis=1)
    h = _bn_train(h, p["g1"], p["be1"])
    h = h @ p["w1"] + p["b1"]
    h = _bn_train(h, p["g2"], p["be2"])
    h = jnp.maximum(h, 0.0)
    return h @ p["w2"] + p["b2"]


if __name__ == "__main__":
    # Small but grid-exercising shapes: N=1024 nodes, in_features=16,
    # phi=identity => phi_features=16, encoder out_dims=[32, 16].
    N, IN_F = 1024, 16
    OUT_DIMS = (32, 16)

    key = jax.random.PRNGKey(0)
    k_in, k_adj, k_p = jax.random.split(key, 3)

    inp = jax.random.normal(k_in, (N, IN_F), jnp.float32)
    inp = inp.astype(jnp.bfloat16).astype(jnp.float32)   # bf16-representable features
    # Dense 0/1 adjacency standing in for torch.spmm's sparse matrix.
    adj = (jax.random.uniform(k_adj, (N, N), jnp.float32) < 0.05).astype(jnp.float32)

    params = make_params(k_p, IN_F, IN_F, OUT_DIMS)

    # One-time (not per-call) preparation: adjacency kept in HBM as int8,
    # parameter padding/packing hoisted out of the jitted forward.
    adj_i8 = jnp.asarray(adj, jnp.int8)
    packed, _pads = prepack_params(params, IN_F)
    packed = jax.tree_util.tree_map(jax.block_until_ready, packed)

    out = dgnn_layer_forward(inp, adj_i8, packed, out_features=OUT_DIMS[-1])
    out = jax.block_until_ready(out)

    ref = reference_forward(inp, adj, params)
    assert out.shape == (N, OUT_DIMS[-1])
    # Tolerance accounts for bf16 MXU operands and the bf16 h / output
    # writebacks vs the pure-f32 reference (~1e-2 worst case observed).
    assert jnp.allclose(out, ref, atol=5e-2, rtol=5e-2), "mismatch vs JAX reference"

    print("KERNEL_OK")
</pallas_src>

<mosaic_0001>
module attributes {stable_mosaic.version = 11 : i64} {
  func.func @_hidden_kernel(%arg0: i32, %arg1: memref<512x128xbf16, #tpu.memory_space<vmem>>, %arg2: memref<512x128xbf16, #tpu.memory_space<vmem>>, %arg3: memref<128x128xbf16, #tpu.memory_space<vmem>>, %arg4: memref<128x128xbf16, #tpu.memory_space<vmem>>, %arg5: memref<8x128xf32, #tpu.memory_space<vmem>>, %arg6: memref<512x128xbf16, #tpu.memory_space<vmem>>, %arg7: memref<8x128xf32, #tpu.memory_space<vmem>>) attributes {dimension_semantics = [#tpu.dimension_semantics<parallel>], iteration_bounds = array<i64: 2>, scalar_prefetch = 0 : i64, scratch_operands = 0 : i64, tpu.core_type = #tpu.core_type<tc>, window_params = [{transform_indices = @transform_0, window_bounds = array<i64: 512, 128>}, {transform_indices = @transform_1, window_bounds = array<i64: 512, 128>}, {pipeline_mode = #tpu.pipeline_mode<synchronous>, transform_indices = @transform_2, window_bounds = array<i64: 128, 128>}, {pipeline_mode = #tpu.pipeline_mode<synchronous>, transform_indices = @transform_3, window_bounds = array<i64: 128, 128>}, {pipeline_mode = #tpu.pipeline_mode<synchronous>, transform_indices = @transform_4, window_bounds = array<i64: 8, 128>}, {transform_indices = @transform_5, window_bounds = array<i64: 512, 128>}, {transform_indices = @transform_6, window_bounds = array<i64: 8, 128>}]} {
    %c0 = arith.constant 0 : index
    %c0_0 = arith.constant 0 : index
    %0 = vector.load %arg1[%c0, %c0_0] : memref<512x128xbf16, #tpu.memory_space<vmem>>, vector<512x128xbf16>
    %c0_1 = arith.constant 0 : index
    %c0_2 = arith.constant 0 : index
    %1 = vector.load %arg3[%c0_1, %c0_2] : memref<128x128xbf16, #tpu.memory_space<vmem>>, vector<128x128xbf16>
    %cst = arith.constant dense<0.000000e+00> : vector<512x128xf32>
    %2 = tpu.matmul %0, %1, %cst {dimension_numbers = #tpu.dot_dimension_numbers<[1], [0], [0], [1], [0, 0, 1, 1], [], []>} : vector<512x128xbf16>, vector<128x128xbf16>, vector<512x128xf32> -> vector<512x128xf32>
    %c0_3 = arith.constant 0 : index
    %c0_4 = arith.constant 0 : index
    %3 = vector.load %arg2[%c0_3, %c0_4] : memref<512x128xbf16, #tpu.memory_space<vmem>>, vector<512x128xbf16>
    %c0_5 = arith.constant 0 : index
    %c0_6 = arith.constant 0 : index
    %4 = vector.load %arg4[%c0_5, %c0_6] : memref<128x128xbf16, #tpu.memory_space<vmem>>, vector<128x128xbf16>
    %cst_7 = arith.constant dense<0.000000e+00> : vector<512x128xf32>
    %5 = tpu.matmul %3, %4, %cst_7 {dimension_numbers = #tpu.dot_dimension_numbers<[1], [0], [0], [1], [0, 0, 1, 1], [], []>} : vector<512x128xbf16>, vector<128x128xbf16>, vector<512x128xf32> -> vector<512x128xf32>
    %6 = arith.addf %2, %5 : vector<512x128xf32>
    %c0_8 = arith.constant 0 : index
    %c0_9 = arith.constant 0 : index
    %7 = vector.load %arg5[%c0_8, %c0_9] : memref<8x128xf32, #tpu.memory_space<vmem>>, vector<1x128xf32>
    %8 = vector.broadcast %7 : vector<1x128xf32> to vector<512x128xf32>
    %9 = arith.addf %6, %8 : vector<512x128xf32>
    %10 = arith.truncf %9 : vector<512x128xf32> to vector<512x128xbf16>
    %c0_10 = arith.constant 0 : index
    %c0_11 = arith.constant 0 : index
    %11 = vector.load %arg6[%c0_10, %c0_11] : memref<512x128xbf16, #tpu.memory_space<vmem>>, vector<512x128xbf16>
    tpu.vector_store %arg6[%c0_10, %c0_11], %10 {strides = array<i32>} : memref<512x128xbf16, #tpu.memory_space<vmem>>, vector<512x128xbf16>,
    %cst_12 = arith.constant 0.000000e+00 : f32
    %12 = vector.broadcast %cst_12 : f32 to vector<8x128xf32>
    %c0_13 = arith.constant 0 : index
    %c0_14 = arith.constant 0 : index
    %13 = vector.load %arg7[%c0_13, %c0_14] : memref<8x128xf32, #tpu.memory_space<vmem>>, vector<8x128xf32>
    tpu.vector_store %arg7[%c0_13, %c0_14], %12 {strides = array<i32>} : memref<8x128xf32, #tpu.memory_space<vmem>>, vector<8x128xf32>,
    %cst_15 = arith.constant dense<0.000000e+00> : vector<128xf32>
    %14 = vector.multi_reduction <add>, %9, %cst_15 [0] : vector<512x128xf32> to vector<128xf32>
    %15 = vector.shape_cast %14 : vector<128xf32> to vector<1x128xf32>
    %c0_16 = arith.constant 0 : index
    %c0_17 = arith.constant 0 : index
    %16 = vector.load %arg7[%c0_16, %c0_17] : memref<8x128xf32, #tpu.memory_space<vmem>>, vector<1x128xf32>
    tpu.vector_store %arg7[%c0_16, %c0_17], %15 {strides = array<i32>} : memref<8x128xf32, #tpu.memory_space<vmem>>, vector<1x128xf32>,
    %17 = arith.mulf %9, %9 : vector<512x128xf32>
    %cst_18 = arith.constant dense<0.000000e+00> : vector<128xf32>
    %18 = vector.multi_reduction <add>, %17, %cst_18 [0] : vector<512x128xf32> to vector<128xf32>
    %19 = vector.shape_cast %18 : vector<128xf32> to vector<1x128xf32>
    %c1 = arith.constant 1 : index
    %c0_19 = arith.constant 0 : index
    %20 = vector.load %arg7[%c1, %c0_19] : memref<8x128xf32, #tpu.memory_space<vmem>>, vector<1x128xf32>
    tpu.vector_store %arg7[%c1, %c0_19], %19 {strides = array<i32>} : memref<8x128xf32, #tpu.memory_space<vmem>>, vector<1x128xf32>,
    return
  }
  func.func @transform_0(%arg0: i32) -> (i32, i32) {
    %c0_i32 = arith.constant 0 : i32
    %c0_i32_0 = arith.constant 0 : i32
    return %arg0, %c0_i32 : i32, i32
  }
  func.func @transform_1(%arg0: i32) -> (i32, i32) {
    %c0_i32 = arith.constant 0 : i32
    %c0_i32_0 = arith.constant 0 : i32
    return %arg0, %c0_i32 : i32, i32
  }
  func.func @transform_2(%arg0: i32) -> (i32, i32) {
    %c0_i32 = arith.constant 0 : i32
    %c0_i32_0 = arith.constant 0 : i32
    %c0_i32_1 = arith.constant 0 : i32
    return %c0_i32, %c0_i32_0 : i32, i32
  }
  func.func @transform_3(%arg0: i32) -> (i32, i32) {
    %c0_i32 = arith.constant 0 : i32
    %c0_i32_0 = arith.constant 0 : i32
    %c0_i32_1 = arith.constant 0 : i32
    return %c0_i32, %c0_i32_0 : i32, i32
  }
  func.func @transform_4(%arg0: i32) -> (i32, i32) {
    %c0_i32 = arith.constant 0 : i32
    %c0_i32_0 = arith.constant 0 : i32
    %c0_i32_1 = arith.constant 0 : i32
    return %c0_i32, %c0_i32_0 : i32, i32
  }
  func.func @transform_5(%arg0: i32) -> (i32, i32) {
    %c0_i32 = arith.constant 0 : i32
    %c0_i32_0 = arith.constant 0 : i32
    return %arg0, %c0_i32 : i32, i32
  }
  func.func @transform_6(%arg0: i32) -> (i32, i32) {
    %c0_i32 = arith.constant 0 : i32
    %c0_i32_0 = arith.constant 0 : i32
    return %arg0, %c0_i32 : i32, i32
  }
}

module attributes {stable_mosaic.version = 11 : i64} {
  func.func @_spmm_stats_full_kernel(%arg0: i32, %arg1: memref<512x1024xi8, #tpu.memory_space<vmem>>, %arg2: memref<1024x128xbf16, #tpu.memory_space<vmem>>, %arg3: memref<512x128xbf16, #tpu.memory_space<vmem>>, %arg4: memref<8x128xf32, #tpu.memory_space<vmem>>) attributes {dimension_semantics = [#tpu.dimension_semantics<parallel>], iteration_bounds = array<i64: 2>, scalar_prefetch = 0 : i64, scratch_operands = 0 : i64, tpu.core_type = #tpu.core_type<tc>, window_params = [{transform_indices = @transform_0, window_bounds = array<i64: 512, 1024>}, {pipeline_mode = #tpu.pipeline_mode<synchronous>, transform_indices = @transform_1, window_bounds = array<i64: 1024, 128>}, {transform_indices = @transform_2, window_bounds = array<i64: 512, 128>}, {transform_indices = @transform_3, window_bounds = array<i64: 8, 128>}]} {
    %c0 = arith.constant 0 : index
    %c0_0 = arith.constant 0 : index
    %0 = vector.load %arg1[%c0, %c0_0] : memref<512x1024xi8, #tpu.memory_space<vmem>>, vector<512x1024xi8>
    %1 = arith.sitofp %0 : vector<512x1024xi8> to vector<512x1024xbf16>
    %c0_1 = arith.constant 0 : index
    %c0_2 = arith.constant 0 : index
    %2 = vector.load %arg2[%c0_1, %c0_2] : memref<1024x128xbf16, #tpu.memory_space<vmem>>, vector<1024x128xbf16>
    %cst = arith.constant dense<0.000000e+00> : vector<512x128xf32>
    %3 = tpu.matmul %1, %2, %cst {dimension_numbers = #tpu.dot_dimension_numbers<[1], [0], [0], [1], [0, 0, 1, 1], [], []>} : vector<512x1024xbf16>, vector<1024x128xbf16>, vector<512x128xf32> -> vector<512x128xf32>
    %4 = arith.truncf %3 : vector<512x128xf32> to vector<512x128xbf16>
    %c0_3 = arith.constant 0 : index
    %c0_4 = arith.constant 0 : index
    %5 = vector.load %arg3[%c0_3, %c0_4] : memref<512x128xbf16, #tpu.memory_space<vmem>>, vector<512x128xbf16>
    tpu.vector_store %arg3[%c0_3, %c0_4], %4 {strides = array<i32>} : memref<512x128xbf16, #tpu.memory_space<vmem>>, vector<512x128xbf16>,
    %cst_5 = arith.constant 0.000000e+00 : f32
    %6 = vector.broadcast %cst_5 : f32 to vector<8x128xf32>
    %c0_6 = arith.constant 0 : index
    %c0_7 = arith.constant 0 : index
    %7 = vector.load %arg4[%c0_6, %c0_7] : memref<8x128xf32, #tpu.memory_space<vmem>>, vector<8x128xf32>
    tpu.vector_store %arg4[%c0_6, %c0_7], %6 {strides = array<i32>} : memref<8x128xf32, #tpu.memory_space<vmem>>, vector<8x128xf32>,
    %cst_8 = arith.constant dense<0.000000e+00> : vector<128xf32>
    %8 = vector.multi_reduction <add>, %3, %cst_8 [0] : vector<512x128xf32> to vector<128xf32>
    %9 = vector.shape_cast %8 : vector<128xf32> to vector<1x128xf32>
    %c0_9 = arith.constant 0 : index
    %c0_10 = arith.constant 0 : index
    %10 = vector.load %arg4[%c0_9, %c0_10] : memref<8x128xf32, #tpu.memory_space<vmem>>, vector<1x128xf32>
    tpu.vector_store %arg4[%c0_9, %c0_10], %9 {strides = array<i32>} : memref<8x128xf32, #tpu.memory_space<vmem>>, vector<1x128xf32>,
    %11 = arith.mulf %3, %3 : vector<512x128xf32>
    %cst_11 = arith.constant dense<0.000000e+00> : vector<128xf32>
    %12 = vector.multi_reduction <add>, %11, %cst_11 [0] : vector<512x128xf32> to vector<128xf32>
    %13 = vector.shape_cast %12 : vector<128xf32> to vector<1x128xf32>
    %c1 = arith.constant 1 : index
    %c0_12 = arith.constant 0 : index
    %14 = vector.load %arg4[%c1, %c0_12] : memref<8x128xf32, #tpu.memory_space<vmem>>, vector<1x128xf32>
    tpu.vector_store %arg4[%c1, %c0_12], %13 {strides = array<i32>} : memref<8x128xf32, #tpu.memory_space<vmem>>, vector<1x128xf32>,
    return
  }
  func.func @transform_0(%arg0: i32) -> (i32, i32) {
    %c0_i32 = arith.constant 0 : i32
    %c0_i32_0 = arith.constant 0 : i32
    return %arg0, %c0_i32 : i32, i32
  }
  func.func @transform_1(%arg0: i32) -> (i32, i32) {
    %c0_i32 = arith.constant 0 : i32
    %c0_i32_0 = arith.constant 0 : i32
    %c0_i32_1 = arith.constant 0 : i32
    return %c0_i32, %c0_i32_0 : i32, i32
  }
  func.func @transform_2(%arg0: i32) -> (i32, i32) {
    %c0_i32 = arith.constant 0 : i32
    %c0_i32_0 = arith.constant 0 : i32
    return %arg0, %c0_i32 : i32, i32
  }
  func.func @transform_3(%arg0: i32) -> (i32, i32) {
    %c0_i32 = arith.constant 0 : i32
    %c0_i32_0 = arith.constant 0 : i32
    return %arg0, %c0_i32 : i32, i32
  }
}

module attributes {stable_mosaic.version = 11 : i64} {
  func.func @_head_kernel(%arg0: i32, %arg1: memref<512x128xbf16, #tpu.memory_space<vmem>>, %arg2: memref<128x128xbf16, #tpu.memory_space<vmem>>, %arg3: memref<8x128xf32, #tpu.memory_space<vmem>>, %arg4: memref<8x128xf32, #tpu.memory_space<vmem>>, %arg5: memref<512x128xbf16, #tpu.memory_space<vmem>>) attributes {dimension_semantics = [#tpu.dimension_semantics<parallel>], iteration_bounds = array<i64: 2>, scalar_prefetch = 0 : i64, scratch_operands = 0 : i64, tpu.core_type = #tpu.core_type<tc>, window_params = [{transform_indices = @transform_0, window_bounds = array<i64: 512, 128>}, {pipeline_mode = #tpu.pipeline_mode<synchronous>, transform_indices = @transform_1, window_bounds = array<i64: 128, 128>}, {pipeline_mode = #tpu.pipeline_mode<synchronous>, transform_indices = @transform_2, window_bounds = array<i64: 8, 128>}, {pipeline_mode = #tpu.pipeline_mode<synchronous>, transform_indices = @transform_3, window_bounds = array<i64: 8, 128>}, {transform_indices = @transform_4, window_bounds = array<i64: 512, 128>}]} {
    %c0 = arith.constant 0 : index
    %c0_0 = arith.constant 0 : index
    %0 = vector.load %arg1[%c0, %c0_0] : memref<512x128xbf16, #tpu.memory_space<vmem>>, vector<512x128xbf16>
    %1 = arith.extf %0 : vector<512x128xbf16> to vector<512x128xf32>
    %c0_1 = arith.constant 0 : index
    %c0_2 = arith.constant 0 : index
    %2 = vector.load %arg3[%c0_1, %c0_2] : memref<8x128xf32, #tpu.memory_space<vmem>>, vector<1x128xf32>
    %3 = vector.broadcast %2 : vector<1x128xf32> to vector<512x128xf32>
    %4 = arith.mulf %1, %3 : vector<512x128xf32>
    %c1 = arith.constant 1 : index
    %c0_3 = arith.constant 0 : index
    %5 = vector.load %arg3[%c1, %c0_3] : memref<8x128xf32, #tpu.memory_space<vmem>>, vector<1x128xf32>
    %6 = vector.broadcast %5 : vector<1x128xf32> to vector<512x128xf32>
    %7 = arith.addf %4, %6 : vector<512x128xf32>
    %cst = arith.constant 0.000000e+00 : f32
    %8 = vector.broadcast %cst : f32 to vector<512x128xf32>
    %9 = arith.maximumf %7, %8 : vector<512x128xf32>
    %10 = arith.truncf %9 : vector<512x128xf32> to vector<512x128xbf16>
    %c0_4 = arith.constant 0 : index
    %c0_5 = arith.constant 0 : index
    %11 = vector.load %arg2[%c0_4, %c0_5] : memref<128x128xbf16, #tpu.memory_space<vmem>>, vector<128x128xbf16>
    %cst_6 = arith.constant dense<0.000000e+00> : vector<512x128xf32>
    %12 = tpu.matmul %10, %11, %cst_6 {dimension_numbers = #tpu.dot_dimension_numbers<[1], [0], [0], [1], [0, 0, 1, 1], [], []>} : vector<512x128xbf16>, vector<128x128xbf16>, vector<512x128xf32> -> vector<512x128xf32>
    %c0_7 = arith.constant 0 : index
    %c0_8 = arith.constant 0 : index
    %13 = vector.load %arg4[%c0_7, %c0_8] : memref<8x128xf32, #tpu.memory_space<vmem>>, vector<1x128xf32>
    %14 = vector.broadcast %13 : vector<1x128xf32> to vector<512x128xf32>
    %15 = arith.addf %12, %14 : vector<512x128xf32>
    %16 = arith.truncf %15 : vector<512x128xf32> to vector<512x128xbf16>
    %c0_9 = arith.constant 0 : index
    %c0_10 = arith.constant 0 : index
    %17 = vector.load %arg5[%c0_9, %c0_10] : memref<512x128xbf16, #tpu.memory_space<vmem>>, vector<512x128xbf16>
    tpu.vector_store %arg5[%c0_9, %c0_10], %16 {strides = array<i32>} : memref<512x128xbf16, #tpu.memory_space<vmem>>, vector<512x128xbf16>,
    return
  }
  func.func @transform_0(%arg0: i32) -> (i32, i32) {
    %c0_i32 = arith.constant 0 : i32
    %c0_i32_0 = arith.constant 0 : i32
    return %arg0, %c0_i32 : i32, i32
  }
  func.func @transform_1(%arg0: i32) -> (i32, i32) {
    %c0_i32 = arith.constant 0 : i32
    %c0_i32_0 = arith.constant 0 : i32
    %c0_i32_1 = arith.constant 0 : i32
    return %c0_i32, %c0_i32_0 : i32, i32
  }
  func.func @transform_2(%arg0: i32) -> (i32, i32) {
    %c0_i32 = arith.constant 0 : i32
    %c0_i32_0 = arith.constant 0 : i32
    %c0_i32_1 = arith.constant 0 : i32
    return %c0_i32, %c0_i32_0 : i32, i32
  }
  func.func @transform_3(%arg0: i32) -> (i32, i32) {
    %c0_i32 = arith.constant 0 : i32
    %c0_i32_0 = arith.constant 0 : i32
    %c0_i32_1 = arith.constant 0 : i32
    return %c0_i32, %c0_i32_0 : i32, i32
  }
  func.func @transform_4(%arg0: i32) -> (i32, i32) {
    %c0_i32 = arith.constant 0 : i32
    %c0_i32_0 = arith.constant 0 : i32
    return %arg0, %c0_i32 : i32, i32
  }
}

</mosaic_0001>

<llo_original>
// kernel: dgnn_layer_forward.5
$region0: #{dgnn_layer_forward.5}
  #allocation0 [shape = 'u32[]', space=smem, size = 0x4, offset = 0x4, fixed_abs, tag = 'smem constant byte address 0x4 - core index']
  #allocation1 [shape = 'u32[144,128]{1,0:T(1,128)}', space=vmem, size = 0x12000, scoped, tag = 'internal scratch']
  %s0 = inlined_call_operand.vmem [shape: bf16[1024,128], index: 0, kind: input, shape index: {}]
  %s1 = inlined_call_operand.vmem [shape: bf16[128,128], index: 1, kind: input, shape index: {}]
  %s2 = inlined_call_operand.vmem [shape: f32[8,128], index: 2, kind: input, shape index: {}]
  %s3 = inlined_call_operand.vmem [shape: f32[8,128], index: 3, kind: input, shape index: {}]
  %s4 = inlined_call_operand.vmem [shape: bf16[1024,128], index: 4, kind: output, shape index: {}]
  %s5 = sld [smem:[#allocation0]]
  $region49: #{dgnn_layer_forward.5} parent=0
    _
  %s7 = ssub.s32 1, %s5
  %s8 = scalar_select 0, %s7, %s5
  loop: start=0, step=1, limit=4
  $region2: #{dgnn_layer_forward.5} parent=0 // loop_pre_header
    _
  $region3: #{dgnn_layer_forward.5} parent=0 // loop_header
    %s10 = sphi 0, %s14
    %p11 = scmp.ge.s32.totalorder %s10, 4
    %s20 = sphi 0, %s22
    %s23 = sphi 0, %s20
    %s24 = sphi 0, %s23
    %s40 = sphi 0, %s24
    %s44 = sphi 0, %s44
    %s46 = sphi 0, %s44
    %s47 = sphi 0, %s46
    %s61 = sphi 0, %s47
    %s65 = sphi 0, %s65
    %s67 = sphi 0, %s65
    %s68 = sphi 0, %s67
    %s82 = sphi 0, %s68
    %s86 = sphi 0, %s86
    %s88 = sphi 0, %s86
    %s89 = sphi 0, %s88
    %s103 = sphi 0, %s89
    %s109 = sphi 0, %s111
    %s112 = sphi 0, %s109
    %s113 = sphi 0, %s112
    %s129 = sphi 0, %s113
  $region4: #{dgnn_layer_forward.5} parent=0 // loop_header_branch
    %13 = sbr.rel (%p11) target = $region8
  $region5: #{dgnn_layer_forward.5} parent=0 // loop_body
    %s15 = ssub.s32 %s10, 1
    %s16 = ssub.s32 %s10, 2
    %s17 = sadd.s32 %s10, 1
    %s18 = ssub.s32 %s10, %s17
    %p19 = scmp.eq.s32.totalorder %s18, 0
    %s21 = sadd.s32 %s20, 1
    %s22 = scalar_select %p19, %s20, %s21
    %p25 = pneg %p19
    %p26 = scmp.eq.s32.totalorder %s10, 1
    %p27 = por %p25, %p26
    %p28 = scmp.ne.s32.totalorder %s20, %s23
    %p29 = scmp.eq.s32.totalorder %s10, 0
    %p30 = por %p28, %p29
    %p31 = scmp.ne.s32.totalorder %s20, %s23
    %p32 = scmp.eq.s32.totalorder %s15, 1
    %p33 = por %p31, %p32
    %p34 = scmp.ne.s32.totalorder %s23, %s24
    %p35 = scmp.eq.s32.totalorder %s15, 0
    %p36 = por %p34, %p35
    %p37 = scmp.ne.s32.totalorder %s23, %s24
    %p38 = scmp.eq.s32.totalorder %s16, 1
    %p39 = por %p37, %p38
    %p41 = scmp.ne.s32.totalorder %s24, %s40
    %p42 = scmp.eq.s32.totalorder %s16, 0
    %p43 = por %p41, %p42
    %s45 = sadd.s32 %s44, 1
    %p48 = scmp.eq.s32.totalorder %s10, 1
    %p49 = scmp.ne.s32.totalorder %s44, %s46
    %p50 = scmp.eq.s32.totalorder %s10, 0
    %p51 = por %p49, %p50
    %p52 = scmp.ne.s32.totalorder %s44, %s46
    %p53 = scmp.eq.s32.totalorder %s15, 1
    %p54 = por %p52, %p53
    %p55 = scmp.ne.s32.totalorder %s46, %s47
    %p56 = scmp.eq.s32.totalorder %s15, 0
    %p57 = por %p55, %p56
    %p58 = scmp.ne.s32.totalorder %s46, %s47
    %p59 = scmp.eq.s32.totalorder %s16, 1
    %p60 = por %p58, %p59
    %p62 = scmp.ne.s32.totalorder %s47, %s61
    %p63 = scmp.eq.s32.totalorder %s16, 0
    %p64 = por %p62, %p63
    %s66 = sadd.s32 %s65, 1
    %p69 = scmp.eq.s32.totalorder %s10, 1
    %p70 = scmp.ne.s32.totalorder %s65, %s67
    %p71 = scmp.eq.s32.totalorder %s10, 0
    %p72 = por %p70, %p71
    %p73 = scmp.ne.s32.totalorder %s65, %s67
    %p74 = scmp.eq.s32.totalorder %s15, 1
    %p75 = por %p73, %p74
    %p76 = scmp.ne.s32.totalorder %s67, %s68
    %p77 = scmp.eq.s32.totalorder %s15, 0
    %p78 = por %p76, %p77
    %p79 = scmp.ne.s32.totalorder %s67, %s68
    %p80 = scmp.eq.s32.totalorder %s16, 1
    %p81 = por %p79, %p80
    %p83 = scmp.ne.s32.totalorder %s68, %s82
    %p84 = scmp.eq.s32.totalorder %s16, 0
    %p85 = por %p83, %p84
    %s87 = sadd.s32 %s86, 1
    %p90 = scmp.eq.s32.totalorder %s10, 1
    %p91 = scmp.ne.s32.totalorder %s86, %s88
    %p92 = scmp.eq.s32.totalorder %s10, 0
    %p93 = por %p91, %p92
    %p94 = scmp.ne.s32.totalorder %s86, %s88
    %p95 = scmp.eq.s32.totalorder %s15, 1
    %p96 = por %p94, %p95
    %p97 = scmp.ne.s32.totalorder %s88, %s89
    %p98 = scmp.eq.s32.totalorder %s15, 0
    %p99 = por %p97, %p98
    %p100 = scmp.ne.s32.totalorder %s88, %s89
    %p101 = scmp.eq.s32.totalorder %s16, 1
    %p102 = por %p100, %p101
    %p104 = scmp.ne.s32.totalorder %s89, %s103
    %p105 = scmp.eq.s32.totalorder %s16, 0
    %p106 = por %p104, %p105
    %s107 = ssub.s32 %s10, %s17
    %p108 = scmp.eq.s32.totalorder %s107, 0
    %s110 = sadd.s32 %s109, 1
    %s111 = scalar_select %p108, %s109, %s110
    %p114 = pneg %p108
    %p115 = scmp.eq.s32.totalorder %s10, 1
    %p116 = por %p114, %p115
    %p117 = scmp.ne.s32.totalorder %s109, %s112
    %p118 = scmp.eq.s32.totalorder %s10, 0
    %p119 = por %p117, %p118
    %p120 = scmp.ne.s32.totalorder %s109, %s112
    %p121 = scmp.eq.s32.totalorder %s15, 1
    %p122 = por %p120, %p121
    %p123 = scmp.ne.s32.totalorder %s112, %s113
    %p124 = scmp.eq.s32.totalorder %s15, 0
    %p125 = por %p123, %p124
    %p126 = scmp.ne.s32.totalorder %s112, %s113
    %p127 = scmp.eq.s32.totalorder %s16, 1
    %p128 = por %p126, %p127
    %p130 = scmp.ne.s32.totalorder %s113, %s129
    %p131 = scmp.eq.s32.totalorder %s16, 0
    %p132 = por %p130, %p131
    %p133 = scmp.le.s32.totalorder 1, %s10
    %p134 = scmp.lt.s32.totalorder %s10, 3
    %p135 = pnand %p133, %p134
    %p136 = pneg %p135
    // Predicated region
    $region9: #{dgnn_layer_forward.5} parent=5 // pred_check
      _
    $region10: #{dgnn_layer_forward.5} parent=5 // pred_check_branch
      %138 = sbr.rel (%p135) target = $region12
    $region11: #{dgnn_layer_forward.5} parent=5 // pred_region
      %s139 = ssub.s32 %s10, 1
      // Predicated region
      $region13: #{dgnn_layer_forward.5} parent=11 // pred_check
        %p140 = pneg %p57
      $region14: #{dgnn_layer_forward.5} parent=11 // pred_check_branch
        %142 = sbr.rel (%p140) target = $region16
      $region15: #{dgnn_layer_forward.5} parent=11 // pred_region
        _
      $region16: #{dgnn_layer_forward.5} parent=11 // pred_fallthru
        _
      // Predicated region
      $region17: #{dgnn_layer_forward.5} parent=11 // pred_check
        %p143 = pneg %p78
      $region18: #{dgnn_layer_forward.5} parent=11 // pred_check_branch
        %145 = sbr.rel (%p143) target = $region20
      $region19: #{dgnn_layer_forward.5} parent=11 // pred_region
        _
      $region20: #{dgnn_layer_forward.5} parent=11 // pred_fallthru
        _
      // Predicated region
      $region21: #{dgnn_layer_forward.5} parent=11 // pred_check
        %p146 = pneg %p99
      $region22: #{dgnn_layer_forward.5} parent=11 // pred_check_branch
        %148 = sbr.rel (%p146) target = $region24
      $region23: #{dgnn_layer_forward.5} parent=11 // pred_region
        _
      $region24: #{dgnn_layer_forward.5} parent=11 // pred_fallthru
        _
    $region12: #{dgnn_layer_forward.5} parent=5 // pred_fallthru
      _
    %p149 = scmp.lt.s32.totalorder %s10, 2
    // Predicated region
    $region25: #{dgnn_layer_forward.5} parent=5 // pred_check
      %p150 = pneg %p149
    $region26: #{dgnn_layer_forward.5} parent=5 // pred_check_branch
      %152 = sbr.rel (%p150) target = $region28
    $region27: #{dgnn_layer_forward.5} parent=5 // pred_region
      // Predicated region
      $region29: #{dgnn_layer_forward.5} parent=27 // pred_check
        %p153 = pneg %p30
      $region30: #{dgnn_layer_forward.5} parent=27 // pred_check_branch
        %155 = sbr.rel (%p153) target = $region32
      $region31: #{dgnn_layer_forward.5} parent=27 // pred_region
        %s156 = smul.u32 64, %s10
        %p157 = scmp.lt.s32.totalorder %s156, 127
        %s158 = scalar_select %p157, %s156, 127
        %s159 = smul.addr %s158, 4
        %s160 = scalar_lea.vmem %s0, %s159
        %s161 = smul.u32 64, %s10
      $region32: #{dgnn_layer_forward.5} parent=27 // pred_fallthru
        _
    $region28: #{dgnn_layer_forward.5} parent=5 // pred_fallthru
      _
    %p162 = scmp.le.s32.totalorder 1, %s10
    %p163 = scmp.lt.s32.totalorder %s10, 3
    %p164 = pnand %p162, %p163
    %p165 = pneg %p164
    // Predicated region
    $region33: #{dgnn_layer_forward.5} parent=5 // pred_check
      _
    $region34: #{dgnn_layer_forward.5} parent=5 // pred_check_branch
      %167 = sbr.rel (%p164) target = $region36
    $region35: #{dgnn_layer_forward.5} parent=5 // pred_region
      %s168 = ssub.s32 %s10, 1
      %s169 = smul.u32 64, %s15
      %p170 = scmp.lt.s32.totalorder %s169, 127
      %s171 = scalar_select %p170, %s169, 127
      %s172 = smul.addr %s171, 4
      %s173 = scalar_lea.vmem %s0, %s172
      %p174 = pneg %p36
      %p175 = pneg %p33
      %p176 = pneg %p57
      %p177 = pneg %p54
      %p178 = pneg %p78
      %p179 = pneg %p75
      %p180 = pneg %p99
      %p181 = pneg %p96
      %p182 = pneg %p125
      %p183 = pneg %p122
      %s184 = smul.u32 64, %s15
      %p185 = scmp.lt.s32.totalorder %s184, 127
      %s186 = scalar_select %p185, %s184, 127
      %s187 = smul.addr %s186, 4
      %s188 = scalar_lea.vmem %s4, %s187
      %s189 = smul.u32 64, %s15
      %p190 = scmp.lt.s32.totalorder %s189, 127
      %s191 = scalar_select %p190, %s189, 127
      %s192 = smul.addr %s191, 4
      %s193 = scalar_lea.vmem %s0, %s192
      %s194 = smul.u32 64, %s15
      %s195 = smul.u32 64, %s15
      %p196 = scmp.lt.s32.totalorder %s195, 127
      %s197 = scalar_select %p196, %s195, 127
      %s198 = smul.addr %s197, 4
      %s199 = scalar_lea.vmem %s4, %s198
      %s200 = smul.u32 64, %s15
      %v202 = vld [vmem:[%s193] sm:$0xf]
      %v203 = vld [vmem:[%s193 + $0x4] sm:$0xf]
      %v204 = vld [vmem:[%s193 + $0x8] sm:$0xf]
      %v205 = vld [vmem:[%s193 + $0xc] sm:$0xf]
      %v206 = vld [vmem:[%s193 + $0x10] sm:$0xf]
      %v207 = vld [vmem:[%s193 + $0x14] sm:$0xf]
      %v208 = vld [vmem:[%s193 + $0x18] sm:$0xf]
      %v209 = vld [vmem:[%s193 + $0x1c] sm:$0xf]
      %v210 = vld [vmem:[%s193 + $0x20] sm:$0xf]
      %v211 = vld [vmem:[%s193 + $0x24] sm:$0xf]
      %v212 = vld [vmem:[%s193 + $0x28] sm:$0xf]
      %v213 = vld [vmem:[%s193 + $0x2c] sm:$0xf]
      %v214 = vld [vmem:[%s193 + $0x30] sm:$0xf]
      %v215 = vld [vmem:[%s193 + $0x34] sm:$0xf]
      %v216 = vld [vmem:[%s193 + $0x38] sm:$0xf]
      %v217 = vld [vmem:[%s193 + $0x3c] sm:$0xf]
      %v218 = vld [vmem:[%s193 + $0x40] sm:$0xf]
      %v219 = vld [vmem:[%s193 + $0x44] sm:$0xf]
      %v220 = vld [vmem:[%s193 + $0x48] sm:$0xf]
      %v221 = vld [vmem:[%s193 + $0x4c] sm:$0xf]
      %v222 = vld [vmem:[%s193 + $0x50] sm:$0xf]
      %v223 = vld [vmem:[%s193 + $0x54] sm:$0xf]
      %v224 = vld [vmem:[%s193 + $0x58] sm:$0xf]
      %v225 = vld [vmem:[%s193 + $0x5c] sm:$0xf]
      %v226 = vld [vmem:[%s193 + $0x60] sm:$0xf]
      %v227 = vld [vmem:[%s193 + $0x64] sm:$0xf]
      %v228 = vld [vmem:[%s193 + $0x68] sm:$0xf]
      %v229 = vld [vmem:[%s193 + $0x6c] sm:$0xf]
      %v230 = vld [vmem:[%s193 + $0x70] sm:$0xf]
      %v231 = vld [vmem:[%s193 + $0x74] sm:$0xf]
      %v232 = vld [vmem:[%s193 + $0x78] sm:$0xf]
      %v233 = vld [vmem:[%s193 + $0x7c] sm:$0xf]
      %v234 = vld [vmem:[%s193 + $0x80] sm:$0xf]
      %v235 = vld [vmem:[%s193 + $0x84] sm:$0xf]
      %v236 = vld [vmem:[%s193 + $0x88] sm:$0xf]
      %v237 = vld [vmem:[%s193 + $0x8c] sm:$0xf]
      %v238 = vld [vmem:[%s193 + $0x90] sm:$0xf]
      %v239 = vld [vmem:[%s193 + $0x94] sm:$0xf]
      %v240 = vld [vmem:[%s193 + $0x98] sm:$0xf]
      %v241 = vld [vmem:[%s193 + $0x9c] sm:$0xf]
      %v242 = vld [vmem:[%s193 + $0xa0] sm:$0xf]
      %v243 = vld [vmem:[%s193 + $0xa4] sm:$0xf]
      %v244 = vld [vmem:[%s193 + $0xa8] sm:$0xf]
      %v245 = vld [vmem:[%s193 + $0xac] sm:$0xf]
      %v246 = vld [vmem:[%s193 + $0xb0] sm:$0xf]
      %v247 = vld [vmem:[%s193 + $0xb4] sm:$0xf]
      %v248 = vld [vmem:[%s193 + $0xb8] sm:$0xf]
      %v249 = vld [vmem:[%s193 + $0xbc] sm:$0xf]
      %v250 = vld [vmem:[%s193 + $0xc0] sm:$0xf]
      %v251 = vld [vmem:[%s193 + $0xc4] sm:$0xf]
      %v252 = vld [vmem:[%s193 + $0xc8] sm:$0xf]
      %v253 = vld [vmem:[%s193 + $0xcc] sm:$0xf]
      %v254 = vld [vmem:[%s193 + $0xd0] sm:$0xf]
      %v255 = vld [vmem:[%s193 + $0xd4] sm:$0xf]
      %v256 = vld [vmem:[%s193 + $0xd8] sm:$0xf]
      %v257 = vld [vmem:[%s193 + $0xdc] sm:$0xf]
      %v258 = vld [vmem:[%s193 + $0xe0] sm:$0xf]
      %v259 = vld [vmem:[%s193 + $0xe4] sm:$0xf]
      %v260 = vld [vmem:[%s193 + $0xe8] sm:$0xf]
      %v261 = vld [vmem:[%s193 + $0xec] sm:$0xf]
      %v262 = vld [vmem:[%s193 + $0xf0] sm:$0xf]
      %v263 = vld [vmem:[%s193 + $0xf4] sm:$0xf]
      %v264 = vld [vmem:[%s193 + $0xf8] sm:$0xf]
      %v265 = vld [vmem:[%s193 + $0xfc] sm:$0xf]
      %v266 = vunpack.c.l.bf16 %v202
      %v267 = vunpack.c.l.bf16 %v203
      %v268 = vunpack.c.l.bf16 %v204
      %v269 = vunpack.c.l.bf16 %v205
      %v270 = vunpack.c.l.bf16 %v206
      %v271 = vunpack.c.l.bf16 %v207
      %v272 = vunpack.c.l.bf16 %v208
      %v273 = vunpack.c.l.bf16 %v209
      %v274 = vunpack.c.l.bf16 %v210
      %v275 = vunpack.c.l.bf16 %v211
      %v276 = vunpack.c.l.bf16 %v212
      %v277 = vunpack.c.l.bf16 %v213
      %v278 = vunpack.c.l.bf16 %v214
      %v279 = vunpack.c.l.bf16 %v215
      %v280 = vunpack.c.l.bf16 %v216
      %v281 = vunpack.c.l.bf16 %v217
      %v282 = vunpack.c.l.bf16 %v218
      %v283 = vunpack.c.l.bf16 %v219
      %v284 = vunpack.c.l.bf16 %v220
      %v285 = vunpack.c.l.bf16 %v221
      %v286 = vunpack.c.l.bf16 %v222
      %v287 = vunpack.c.l.bf16 %v223
      %v288 = vunpack.c.l.bf16 %v224
      %v289 = vunpack.c.l.bf16 %v225
      %v290 = vunpack.c.l.bf16 %v226
      %v291 = vunpack.c.l.bf16 %v227
      %v292 = vunpack.c.l.bf16 %v228
      %v293 = vunpack.c.l.bf16 %v229
      %v294 = vunpack.c.l.bf16 %v230
      %v295 = vunpack.c.l.bf16 %v231
      %v296 = vunpack.c.l.bf16 %v232
      %v297 = vunpack.c.l.bf16 %v233
      %v298 = vunpack.c.l.bf16 %v234
      %v299 = vunpack.c.l.bf16 %v235
      %v300 = vunpack.c.l.bf16 %v236
      %v301 = vunpack.c.l.bf16 %v237
      %v302 = vunpack.c.l.bf16 %v238
      %v303 = vunpack.c.l.bf16 %v239
      %v304 = vunpack.c.l.bf16 %v240
      %v305 = vunpack.c.l.bf16 %v241
      %v306 = vunpack.c.l.bf16 %v242
      %v307 = vunpack.c.l.bf16 %v243
      %v308 = vunpack.c.l.bf16 %v244
      %v309 = vunpack.c.l.bf16 %v245
      %v310 = vunpack.c.l.bf16 %v246
      %v311 = vunpack.c.l.bf16 %v247
      %v312 = vunpack.c.l.bf16 %v248
      %v313 = vunpack.c.l.bf16 %v249
      %v314 = vunpack.c.l.bf16 %v250
      %v315 = vunpack.c.l.bf16 %v251
      %v316 = vunpack.c.l.bf16 %v252
      %v317 = vunpack.c.l.bf16 %v253
      %v318 = vunpack.c.l.bf16 %v254
      %v319 = vunpack.c.l.bf16 %v255
      %v320 = vunpack.c.l.bf16 %v256
      %v321 = vunpack.c.l.bf16 %v257
      %v322 = vunpack.c.l.bf16 %v258
      %v323 = vunpack.c.l.bf16 %v259
      %v324 = vunpack.c.l.bf16 %v260
      %v325 = vunpack.c.l.bf16 %v261
      %v326 = vunpack.c.l.bf16 %v262
      %v327 = vunpack.c.l.bf16 %v263
      %v328 = vunpack.c.l.bf16 %v264
      %v329 = vunpack.c.l.bf16 %v265
      %v330 = vld [vmem:[%s2] sm:$0x1]
      %v331 = vlaneseq
      %v332 = vshrl.u32 %v331, 7
      %v333 = vsub.s32 0, %v332
      %v334 = vrot.slane %v330, %v333
      %v335 = vmul.f32 %v266, %v334
      %v336 = vmul.f32 %v267, %v334
      %v337 = vmul.f32 %v268, %v334
      %v338 = vmul.f32 %v269, %v334
      %v339 = vmul.f32 %v270, %v334
      %v340 = vmul.f32 %v271, %v334
      %v341 = vmul.f32 %v272, %v334
      %v342 = vmul.f32 %v273, %v334
      %v343 = vmul.f32 %v274, %v334
      %v344 = vmul.f32 %v275, %v334
      %v345 = vmul.f32 %v276, %v334
      %v346 = vmul.f32 %v277, %v334
      %v347 = vmul.f32 %v278, %v334
      %v348 = vmul.f32 %v279, %v334
      %v349 = vmul.f32 %v280, %v334
      %v350 = vmul.f32 %v281, %v334
      %v351 = vmul.f32 %v282, %v334
      %v352 = vmul.f32 %v283, %v334
      %v353 = vmul.f32 %v284, %v334
      %v354 = vmul.f32 %v285, %v334
      %v355 = vmul.f32 %v286, %v334
      %v356 = vmul.f32 %v287, %v334
      %v357 = vmul.f32 %v288, %v334
      %v358 = vmul.f32 %v289, %v334
      %v359 = vmul.f32 %v290, %v334
      %v360 = vmul.f32 %v291, %v334
      %v361 = vmul.f32 %v292, %v334
      %v362 = vmul.f32 %v293, %v334
      %v363 = vmul.f32 %v294, %v334
      %v364 = vmul.f32 %v295, %v334
      %v365 = vmul.f32 %v296, %v334
      %v366 = vmul.f32 %v297, %v334
      %v367 = vmul.f32 %v298, %v334
      %v368 = vmul.f32 %v299, %v334
      %v369 = vmul.f32 %v300, %v334
      %v370 = vmul.f32 %v301, %v334
      %v371 = vmul.f32 %v302, %v334
      %v372 = vmul.f32 %v303, %v334
      %v373 = vmul.f32 %v304, %v334
      %v374 = vmul.f32 %v305, %v334
      %v375 = vmul.f32 %v306, %v334
      %v376 = vmul.f32 %v307, %v334
      %v377 = vmul.f32 %v308, %v334
      %v378 = vmul.f32 %v309, %v334
      %v379 = vmul.f32 %v310, %v334
      %v380 = vmul.f32 %v311, %v334
      %v381 = vmul.f32 %v312, %v334
      %v382 = vmul.f32 %v313, %v334
      %v383 = vmul.f32 %v314, %v334
      %v384 = vmul.f32 %v315, %v334
      %v385 = vmul.f32 %v316, %v334
      %v386 = vmul.f32 %v317, %v334
      %v387 = vmul.f32 %v318, %v334
      %v388 = vmul.f32 %v319, %v334
      %v389 = vmul.f32 %v320, %v334
      %v390 = vmul.f32 %v321, %v334
      %v391 = vmul.f32 %v322, %v334
      %v392 = vmul.f32 %v323, %v334
      %v393 = vmul.f32 %v324, %v334
      %v394 = vmul.f32 %v325, %v334
      %v395 = vmul.f32 %v326, %v334
      %v396 = vmul.f32 %v327, %v334
      %v397 = vmul.f32 %v328, %v334
      %v398 = vmul.f32 %v329, %v334
      %v399 = vld [vmem:[%s2 + $0x1] sm:$0x1]
      %v400 = vlaneseq
      %v401 = vshrl.u32 %v400, 7
      %v402 = vsub.s32 0, %v401
      %v403 = vrot.slane %v399, %v402
      %v404 = vadd.f32 %v335, %v403
      %v405 = vadd.f32 %v336, %v403
      %v406 = vadd.f32 %v337, %v403
      %v407 = vadd.f32 %v338, %v403
      %v408 = vadd.f32 %v339, %v403
      %v409 = vadd.f32 %v340, %v403
      %v410 = vadd.f32 %v341, %v403
      %v411 = vadd.f32 %v342, %v403
      %v412 = vadd.f32 %v343, %v403
      %v413 = vadd.f32 %v344, %v403
      %v414 = vadd.f32 %v345, %v403
      %v415 = vadd.f32 %v346, %v403
      %v416 = vadd.f32 %v347, %v403
      %v417 = vadd.f32 %v348, %v403
      %v418 = vadd.f32 %v349, %v403
      %v419 = vadd.f32 %v350, %v403
      %v420 = vadd.f32 %v351, %v403
      %v421 = vadd.f32 %v352, %v403
      %v422 = vadd.f32 %v353, %v403
      %v423 = vadd.f32 %v354, %v403
      %v424 = vadd.f32 %v355, %v403
      %v425 = vadd.f32 %v356, %v403
      %v426 = vadd.f32 %v357, %v403
      %v427 = vadd.f32 %v358, %v403
      %v428 = vadd.f32 %v359, %v403
      %v429 = vadd.f32 %v360, %v403
      %v430 = vadd.f32 %v361, %v403
      %v431 = vadd.f32 %v362, %v403
      %v432 = vadd.f32 %v363, %v403
      %v433 = vadd.f32 %v364, %v403
      %v434 = vadd.f32 %v365, %v403
      %v435 = vadd.f32 %v366, %v403
      %v436 = vadd.f32 %v367, %v403
      %v437 = vadd.f32 %v368, %v403
      %v438 = vadd.f32 %v369, %v403
      %v439 = vadd.f32 %v370, %v403
      %v440 = vadd.f32 %v371, %v403
      %v441 = vadd.f32 %v372, %v403
      %v442 = vadd.f32 %v373, %v403
      %v443 = vadd.f32 %v374, %v403
      %v444 = vadd.f32 %v375, %v403
      %v445 = vadd.f32 %v376, %v403
      %v446 = vadd.f32 %v377, %v403
      %v447 = vadd.f32 %v378, %v403
      %v448 = vadd.f32 %v379, %v403
      %v449 = vadd.f32 %v380, %v403
      %v450 = vadd.f32 %v381, %v403
      %v451 = vadd.f32 %v382, %v403
      %v452 = vadd.f32 %v383, %v403
      %v453 = vadd.f32 %v384, %v403
      %v454 = vadd.f32 %v385, %v403
      %v455 = vadd.f32 %v386, %v403
      %v456 = vadd.f32 %v387, %v403
      %v457 = vadd.f32 %v388, %v403
      %v458 = vadd.f32 %v389, %v403
      %v459 = vadd.f32 %v390, %v403
      %v460 = vadd.f32 %v391, %v403
      %v461 = vadd.f32 %v392, %v403
      %v462 = vadd.f32 %v393, %v403
      %v463 = vadd.f32 %v394, %v403
      %v464 = vadd.f32 %v395, %v403
      %v465 = vadd.f32 %v396, %v403
      %v466 = vadd.f32 %v397, %v403
      %v467 = vadd.f32 %v398, %v403
      %v468 = vmax.f32 %v404, 0.0
      %v469 = vmax.f32 %v405, 0.0
      %v470 = vmax.f32 %v406, 0.0
      %v471 = vmax.f32 %v407, 0.0
      %v472 = vmax.f32 %v408, 0.0
      %v473 = vmax.f32 %v409, 0.0
      %v474 = vmax.f32 %v410, 0.0
      %v475 = vmax.f32 %v411, 0.0
      %v476 = vmax.f32 %v412, 0.0
      %v477 = vmax.f32 %v413, 0.0
      %v478 = vmax.f32 %v414, 0.0
      %v479 = vmax.f32 %v415, 0.0
      %v480 = vmax.f32 %v416, 0.0
      %v481 = vmax.f32 %v417, 0.0
      %v482 = vmax.f32 %v418, 0.0
      %v483 = vmax.f32 %v419, 0.0
      %v484 = vmax.f32 %v420, 0.0
      %v485 = vmax.f32 %v421, 0.0
      %v486 = vmax.f32 %v422, 0.0
      %v487 = vmax.f32 %v423, 0.0
      %v488 = vmax.f32 %v424, 0.0
      %v489 = vmax.f32 %v425, 0.0
      %v490 = vmax.f32 %v426, 0.0
      %v491 = vmax.f32 %v427, 0.0
      %v492 = vmax.f32 %v428, 0.0
      %v493 = vmax.f32 %v429, 0.0
      %v494 = vmax.f32 %v430, 0.0
      %v495 = vmax.f32 %v431, 0.0
      %v496 = vmax.f32 %v432, 0.0
      %v497 = vmax.f32 %v433, 0.0
      %v498 = vmax.f32 %v434, 0.0
      %v499 = vmax.f32 %v435, 0.0
      %v500 = vmax.f32 %v436, 0.0
      %v501 = vmax.f32 %v437, 0.0
      %v502 = vmax.f32 %v438, 0.0
      %v503 = vmax.f32 %v439, 0.0
      %v504 = vmax.f32 %v440, 0.0
      %v505 = vmax.f32 %v441, 0.0
      %v506 = vmax.f32 %v442, 0.0
      %v507 = vmax.f32 %v443, 0.0
      %v508 = vmax.f32 %v444, 0.0
      %v509 = vmax.f32 %v445, 0.0
      %v510 = vmax.f32 %v446, 0.0
      %v511 = vmax.f32 %v447, 0.0
      %v512 = vmax.f32 %v448, 0.0
      %v513 = vmax.f32 %v449, 0.0
      %v514 = vmax.f32 %v450, 0.0
      %v515 = vmax.f32 %v451, 0.0
      %v516 = vmax.f32 %v452, 0.0
      %v517 = vmax.f32 %v453, 0.0
      %v518 = vmax.f32 %v454, 0.0
      %v519 = vmax.f32 %v455, 0.0
      %v520 = vmax.f32 %v456, 0.0
      %v521 = vmax.f32 %v457, 0.0
      %v522 = vmax.f32 %v458, 0.0
      %v523 = vmax.f32 %v459, 0.0
      %v524 = vmax.f32 %v460, 0.0
      %v525 = vmax.f32 %v461, 0.0
      %v526 = vmax.f32 %v462, 0.0
      %v527 = vmax.f32 %v463, 0.0
      %v528 = vmax.f32 %v464, 0.0
      %v529 = vmax.f32 %v465, 0.0
      %v530 = vmax.f32 %v466, 0.0
      %v531 = vmax.f32 %v467, 0.0
      %v532 = vpack.c.bf16 %v469, %v468
      %v533 = vpack.c.bf16 %v471, %v470
      %v534 = vpack.c.bf16 %v473, %v472
      %v535 = vpack.c.bf16 %v475, %v474
      %v536 = vpack.c.bf16 %v477, %v476
      %v537 = vpack.c.bf16 %v479, %v478
      %v538 = vpack.c.bf16 %v481, %v480
      %v539 = vpack.c.bf16 %v483, %v482
      %v540 = vpack.c.bf16 %v485, %v484
      %v541 = vpack.c.bf16 %v487, %v486
      %v542 = vpack.c.bf16 %v489, %v488
      %v543 = vpack.c.bf16 %v491, %v490
      %v544 = vpack.c.bf16 %v493, %v492
      %v545 = vpack.c.bf16 %v495, %v494
      %v546 = vpack.c.bf16 %v497, %v496
      %v547 = vpack.c.bf16 %v499, %v498
      %v548 = vpack.c.bf16 %v501, %v500
      %v549 = vpack.c.bf16 %v503, %v502
      %v550 = vpack.c.bf16 %v505, %v504
      %v551 = vpack.c.bf16 %v507, %v506
      %v552 = vpack.c.bf16 %v509, %v508
      %v553 = vpack.c.bf16 %v511, %v510
      %v554 = vpack.c.bf16 %v513, %v512
      %v555 = vpack.c.bf16 %v515, %v514
      %v556 = vpack.c.bf16 %v517, %v516
      %v557 = vpack.c.bf16 %v519, %v518
      %v558 = vpack.c.bf16 %v521, %v520
      %v559 = vpack.c.bf16 %v523, %v522
      %v560 = vpack.c.bf16 %v525, %v524
      %v561 = vpack.c.bf16 %v527, %v526
      %v562 = vpack.c.bf16 %v529, %v528
      %v563 = vpack.c.bf16 %v531, %v530
      %v564 = vld [vmem:[%s1] sm:$0xf]
      %v565 = vld [vmem:[%s1 + $0x4] sm:$0xf]
      %v566 = vld [vmem:[%s1 + $0x8] sm:$0xf]
      %v567 = vld [vmem:[%s1 + $0xc] sm:$0xf]
      %v568 = vld [vmem:[%s1 + $0x10] sm:$0xf]
      %v569 = vld [vmem:[%s1 + $0x14] sm:$0xf]
      %v570 = vld [vmem:[%s1 + $0x18] sm:$0xf]
      %v571 = vld [vmem:[%s1 + $0x1c] sm:$0xf]
      %v572 = vld [vmem:[%s1 + $0x20] sm:$0xf]
      %v573 = vld [vmem:[%s1 + $0x24] sm:$0xf]
      %v574 = vld [vmem:[%s1 + $0x28] sm:$0xf]
      %v575 = vld [vmem:[%s1 + $0x2c] sm:$0xf]
      %v576 = vld [vmem:[%s1 + $0x30] sm:$0xf]
      %v577 = vld [vmem:[%s1 + $0x34] sm:$0xf]
      %v578 = vld [vmem:[%s1 + $0x38] sm:$0xf]
      %v579 = vld [vmem:[%s1 + $0x3c] sm:$0xf]
      %v580 = vld [vmem:[%s3] sm:$0x1]
      %v581 = vlaneseq
      %v582 = vshrl.u32 %v581, 7
      %v583 = vsub.s32 0, %v582
      %v584 = vrot.slane %v580, %v583
      %v601 = vunpack.c.l.b16 %v564
      %v602 = vunpack.c.l.b16 %v565
      %v603 = vunpack.c.l.b16 %v566
      %v604 = vunpack.c.l.b16 %v567
      %v605 = vunpack.c.l.b16 %v568
      %v606 = vunpack.c.l.b16 %v569
      %v607 = vunpack.c.l.b16 %v570
      %v608 = vunpack.c.l.b16 %v571
      %v609 = vunpack.c.l.b16 %v572
      %v610 = vunpack.c.l.b16 %v573
      %v611 = vunpack.c.l.b16 %v574
      %v612 = vunpack.c.l.b16 %v575
      %v613 = vunpack.c.l.b16 %v576
      %v614 = vunpack.c.l.b16 %v577
      %v615 = vunpack.c.l.b16 %v578
      %v616 = vunpack.c.l.b16 %v579
      %v617 = vpack.c.b16 %v602, %v601
      %v618 = vpack.c.b16 %v604, %v603
      %v619 = vpack.c.b16 %v606, %v605
      %v620 = vpack.c.b16 %v608, %v607
      %v621 = vpack.c.b16 %v610, %v609
      %v622 = vpack.c.b16 %v612, %v611
      %v623 = vpack.c.b16 %v614, %v613
      %v624 = vpack.c.b16 %v616, %v615
      %633 = vmatprep.subr.bf16.mxu0 0
      %634 = vmatpush1.bf16.msra.mxu0 %v624
      %635 = vmatprep.subr.bf16.mxu0 0
      %636 = vmatpush1.bf16.msra.mxu0 %v623
      %637 = vmatprep.subr.bf16.mxu0 0
      %638 = vmatpush1.bf16.msra.mxu0 %v622
      %639 = vmatprep.subr.bf16.mxu0 0
      %640 = vmatpush1.bf16.msra.mxu0 %v621
      %641 = vmatprep.subr.bf16.mxu0 0
      %642 = vmatpush1.bf16.msra.mxu0 %v620
      %643 = vmatprep.subr.bf16.mxu0 0
      %644 = vmatpush1.bf16.msra.mxu0 %v619
      %645 = vmatprep.subr.bf16.mxu0 0
      %646 = vmatpush1.bf16.msra.mxu0 %v618
      %647 = vmatprep.subr.bf16.mxu0 0
      %648 = vmatpush1.bf16.msra.mxu0 %v617
      %649 = vmatprep.subr.bf16.mxu0 0
      %650 = vmatpush2.bf16.msra.mxu0 0
      %651 = vmatprep.subr.bf16.mxu0 0
      %652 = vmatpush2.bf16.msra.mxu0 0
      %653 = vmatprep.subr.bf16.mxu0 0
      %654 = vmatpush2.bf16.msra.mxu0 0
      %655 = vmatprep.subr.bf16.mxu0 0
      %656 = vmatpush2.bf16.msra.mxu0 0
      %657 = vmatprep.subr.bf16.mxu0 0
      %658 = vmatpush2.bf16.msra.mxu0 0
      %659 = vmatprep.subr.bf16.mxu0 0
      %660 = vmatpush2.bf16.msra.mxu0 0
      %661 = vmatprep.subr.bf16.mxu0 0
      %662 = vmatpush2.bf16.msra.mxu0 0
      %663 = vmatprep.subr.bf16.mxu0 0
      %664 = vmatpush2.bf16.msra.mxu0 0
      %665 = vmatprep.mubr.bf16.mxu0 0
      %666 = vmatmul.mubr.bf16.gmra.mxu0 %v532
      %v667 = vpop.f32.mrf.mxu0
      %v668 = vadd.f32 %v584, %v667
      %v669 = vpop.f32.mrf.mxu0
      %v670 = vpop.f32.mrf.mxu0
      %v671 = vadd.f32 %v584, %v670
      %v672 = vpop.f32.mrf.mxu0
      %673 = vmatprep.mubr.bf16.mxu0 0
      %674 = vmatmul.mubr.bf16.gmra.mxu0 %v533
      %v675 = vpop.f32.mrf.mxu0
      %v676 = vadd.f32 %v584, %v675
      %v677 = vpop.f32.mrf.mxu0
      %v678 = vpop.f32.mrf.mxu0
      %v679 = vadd.f32 %v584, %v678
      %v680 = vpop.f32.mrf.mxu0
      %681 = vmatprep.mubr.bf16.mxu0 0
      %682 = vmatmul.mubr.bf16.gmra.mxu0 %v534
      %v683 = vpop.f32.mrf.mxu0
      %v684 = vadd.f32 %v584, %v683
      %v685 = vpop.f32.mrf.mxu0
      %v686 = vpop.f32.mrf.mxu0
      %v687 = vadd.f32 %v584, %v686
      %v688 = vpop.f32.mrf.mxu0
      %689 = vmatprep.mubr.bf16.mxu0 0
      %690 = vmatmul.mubr.bf16.gmra.mxu0 %v535
      %v691 = vpop.f32.mrf.mxu0
      %v692 = vadd.f32 %v584, %v691
      %v693 = vpop.f32.mrf.mxu0
      %v694 = vpop.f32.mrf.mxu0
      %v695 = vadd.f32 %v584, %v694
      %v696 = vpop.f32.mrf.mxu0
      %697 = vmatprep.mubr.bf16.mxu0 0
      %698 = vmatmul.mubr.bf16.gmra.mxu0 %v536
      %v699 = vpop.f32.mrf.mxu0
      %v700 = vadd.f32 %v584, %v699
      %v701 = vpop.f32.mrf.mxu0
      %v702 = vpop.f32.mrf.mxu0
      %v703 = vadd.f32 %v584, %v702
      %v704 = vpop.f32.mrf.mxu0
      %705 = vmatprep.mubr.bf16.mxu0 0
      %706 = vmatmul.mubr.bf16.gmra.mxu0 %v537
      %v707 = vpop.f32.mrf.mxu0
      %v708 = vadd.f32 %v584, %v707
      %v709 = vpop.f32.mrf.mxu0
      %v710 = vpop.f32.mrf.mxu0
      %v711 = vadd.f32 %v584, %v710
      %v712 = vpop.f32.mrf.mxu0
      %713 = vmatprep.mubr.bf16.mxu0 0
      %714 = vmatmul.mubr.bf16.gmra.mxu0 %v538
      %v715 = vpop.f32.mrf.mxu0
      %v716 = vadd.f32 %v584, %v715
      %v717 = vpop.f32.mrf.mxu0
      %v718 = vpop.f32.mrf.mxu0
      %v719 = vadd.f32 %v584, %v718
      %v720 = vpop.f32.mrf.mxu0
      %721 = vmatprep.mubr.bf16.mxu0 0
      %722 = vmatmul.mubr.bf16.gmra.mxu0 %v539
      %v723 = vpop.f32.mrf.mxu0
      %v724 = vadd.f32 %v584, %v723
      %v725 = vpop.f32.mrf.mxu0
      %v726 = vpop.f32.mrf.mxu0
      %v727 = vadd.f32 %v584, %v726
      %v728 = vpop.f32.mrf.mxu0
      %729 = vmatprep.mubr.bf16.mxu0 0
      %730 = vmatmul.mubr.bf16.gmra.mxu0 %v540
      %v731 = vpop.f32.mrf.mxu0
      %v732 = vadd.f32 %v584, %v731
      %v733 = vpop.f32.mrf.mxu0
      %v734 = vpop.f32.mrf.mxu0
      %v735 = vadd.f32 %v584, %v734
      %v736 = vpop.f32.mrf.mxu0
      %737 = vmatprep.mubr.bf16.mxu0 0
      %738 = vmatmul.mubr.bf16.gmra.mxu0 %v541
      %v739 = vpop.f32.mrf.mxu0
      %v740 = vadd.f32 %v584, %v739
      %v741 = vpop.f32.mrf.mxu0
      %v742 = vpop.f32.mrf.mxu0
      %v743 = vadd.f32 %v584, %v742
      %v744 = vpop.f32.mrf.mxu0
      %745 = vmatprep.mubr.bf16.mxu0 0
      %746 = vmatmul.mubr.bf16.gmra.mxu0 %v542
      %v747 = vpop.f32.mrf.mxu0
      %v748 = vadd.f32 %v584, %v747
      %v749 = vpop.f32.mrf.mxu0
      %v750 = vpop.f32.mrf.mxu0
      %v751 = vadd.f32 %v584, %v750
      %v752 = vpop.f32.mrf.mxu0
      %753 = vmatprep.mubr.bf16.mxu0 0
      %754 = vmatmul.mubr.bf16.gmra.mxu0 %v543
      %v755 = vpop.f32.mrf.mxu0
      %v756 = vadd.f32 %v584, %v755
      %v757 = vpop.f32.mrf.mxu0
      %v758 = vpop.f32.mrf.mxu0
      %v759 = vadd.f32 %v584, %v758
      %v760 = vpop.f32.mrf.mxu0
      %761 = vmatprep.mubr.bf16.mxu0 0
      %762 = vmatmul.mubr.bf16.gmra.mxu0 %v544
      %v763 = vpop.f32.mrf.mxu0
      %v764 = vadd.f32 %v584, %v763
      %v765 = vpop.f32.mrf.mxu0
      %v766 = vpop.f32.mrf.mxu0
      %v767 = vadd.f32 %v584, %v766
      %v768 = vpop.f32.mrf.mxu0
      %769 = vmatprep.mubr.bf16.mxu0 0
      %770 = vmatmul.mubr.bf16.gmra.mxu0 %v545
      %v771 = vpop.f32.mrf.mxu0
      %v772 = vadd.f32 %v584, %v771
      %v773 = vpop.f32.mrf.mxu0
      %v774 = vpop.f32.mrf.mxu0
      %v775 = vadd.f32 %v584, %v774
      %v776 = vpop.f32.mrf.mxu0
      %777 = vmatprep.mubr.bf16.mxu0 0
      %778 = vmatmul.mubr.bf16.gmra.mxu0 %v546
      %v779 = vpop.f32.mrf.mxu0
      %v780 = vadd.f32 %v584, %v779
      %v781 = vpop.f32.mrf.mxu0
      %v782 = vpop.f32.mrf.mxu0
      %v783 = vadd.f32 %v584, %v782
      %v784 = vpop.f32.mrf.mxu0
      %785 = vmatprep.mubr.bf16.mxu0 0
      %786 = vmatmul.mubr.bf16.gmra.mxu0 %v547
      %v787 = vpop.f32.mrf.mxu0
      %v788 = vadd.f32 %v584, %v787
      %v789 = vpop.f32.mrf.mxu0
      %v790 = vpop.f32.mrf.mxu0
      %v791 = vadd.f32 %v584, %v790
      %v792 = vpop.f32.mrf.mxu0
      %793 = vmatprep.mubr.bf16.mxu0 0
      %794 = vmatmul.mubr.bf16.gmra.mxu0 %v548
      %v795 = vpop.f32.mrf.mxu0
      %v796 = vadd.f32 %v584, %v795
      %v797 = vpop.f32.mrf.mxu0
      %v798 = vpop.f32.mrf.mxu0
      %v799 = vadd.f32 %v584, %v798
      %v800 = vpop.f32.mrf.mxu0
      %801 = vmatprep.mubr.bf16.mxu0 0
      %802 = vmatmul.mubr.bf16.gmra.mxu0 %v549
      %v803 = vpop.f32.mrf.mxu0
      %v804 = vadd.f32 %v584, %v803
      %v805 = vpop.f32.mrf.mxu0
      %v806 = vpop.f32.mrf.mxu0
      %v807 = vadd.f32 %v584, %v806
      %v808 = vpop.f32.mrf.mxu0
      %809 = vmatprep.mubr.bf16.mxu0 0
      %810 = vmatmul.mubr.bf16.gmra.mxu0 %v550
      %v811 = vpop.f32.mrf.mxu0
      %v812 = vadd.f32 %v584, %v811
      %v813 = vpop.f32.mrf.mxu0
      %v814 = vpop.f32.mrf.mxu0
      %v815 = vadd.f32 %v584, %v814
      %v816 = vpop.f32.mrf.mxu0
      %817 = vmatprep.mubr.bf16.mxu0 0
      %818 = vmatmul.mubr.bf16.gmra.mxu0 %v551
      %v819 = vpop.f32.mrf.mxu0
      %v820 = vadd.f32 %v584, %v819
      %v821 = vpop.f32.mrf.mxu0
      %v822 = vpop.f32.mrf.mxu0
      %v823 = vadd.f32 %v584, %v822
      %v824 = vpop.f32.mrf.mxu0
      %825 = vmatprep.mubr.bf16.mxu0 0
      %826 = vmatmul.mubr.bf16.gmra.mxu0 %v552
      %v827 = vpop.f32.mrf.mxu0
      %v828 = vadd.f32 %v584, %v827
      %v829 = vpop.f32.mrf.mxu0
      %v830 = vpop.f32.mrf.mxu0
      %v831 = vadd.f32 %v584, %v830
      %v832 = vpop.f32.mrf.mxu0
      %833 = vmatprep.mubr.bf16.mxu0 0
      %834 = vmatmul.mubr.bf16.gmra.mxu0 %v553
      %v835 = vpop.f32.mrf.mxu0
      %v836 = vadd.f32 %v584, %v835
      %v837 = vpop.f32.mrf.mxu0
      %v838 = vpop.f32.mrf.mxu0
      %v839 = vadd.f32 %v584, %v838
      %v840 = vpop.f32.mrf.mxu0
      %841 = vmatprep.mubr.bf16.mxu0 0
      %842 = vmatmul.mubr.bf16.gmra.mxu0 %v554
      %v843 = vpop.f32.mrf.mxu0
      %v844 = vadd.f32 %v584, %v843
      %v845 = vpop.f32.mrf.mxu0
      %v846 = vpop.f32.mrf.mxu0
      %v847 = vadd.f32 %v584, %v846
      %v848 = vpop.f32.mrf.mxu0
      %849 = vmatprep.mubr.bf16.mxu0 0
      %850 = vmatmul.mubr.bf16.gmra.mxu0 %v555
      %v851 = vpop.f32.mrf.mxu0
      %v852 = vadd.f32 %v584, %v851
      %v853 = vpop.f32.mrf.mxu0
      %v854 = vpop.f32.mrf.mxu0
      %v855 = vadd.f32 %v584, %v854
      %v856 = vpop.f32.mrf.mxu0
      %857 = vmatprep.mubr.bf16.mxu0 0
      %858 = vmatmul.mubr.bf16.gmra.mxu0 %v556
      %v859 = vpop.f32.mrf.mxu0
      %v860 = vadd.f32 %v584, %v859
      %v861 = vpop.f32.mrf.mxu0
      %v862 = vpop.f32.mrf.mxu0
      %v863 = vadd.f32 %v584, %v862
      %v864 = vpop.f32.mrf.mxu0
      %865 = vmatprep.mubr.bf16.mxu0 0
      %866 = vmatmul.mubr.bf16.gmra.mxu0 %v557
      %v867 = vpop.f32.mrf.mxu0
      %v868 = vadd.f32 %v584, %v867
      %v869 = vpop.f32.mrf.mxu0
      %v870 = vpop.f32.mrf.mxu0
      %v871 = vadd.f32 %v584, %v870
      %v872 = vpop.f32.mrf.mxu0
      %873 = vmatprep.mubr.bf16.mxu0 0
      %874 = vmatmul.mubr.bf16.gmra.mxu0 %v558
      %v875 = vpop.f32.mrf.mxu0
      %v876 = vadd.f32 %v584, %v875
      %v877 = vpop.f32.mrf.mxu0
      %v878 = vpop.f32.mrf.mxu0
      %v879 = vadd.f32 %v584, %v878
      %v880 = vpop.f32.mrf.mxu0
      %881 = vmatprep.mubr.bf16.mxu0 0
      %882 = vmatmul.mubr.bf16.gmra.mxu0 %v559
      %v883 = vpop.f32.mrf.mxu0
      %v884 = vadd.f32 %v584, %v883
      %v885 = vpop.f32.mrf.mxu0
      %v886 = vpop.f32.mrf.mxu0
      %v887 = vadd.f32 %v584, %v886
      %v888 = vpop.f32.mrf.mxu0
      %889 = vmatprep.mubr.bf16.mxu0 0
      %890 = vmatmul.mubr.bf16.gmra.mxu0 %v560
      %v891 = vpop.f32.mrf.mxu0
      %v892 = vadd.f32 %v584, %v891
      %v893 = vpop.f32.mrf.mxu0
      %v894 = vpop.f32.mrf.mxu0
      %v895 = vadd.f32 %v584, %v894
      %v896 = vpop.f32.mrf.mxu0
      %897 = vmatprep.mubr.bf16.mxu0 0
      %898 = vmatmul.mubr.bf16.gmra.mxu0 %v561
      %v899 = vpop.f32.mrf.mxu0
      %v900 = vadd.f32 %v584, %v899
      %v901 = vpop.f32.mrf.mxu0
      %v902 = vpop.f32.mrf.mxu0
      %v903 = vadd.f32 %v584, %v902
      %v904 = vpop.f32.mrf.mxu0
      %905 = vmatprep.mubr.bf16.mxu0 0
      %906 = vmatmul.mubr.bf16.gmra.mxu0 %v562
      %v907 = vpop.f32.mrf.mxu0
      %v908 = vadd.f32 %v584, %v907
      %v909 = vpop.f32.mrf.mxu0
      %v910 = vpop.f32.mrf.mxu0
      %v911 = vadd.f32 %v584, %v910
      %v912 = vpop.f32.mrf.mxu0
      %913 = vmatprep.mubr.bf16.mxu0 0
      %914 = vmatmul.mubr.bf16.gmra.mxu0 %v563
      %v915 = vpop.f32.mrf.mxu0
      %v916 = vadd.f32 %v584, %v915
      %v917 = vpop.f32.mrf.mxu0
      %v918 = vpop.f32.mrf.mxu0
      %v919 = vadd.f32 %v584, %v918
      %v920 = vpop.f32.mrf.mxu0
      %921 = vdwg.mxu0
      %v922 = vpack.c.bf16 %v671, %v668
      %v923 = vpack.c.bf16 %v679, %v676
      %v924 = vpack.c.bf16 %v687, %v684
      %v925 = vpack.c.bf16 %v695, %v692
      %v926 = vpack.c.bf16 %v703, %v700
      %v927 = vpack.c.bf16 %v711, %v708
      %v928 = vpack.c.bf16 %v719, %v716
      %v929 = vpack.c.bf16 %v727, %v724
      %v930 = vpack.c.bf16 %v735, %v732
      %v931 = vpack.c.bf16 %v743, %v740
      %v932 = vpack.c.bf16 %v751, %v748
      %v933 = vpack.c.bf16 %v759, %v756
      %v934 = vpack.c.bf16 %v767, %v764
      %v935 = vpack.c.bf16 %v775, %v772
      %v936 = vpack.c.bf16 %v783, %v780
      %v937 = vpack.c.bf16 %v791, %v788
      %v938 = vpack.c.bf16 %v799, %v796
      %v939 = vpack.c.bf16 %v807, %v804
      %v940 = vpack.c.bf16 %v815, %v812
      %v941 = vpack.c.bf16 %v823, %v820
      %v942 = vpack.c.bf16 %v831, %v828
      %v943 = vpack.c.bf16 %v839, %v836
      %v944 = vpack.c.bf16 %v847, %v844
      %v945 = vpack.c.bf16 %v855, %v852
      %v946 = vpack.c.bf16 %v863, %v860
      %v947 = vpack.c.bf16 %v871, %v868
      %v948 = vpack.c.bf16 %v879, %v876
      %v949 = vpack.c.bf16 %v887, %v884
      %v950 = vpack.c.bf16 %v895, %v892
      %v951 = vpack.c.bf16 %v903, %v900
      %v952 = vpack.c.bf16 %v911, %v908
      %v953 = vpack.c.bf16 %v919, %v916
      %v986 = vunpack.c.l.b16 %v922
      %v987 = vunpack.c.h.b16 %v922
      %v988 = vunpack.c.l.b16 %v923
      %v989 = vunpack.c.h.b16 %v923
      %v990 = vunpack.c.l.b16 %v924
      %v991 = vunpack.c.h.b16 %v924
      %v992 = vunpack.c.l.b16 %v925
      %v993 = vunpack.c.h.b16 %v925
      %v994 = vunpack.c.l.b16 %v926
      %v995 = vunpack.c.h.b16 %v926
      %v996 = vunpack.c.l.b16 %v927
      %v997 = vunpack.c.h.b16 %v927
      %v998 = vunpack.c.l.b16 %v928
      %v999 = vunpack.c.h.b16 %v928
      %v1000 = vunpack.c.l.b16 %v929
      %v1001 = vunpack.c.h.b16 %v929
      %v1002 = vunpack.c.l.b16 %v930
      %v1003 = vunpack.c.h.b16 %v930
      %v1004 = vunpack.c.l.b16 %v931
      %v1005 = vunpack.c.h.b16 %v931
      %v1006 = vunpack.c.l.b16 %v932
      %v1007 = vunpack.c.h.b16 %v932
      %v1008 = vunpack.c.l.b16 %v933
      %v1009 = vunpack.c.h.b16 %v933
      %v1010 = vunpack.c.l.b16 %v934
      %v1011 = vunpack.c.h.b16 %v934
      %v1012 = vunpack.c.l.b16 %v935
      %v1013 = vunpack.c.h.b16 %v935
      %v1014 = vunpack.c.l.b16 %v936
      %v1015 = vunpack.c.h.b16 %v936
      %v1016 = vunpack.c.l.b16 %v937
      %v1017 = vunpack.c.h.b16 %v937
      %v1018 = vunpack.c.l.b16 %v938
      %v1019 = vunpack.c.h.b16 %v938
      %v1020 = vunpack.c.l.b16 %v939
      %v1021 = vunpack.c.h.b16 %v939
      %v1022 = vunpack.c.l.b16 %v940
      %v1023 = vunpack.c.h.b16 %v940
      %v1024 = vunpack.c.l.b16 %v941
      %v1025 = vunpack.c.h.b16 %v941
      %v1026 = vunpack.c.l.b16 %v942
      %v1027 = vunpack.c.h.b16 %v942
      %v1028 = vunpack.c.l.b16 %v943
      %v1029 = vunpack.c.h.b16 %v943
      %v1030 = vunpack.c.l.b16 %v944
      %v1031 = vunpack.c.h.b16 %v944
      %v1032 = vunpack.c.l.b16 %v945
      %v1033 = vunpack.c.h.b16 %v945
      %v1034 = vunpack.c.l.b16 %v946
      %v1035 = vunpack.c.h.b16 %v946
      %v1036 = vunpack.c.l.b16 %v947
      %v1037 = vunpack.c.h.b16 %v947
      %v1038 = vunpack.c.l.b16 %v948
      %v1039 = vunpack.c.h.b16 %v948
      %v1040 = vunpack.c.l.b16 %v949
      %v1041 = vunpack.c.h.b16 %v949
      %v1042 = vunpack.c.l.b16 %v950
      %v1043 = vunpack.c.h.b16 %v950
      %v1044 = vunpack.c.l.b16 %v951
      %v1045 = vunpack.c.h.b16 %v951
      %v1046 = vunpack.c.l.b16 %v952
      %v1047 = vunpack.c.h.b16 %v952
      %v1048 = vunpack.c.l.b16 %v953
      %v1049 = vunpack.c.h.b16 %v953
      %v1050 = vpack.c.b16 %v986, %v986
      %v1051 = vpack.c.b16 %v987, %v987
      %v1052 = vpack.c.b16 %v988, %v988
      %v1053 = vpack.c.b16 %v989, %v989
      %v1054 = vpack.c.b16 %v990, %v990
      %v1055 = vpack.c.b16 %v991, %v991
      %v1056 = vpack.c.b16 %v992, %v992
      %v1057 = vpack.c.b16 %v993, %v993
      %v1058 = vpack.c.b16 %v994, %v994
      %v1059 = vpack.c.b16 %v995, %v995
      %v1060 = vpack.c.b16 %v996, %v996
      %v1061 = vpack.c.b16 %v997, %v997
      %v1062 = vpack.c.b16 %v998, %v998
      %v1063 = vpack.c.b16 %v999, %v999
      %v1064 = vpack.c.b16 %v1000, %v1000
      %v1065 = vpack.c.b16 %v1001, %v1001
      %v1066 = vpack.c.b16 %v1002, %v1002
      %v1067 = vpack.c.b16 %v1003, %v1003
      %v1068 = vpack.c.b16 %v1004, %v1004
      %v1069 = vpack.c.b16 %v1005, %v1005
      %v1070 = vpack.c.b16 %v1006, %v1006
      %v1071 = vpack.c.b16 %v1007, %v1007
      %v1072 = vpack.c.b16 %v1008, %v1008
      %v1073 = vpack.c.b16 %v1009, %v1009
      %v1074 = vpack.c.b16 %v1010, %v1010
      %v1075 = vpack.c.b16 %v1011, %v1011
      %v1076 = vpack.c.b16 %v1012, %v1012
      %v1077 = vpack.c.b16 %v1013, %v1013
      %v1078 = vpack.c.b16 %v1014, %v1014
      %v1079 = vpack.c.b16 %v1015, %v1015
      %v1080 = vpack.c.b16 %v1016, %v1016
      %v1081 = vpack.c.b16 %v1017, %v1017
      %v1082 = vpack.c.b16 %v1018, %v1018
      %v1083 = vpack.c.b16 %v1019, %v1019
      %v1084 = vpack.c.b16 %v1020, %v1020
      %v1085 = vpack.c.b16 %v1021, %v1021
      %v1086 = vpack.c.b16 %v1022, %v1022
      %v1087 = vpack.c.b16 %v1023, %v1023
      %v1088 = vpack.c.b16 %v1024, %v1024
      %v1089 = vpack.c.b16 %v1025, %v1025
      %v1090 = vpack.c.b16 %v1026, %v1026
      %v1091 = vpack.c.b16 %v1027, %v1027
      %v1092 = vpack.c.b16 %v1028, %v1028
      %v1093 = vpack.c.b16 %v1029, %v1029
      %v1094 = vpack.c.b16 %v1030, %v1030
      %v1095 = vpack.c.b16 %v1031, %v1031
      %v1096 = vpack.c.b16 %v1032, %v1032
      %v1097 = vpack.c.b16 %v1033, %v1033
      %v1098 = vpack.c.b16 %v1034, %v1034
      %v1099 = vpack.c.b16 %v1035, %v1035
      %v1100 = vpack.c.b16 %v1036, %v1036
      %v1101 = vpack.c.b16 %v1037, %v1037
      %v1102 = vpack.c.b16 %v1038, %v1038
      %v1103 = vpack.c.b16 %v1039, %v1039
      %v1104 = vpack.c.b16 %v1040, %v1040
      %v1105 = vpack.c.b16 %v1041, %v1041
      %v1106 = vpack.c.b16 %v1042, %v1042
      %v1107 = vpack.c.b16 %v1043, %v1043
      %v1108 = vpack.c.b16 %v1044, %v1044
      %v1109 = vpack.c.b16 %v1045, %v1045
      %v1110 = vpack.c.b16 %v1046, %v1046
      %v1111 = vpack.c.b16 %v1047, %v1047
      %v1112 = vpack.c.b16 %v1048, %v1048
      %v1113 = vpack.c.b16 %v1049, %v1049
      %1178 = vst [vmem:[%s199] sm:$0xf] %v1050
      %1179 = vst [vmem:[%s199 + $0x4] sm:$0xf] %v1051
      %1180 = vst [vmem:[%s199 + $0x8] sm:$0xf] %v1052
      %1181 = vst [vmem:[%s199 + $0xc] sm:$0xf] %v1053
      %1182 = vst [vmem:[%s199 + $0x10] sm:$0xf] %v1054
      %1183 = vst [vmem:[%s199 + $0x14] sm:$0xf] %v1055
      %1184 = vst [vmem:[%s199 + $0x18] sm:$0xf] %v1056
      %1185 = vst [vmem:[%s199 + $0x1c] sm:$0xf] %v1057
      %1186 = vst [vmem:[%s199 + $0x20] sm:$0xf] %v1058
      %1187 = vst [vmem:[%s199 + $0x24] sm:$0xf] %v1059
      %1188 = vst [vmem:[%s199 + $0x28] sm:$0xf] %v1060
      %1189 = vst [vmem:[%s199 + $0x2c] sm:$0xf] %v1061
      %1190 = vst [vmem:[%s199 + $0x30] sm:$0xf] %v1062
      %1191 = vst [vmem:[%s199 + $0x34] sm:$0xf] %v1063
      %1192 = vst [vmem:[%s199 + $0x38] sm:$0xf] %v1064
      %1193 = vst [vmem:[%s199 + $0x3c] sm:$0xf] %v1065
      %1194 = vst [vmem:[%s199 + $0x40] sm:$0xf] %v1066
      %1195 = vst [vmem:[%s199 + $0x44] sm:$0xf] %v1067
      %1196 = vst [vmem:[%s199 + $0x48] sm:$0xf] %v1068
      %1197 = vst [vmem:[%s199 + $0x4c] sm:$0xf] %v1069
      %1198 = vst [vmem:[%s199 + $0x50] sm:$0xf] %v1070
      %1199 = vst [vmem:[%s199 + $0x54] sm:$0xf] %v1071
      %1200 = vst [vmem:[%s199 + $0x58] sm:$0xf] %v1072
      %1201 = vst [vmem:[%s199 + $0x5c] sm:$0xf] %v1073
      %1202 = vst [vmem:[%s199 + $0x60] sm:$0xf] %v1074
      %1203 = vst [vmem:[%s199 + $0x64] sm:$0xf] %v1075
      %1204 = vst [vmem:[%s199 + $0x68] sm:$0xf] %v1076
      %1205 = vst [vmem:[%s199 + $0x6c] sm:$0xf] %v1077
      %1206 = vst [vmem:[%s199 + $0x70] sm:$0xf] %v1078
      %1207 = vst [vmem:[%s199 + $0x74] sm:$0xf] %v1079
      %1208 = vst [vmem:[%s199 + $0x78] sm:$0xf] %v1080
      %1209 = vst [vmem:[%s199 + $0x7c] sm:$0xf] %v1081
      %1210 = vst [vmem:[%s199 + $0x80] sm:$0xf] %v1082
      %1211 = vst [vmem:[%s199 + $0x84] sm:$0xf] %v1083
      %1212 = vst [vmem:[%s199 + $0x88] sm:$0xf] %v1084
      %1213 = vst [vmem:[%s199 + $0x8c] sm:$0xf] %v1085
      %1214 = vst [vmem:[%s199 + $0x90] sm:$0xf] %v1086
      %1215 = vst [vmem:[%s199 + $0x94] sm:$0xf] %v1087
      %1216 = vst [vmem:[%s199 + $0x98] sm:$0xf] %v1088
      %1217 = vst [vmem:[%s199 + $0x9c] sm:$0xf] %v1089
      %1218 = vst [vmem:[%s199 + $0xa0] sm:$0xf] %v1090
      %1219 = vst [vmem:[%s199 + $0xa4] sm:$0xf] %v1091
      %1220 = vst [vmem:[%s199 + $0xa8] sm:$0xf] %v1092
      %1221 = vst [vmem:[%s199 + $0xac] sm:$0xf] %v1093
      %1222 = vst [vmem:[%s199 + $0xb0] sm:$0xf] %v1094
      %1223 = vst [vmem:[%s199 + $0xb4] sm:$0xf] %v1095
      %1224 = vst [vmem:[%s199 + $0xb8] sm:$0xf] %v1096
      %1225 = vst [vmem:[%s199 + $0xbc] sm:$0xf] %v1097
      %1226 = vst [vmem:[%s199 + $0xc0] sm:$0xf] %v1098
      %1227 = vst [vmem:[%s199 + $0xc4] sm:$0xf] %v1099
      %1228 = vst [vmem:[%s199 + $0xc8] sm:$0xf] %v1100
      %1229 = vst [vmem:[%s199 + $0xcc] sm:$0xf] %v1101
      %1230 = vst [vmem:[%s199 + $0xd0] sm:$0xf] %v1102
      %1231 = vst [vmem:[%s199 + $0xd4] sm:$0xf] %v1103
      %1232 = vst [vmem:[%s199 + $0xd8] sm:$0xf] %v1104
      %1233 = vst [vmem:[%s199 + $0xdc] sm:$0xf] %v1105
      %1234 = vst [vmem:[%s199 + $0xe0] sm:$0xf] %v1106
      %1235 = vst [vmem:[%s199 + $0xe4] sm:$0xf] %v1107
      %1236 = vst [vmem:[%s199 + $0xe8] sm:$0xf] %v1108
      %1237 = vst [vmem:[%s199 + $0xec] sm:$0xf] %v1109
      %1238 = vst [vmem:[%s199 + $0xf0] sm:$0xf] %v1110
      %1239 = vst [vmem:[%s199 + $0xf4] sm:$0xf] %v1111
      %1240 = vst [vmem:[%s199 + $0xf8] sm:$0xf] %v1112
      %1241 = vst [vmem:[%s199 + $0xfc] sm:$0xf] %v1113
      %s1242 = smul.u32 64, %s15
      %p1243 = scmp.lt.s32.totalorder %s1242, 127
      %s1244 = scalar_select %p1243, %s1242, 127
      %s1245 = smul.addr %s1244, 4
      %s1246 = scalar_lea.vmem %s4, %s1245
      // Predicated region
      $region37: #{dgnn_layer_forward.5} parent=35 // pred_check
        %p1247 = pneg %p122
      $region38: #{dgnn_layer_forward.5} parent=35 // pred_check_branch
        %1249 = sbr.rel (%p1247) target = $region40
      $region39: #{dgnn_layer_forward.5} parent=35 // pred_region
        %s1250 = smul.u32 64, %s15
      $region40: #{dgnn_layer_forward.5} parent=35 // pred_fallthru
        _
    $region36: #{dgnn_layer_forward.5} parent=5 // pred_fallthru
      _
    %p1251 = scmp.le.s32.totalorder 2, %s10
    // Predicated region
    $region41: #{dgnn_layer_forward.5} parent=5 // pred_check
      %p1252 = pneg %p1251
    $region42: #{dgnn_layer_forward.5} parent=5 // pred_check_branch
      %1254 = sbr.rel (%p1252) target = $region44
    $region43: #{dgnn_layer_forward.5} parent=5 // pred_region
      %s1255 = ssub.s32 %s10, 2
      // Predicated region
      $region45: #{dgnn_layer_forward.5} parent=43 // pred_check
        %p1256 = pneg %p128
      $region46: #{dgnn_layer_forward.5} parent=43 // pred_check_branch
        %1258 = sbr.rel (%p1256) target = $region48
      $region47: #{dgnn_layer_forward.5} parent=43 // pred_region
        %s1259 = smul.u32 64, %s16
        %p1260 = scmp.lt.s32.totalorder %s1259, 127
        %s1261 = scalar_select %p1260, %s1259, 127
        %s1262 = smul.addr %s1261, 4
        %s1263 = scalar_lea.vmem %s4, %s1262
      $region48: #{dgnn_layer_forward.5} parent=43 // pred_fallthru
        _
    $region44: #{dgnn_layer_forward.5} parent=5 // pred_fallthru
      _
  $region6: #{dgnn_layer_forward.5} parent=0 // loop_footer
    %s14 = sadd.s32 1, %s10
  $region7: #{dgnn_layer_forward.5} parent=0 // loop_footer_branch
    %9 = sbr.rel target = $region3
  $region8: #{dgnn_layer_forward.5} parent=0 // loop_exit
    _

// kernel: dgnn_layer_forward.4
$region0: #{dgnn_layer_forward.4}
  #allocation0 [shape = 'u32[]', space=smem, size = 0x4, offset = 0x4, fixed_abs, tag = 'smem constant byte address 0x4 - core index']
  #allocation1 [shape = 'u32[144,128]{1,0:T(1,128)}', space=vmem, size = 0x12000, scoped, tag = 'internal scratch']
  %s0 = inlined_call_operand.vmem [shape: bf16[1024,128], index: 0, kind: input, shape index: {}]
  %s1 = inlined_call_operand.vmem [shape: bf16[1024,128], index: 1, kind: input, shape index: {}]
  %s2 = inlined_call_operand.vmem [shape: bf16[128,128], index: 2, kind: input, shape index: {}]
  %s3 = inlined_call_operand.vmem [shape: bf16[128,128], index: 3, kind: input, shape index: {}]
  %s4 = inlined_call_operand.vmem [shape: f32[8,128], index: 4, kind: input, shape index: {}]
  %s5 = inlined_call_operand.vmem [shape: bf16[1024,128], index: 5, kind: output, shape index: {0}]
  %s6 = inlined_call_operand.vmem [shape: f32[16,128], index: 6, kind: output, shape index: {1}]
  %7 = xla_tuple %s5, %s6
  %s8 = sld [smem:[#allocation0]]
  $region61: #{dgnn_layer_forward.4} parent=0
    _
  %s10 = ssub.s32 1, %s8
  %s11 = scalar_select 0, %s10, %s8
  loop: start=0, step=1, limit=4
  $region2: #{dgnn_layer_forward.4} parent=0 // loop_pre_header
    _
  $region3: #{dgnn_layer_forward.4} parent=0 // loop_header
    %s13 = sphi 0, %s17
    %p14 = scmp.ge.s32.totalorder %s13, 4
    %s23 = sphi 0, %s25
    %s26 = sphi 0, %s23
    %s27 = sphi 0, %s26
    %s43 = sphi 0, %s27
    %s49 = sphi 0, %s51
    %s52 = sphi 0, %s49
    %s53 = sphi 0, %s52
    %s69 = sphi 0, %s53
    %s73 = sphi 0, %s73
    %s75 = sphi 0, %s73
    %s76 = sphi 0, %s75
    %s90 = sphi 0, %s76
    %s94 = sphi 0, %s94
    %s96 = sphi 0, %s94
    %s97 = sphi 0, %s96
    %s111 = sphi 0, %s97
    %s115 = sphi 0, %s115
    %s117 = sphi 0, %s115
    %s118 = sphi 0, %s117
    %s132 = sphi 0, %s118
    %s138 = sphi 0, %s140
    %s141 = sphi 0, %s138
    %s142 = sphi 0, %s141
    %s158 = sphi 0, %s142
    %s164 = sphi 0, %s166
    %s167 = sphi 0, %s164
    %s168 = sphi 0, %s167
    %s184 = sphi 0, %s168
  $region4: #{dgnn_layer_forward.4} parent=0 // loop_header_branch
    %16 = sbr.rel (%p14) target = $region8
  $region5: #{dgnn_layer_forward.4} parent=0 // loop_body
    %s18 = ssub.s32 %s13, 1
    %s19 = ssub.s32 %s13, 2
    %s20 = sadd.s32 %s13, 1
    %s21 = ssub.s32 %s13, %s20
    %p22 = scmp.eq.s32.totalorder %s21, 0
    %s24 = sadd.s32 %s23, 1
    %s25 = scalar_select %p22, %s23, %s24
    %p28 = pneg %p22
    %p29 = scmp.eq.s32.totalorder %s13, 1
    %p30 = por %p28, %p29
    %p31 = scmp.ne.s32.totalorder %s23, %s26
    %p32 = scmp.eq.s32.totalorder %s13, 0
    %p33 = por %p31, %p32
    %p34 = scmp.ne.s32.totalorder %s23, %s26
    %p35 = scmp.eq.s32.totalorder %s18, 1
    %p36 = por %p34, %p35
    %p37 = scmp.ne.s32.totalorder %s26, %s27
    %p38 = scmp.eq.s32.totalorder %s18, 0
    %p39 = por %p37, %p38
    %p40 = scmp.ne.s32.totalorder %s26, %s27
    %p41 = scmp.eq.s32.totalorder %s19, 1
    %p42 = por %p40, %p41
    %p44 = scmp.ne.s32.totalorder %s27, %s43
    %p45 = scmp.eq.s32.totalorder %s19, 0
    %p46 = por %p44, %p45
    %s47 = ssub.s32 %s13, %s20
    %p48 = scmp.eq.s32.totalorder %s47, 0
    %s50 = sadd.s32 %s49, 1
    %s51 = scalar_select %p48, %s49, %s50
    %p54 = pneg %p48
    %p55 = scmp.eq.s32.totalorder %s13, 1
    %p56 = por %p54, %p55
    %p57 = scmp.ne.s32.totalorder %s49, %s52
    %p58 = scmp.eq.s32.totalorder %s13, 0
    %p59 = por %p57, %p58
    %p60 = scmp.ne.s32.totalorder %s49, %s52
    %p61 = scmp.eq.s32.totalorder %s18, 1
    %p62 = por %p60, %p61
    %p63 = scmp.ne.s32.totalorder %s52, %s53
    %p64 = scmp.eq.s32.totalorder %s18, 0
    %p65 = por %p63, %p64
    %p66 = scmp.ne.s32.totalorder %s52, %s53
    %p67 = scmp.eq.s32.totalorder %s19, 1
    %p68 = por %p66, %p67
    %p70 = scmp.ne.s32.totalorder %s53, %s69
    %p71 = scmp.eq.s32.totalorder %s19, 0
    %p72 = por %p70, %p71
    %s74 = sadd.s32 %s73, 1
    %p77 = scmp.eq.s32.totalorder %s13, 1
    %p78 = scmp.ne.s32.totalorder %s73, %s75
    %p79 = scmp.eq.s32.totalorder %s13, 0
    %p80 = por %p78, %p79
    %p81 = scmp.ne.s32.totalorder %s73, %s75
    %p82 = scmp.eq.s32.totalorder %s18, 1
    %p83 = por %p81, %p82
    %p84 = scmp.ne.s32.totalorder %s75, %s76
    %p85 = scmp.eq.s32.totalorder %s18, 0
    %p86 = por %p84, %p85
    %p87 = scmp.ne.s32.totalorder %s75, %s76
    %p88 = scmp.eq.s32.totalorder %s19, 1
    %p89 = por %p87, %p88
    %p91 = scmp.ne.s32.totalorder %s76, %s90
    %p92 = scmp.eq.s32.totalorder %s19, 0
    %p93 = por %p91, %p92
    %s95 = sadd.s32 %s94, 1
    %p98 = scmp.eq.s32.totalorder %s13, 1
    %p99 = scmp.ne.s32.totalorder %s94, %s96
    %p100 = scmp.eq.s32.totalorder %s13, 0
    %p101 = por %p99, %p100
    %p102 = scmp.ne.s32.totalorder %s94, %s96
    %p103 = scmp.eq.s32.totalorder %s18, 1
    %p104 = por %p102, %p103
    %p105 = scmp.ne.s32.totalorder %s96, %s97
    %p106 = scmp.eq.s32.totalorder %s18, 0
    %p107 = por %p105, %p106
    %p108 = scmp.ne.s32.totalorder %s96, %s97
    %p109 = scmp.eq.s32.totalorder %s19, 1
    %p110 = por %p108, %p109
    %p112 = scmp.ne.s32.totalorder %s97, %s111
    %p113 = scmp.eq.s32.totalorder %s19, 0
    %p114 = por %p112, %p113
    %s116 = sadd.s32 %s115, 1
    %p119 = scmp.eq.s32.totalorder %s13, 1
    %p120 = scmp.ne.s32.totalorder %s115, %s117
    %p121 = scmp.eq.s32.totalorder %s13, 0
    %p122 = por %p120, %p121
    %p123 = scmp.ne.s32.totalorder %s115, %s117
    %p124 = scmp.eq.s32.totalorder %s18, 1
    %p125 = por %p123, %p124
    %p126 = scmp.ne.s32.totalorder %s117, %s118
    %p127 = scmp.eq.s32.totalorder %s18, 0
    %p128 = por %p126, %p127
    %p129 = scmp.ne.s32.totalorder %s117, %s118
    %p130 = scmp.eq.s32.totalorder %s19, 1
    %p131 = por %p129, %p130
    %p133 = scmp.ne.s32.totalorder %s118, %s132
    %p134 = scmp.eq.s32.totalorder %s19, 0
    %p135 = por %p133, %p134
    %s136 = ssub.s32 %s13, %s20
    %p137 = scmp.eq.s32.totalorder %s136, 0
    %s139 = sadd.s32 %s138, 1
    %s140 = scalar_select %p137, %s138, %s139
    %p143 = pneg %p137
    %p144 = scmp.eq.s32.totalorder %s13, 1
    %p145 = por %p143, %p144
    %p146 = scmp.ne.s32.totalorder %s138, %s141
    %p147 = scmp.eq.s32.totalorder %s13, 0
    %p148 = por %p146, %p147
    %p149 = scmp.ne.s32.totalorder %s138, %s141
    %p150 = scmp.eq.s32.totalorder %s18, 1
    %p151 = por %p149, %p150
    %p152 = scmp.ne.s32.totalorder %s141, %s142
    %p153 = scmp.eq.s32.totalorder %s18, 0
    %p154 = por %p152, %p153
    %p155 = scmp.ne.s32.totalorder %s141, %s142
    %p156 = scmp.eq.s32.totalorder %s19, 1
    %p157 = por %p155, %p156
    %p159 = scmp.ne.s32.totalorder %s142, %s158
    %p160 = scmp.eq.s32.totalorder %s19, 0
    %p161 = por %p159, %p160
    %s162 = ssub.s32 %s13, %s20
    %p163 = scmp.eq.s32.totalorder %s162, 0
    %s165 = sadd.s32 %s164, 1
    %s166 = scalar_select %p163, %s164, %s165
    %p169 = pneg %p163
    %p170 = scmp.eq.s32.totalorder %s13, 1
    %p171 = por %p169, %p170
    %p172 = scmp.ne.s32.totalorder %s164, %s167
    %p173 = scmp.eq.s32.totalorder %s13, 0
    %p174 = por %p172, %p173
    %p175 = scmp.ne.s32.totalorder %s164, %s167
    %p176 = scmp.eq.s32.totalorder %s18, 1
    %p177 = por %p175, %p176
    %p178 = scmp.ne.s32.totalorder %s167, %s168
    %p179 = scmp.eq.s32.totalorder %s18, 0
    %p180 = por %p178, %p179
    %p181 = scmp.ne.s32.totalorder %s167, %s168
    %p182 = scmp.eq.s32.totalorder %s19, 1
    %p183 = por %p181, %p182
    %p185 = scmp.ne.s32.totalorder %s168, %s184
    %p186 = scmp.eq.s32.totalorder %s19, 0
    %p187 = por %p185, %p186
    %p188 = scmp.le.s32.totalorder 1, %s13
    %p189 = scmp.lt.s32.totalorder %s13, 3
    %p190 = pnand %p188, %p189
    %p191 = pneg %p190
    // Predicated region
    $region9: #{dgnn_layer_forward.4} parent=5 // pred_check
      _
    $region10: #{dgnn_layer_forward.4} parent=5 // pred_check_branch
      %193 = sbr.rel (%p190) target = $region12
    $region11: #{dgnn_layer_forward.4} parent=5 // pred_region
      %s194 = ssub.s32 %s13, 1
      // Predicated region
      $region13: #{dgnn_layer_forward.4} parent=11 // pred_check
        %p195 = pneg %p86
      $region14: #{dgnn_layer_forward.4} parent=11 // pred_check_branch
        %197 = sbr.rel (%p195) target = $region16
      $region15: #{dgnn_layer_forward.4} parent=11 // pred_region
        _
      $region16: #{dgnn_layer_forward.4} parent=11 // pred_fallthru
        _
      // Predicated region
      $region17: #{dgnn_layer_forward.4} parent=11 // pred_check
        %p198 = pneg %p107
      $region18: #{dgnn_layer_forward.4} parent=11 // pred_check_branch
        %200 = sbr.rel (%p198) target = $region20
      $region19: #{dgnn_layer_forward.4} parent=11 // pred_region
        _
      $region20: #{dgnn_layer_forward.4} parent=11 // pred_fallthru
        _
      // Predicated region
      $region21: #{dgnn_layer_forward.4} parent=11 // pred_check
        %p201 = pneg %p128
      $region22: #{dgnn_layer_forward.4} parent=11 // pred_check_branch
        %203 = sbr.rel (%p201) target = $region24
      $region23: #{dgnn_layer_forward.4} parent=11 // pred_region
        _
      $region24: #{dgnn_layer_forward.4} parent=11 // pred_fallthru
        _
    $region12: #{dgnn_layer_forward.4} parent=5 // pred_fallthru
      _
    %p204 = scmp.lt.s32.totalorder %s13, 2
    // Predicated region
    $region25: #{dgnn_layer_forward.4} parent=5 // pred_check
      %p205 = pneg %p204
    $region26: #{dgnn_layer_forward.4} parent=5 // pred_check_branch
      %207 = sbr.rel (%p205) target = $region28
    $region27: #{dgnn_layer_forward.4} parent=5 // pred_region
      // Predicated region
      $region29: #{dgnn_layer_forward.4} parent=27 // pred_check
        %p208 = pneg %p33
      $region30: #{dgnn_layer_forward.4} parent=27 // pred_check_branch
        %210 = sbr.rel (%p208) target = $region32
      $region31: #{dgnn_layer_forward.4} parent=27 // pred_region
        %s211 = smul.u32 64, %s13
        %p212 = scmp.lt.s32.totalorder %s211, 127
        %s213 = scalar_select %p212, %s211, 127
        %s214 = smul.addr %s213, 4
        %s215 = scalar_lea.vmem %s0, %s214
        %s216 = smul.u32 64, %s13
      $region32: #{dgnn_layer_forward.4} parent=27 // pred_fallthru
        _
      // Predicated region
      $region33: #{dgnn_layer_forward.4} parent=27 // pred_check
        %p217 = pneg %p59
      $region34: #{dgnn_layer_forward.4} parent=27 // pred_check_branch
        %219 = sbr.rel (%p217) target = $region36
      $region35: #{dgnn_layer_forward.4} parent=27 // pred_region
        %s220 = smul.u32 64, %s13
        %p221 = scmp.lt.s32.totalorder %s220, 127
        %s222 = scalar_select %p221, %s220, 127
        %s223 = smul.addr %s222, 4
        %s224 = scalar_lea.vmem %s1, %s223
        %s225 = smul.u32 64, %s13
      $region36: #{dgnn_layer_forward.4} parent=27 // pred_fallthru
        _
    $region28: #{dgnn_layer_forward.4} parent=5 // pred_fallthru
      _
    %p226 = scmp.le.s32.totalorder 1, %s13
    %p227 = scmp.lt.s32.totalorder %s13, 3
    %p228 = pnand %p226, %p227
    %p229 = pneg %p228
    // Predicated region
    $region37: #{dgnn_layer_forward.4} parent=5 // pred_check
      _
    $region38: #{dgnn_layer_forward.4} parent=5 // pred_check_branch
      %231 = sbr.rel (%p228) target = $region40
    $region39: #{dgnn_layer_forward.4} parent=5 // pred_region
      %s232 = ssub.s32 %s13, 1
      %s233 = smul.u32 64, %s18
      %p234 = scmp.lt.s32.totalorder %s233, 127
      %s235 = scalar_select %p234, %s233, 127
      %s236 = smul.addr %s235, 4
      %s237 = scalar_lea.vmem %s0, %s236
      %p238 = pneg %p39
      %p239 = pneg %p36
      %s240 = smul.u32 64, %s18
      %p241 = scmp.lt.s32.totalorder %s240, 127
      %s242 = scalar_select %p241, %s240, 127
      %s243 = smul.addr %s242, 4
      %s244 = scalar_lea.vmem %s1, %s243
      %p245 = pneg %p65
      %p246 = pneg %p62
      %p247 = pneg %p86
      %p248 = pneg %p83
      %p249 = pneg %p107
      %p250 = pneg %p104
      %p251 = pneg %p128
      %p252 = pneg %p125
      %p253 = pneg %p154
      %p254 = pneg %p151
      %s255 = smul.u32 64, %s18
      %p256 = scmp.lt.s32.totalorder %s255, 127
      %s257 = scalar_select %p256, %s255, 127
      %s258 = smul.addr %s257, 4
      %s259 = scalar_lea.vmem %s5, %s258
      %p260 = pneg %p180
      %p261 = pneg %p177
      %p262 = scmp.lt.s32.totalorder %s18, 1
      %s263 = scalar_select %p262, %s18, 1
      %s264 = smul.addr %s263, 8
      %s265 = scalar_lea.vmem %s6, %s264
      %s266 = smul.u32 64, %s18
      %p267 = scmp.lt.s32.totalorder %s266, 127
      %s268 = scalar_select %p267, %s266, 127
      %s269 = smul.addr %s268, 4
      %s270 = scalar_lea.vmem %s0, %s269
      %s271 = smul.u32 64, %s18
      %s272 = smul.u32 64, %s18
      %p273 = scmp.lt.s32.totalorder %s272, 127
      %s274 = scalar_select %p273, %s272, 127
      %s275 = smul.addr %s274, 4
      %s276 = scalar_lea.vmem %s1, %s275
      %s277 = smul.u32 64, %s18
      %s278 = smul.u32 64, %s18
      %p279 = scmp.lt.s32.totalorder %s278, 127
      %s280 = scalar_select %p279, %s278, 127
      %s281 = smul.addr %s280, 4
      %s282 = scalar_lea.vmem %s5, %s281
      %s283 = smul.u32 64, %s18
      %p284 = scmp.lt.s32.totalorder %s18, 1
      %s285 = scalar_select %p284, %s18, 1
      %s286 = smul.addr %s285, 8
      %s287 = scalar_lea.vmem %s6, %s286
      %v289 = vld [vmem:[%s270] sm:$0xf]
      %v290 = vld [vmem:[%s270 + $0x4] sm:$0xf]
      %v291 = vld [vmem:[%s270 + $0x8] sm:$0xf]
      %v292 = vld [vmem:[%s270 + $0xc] sm:$0xf]
      %v293 = vld [vmem:[%s270 + $0x10] sm:$0xf]
      %v294 = vld [vmem:[%s270 + $0x14] sm:$0xf]
      %v295 = vld [vmem:[%s270 + $0x18] sm:$0xf]
      %v296 = vld [vmem:[%s270 + $0x1c] sm:$0xf]
      %v297 = vld [vmem:[%s270 + $0x20] sm:$0xf]
      %v298 = vld [vmem:[%s270 + $0x24] sm:$0xf]
      %v299 = vld [vmem:[%s270 + $0x28] sm:$0xf]
      %v300 = vld [vmem:[%s270 + $0x2c] sm:$0xf]
      %v301 = vld [vmem:[%s270 + $0x30] sm:$0xf]
      %v302 = vld [vmem:[%s270 + $0x34] sm:$0xf]
      %v303 = vld [vmem:[%s270 + $0x38] sm:$0xf]
      %v304 = vld [vmem:[%s270 + $0x3c] sm:$0xf]
      %v305 = vld [vmem:[%s270 + $0x40] sm:$0xf]
      %v306 = vld [vmem:[%s270 + $0x44] sm:$0xf]
      %v307 = vld [vmem:[%s270 + $0x48] sm:$0xf]
      %v308 = vld [vmem:[%s270 + $0x4c] sm:$0xf]
      %v309 = vld [vmem:[%s270 + $0x50] sm:$0xf]
      %v310 = vld [vmem:[%s270 + $0x54] sm:$0xf]
      %v311 = vld [vmem:[%s270 + $0x58] sm:$0xf]
      %v312 = vld [vmem:[%s270 + $0x5c] sm:$0xf]
      %v313 = vld [vmem:[%s270 + $0x60] sm:$0xf]
      %v314 = vld [vmem:[%s270 + $0x64] sm:$0xf]
      %v315 = vld [vmem:[%s270 + $0x68] sm:$0xf]
      %v316 = vld [vmem:[%s270 + $0x6c] sm:$0xf]
      %v317 = vld [vmem:[%s270 + $0x70] sm:$0xf]
      %v318 = vld [vmem:[%s270 + $0x74] sm:$0xf]
      %v319 = vld [vmem:[%s270 + $0x78] sm:$0xf]
      %v320 = vld [vmem:[%s270 + $0x7c] sm:$0xf]
      %v321 = vld [vmem:[%s270 + $0x80] sm:$0xf]
      %v322 = vld [vmem:[%s270 + $0x84] sm:$0xf]
      %v323 = vld [vmem:[%s270 + $0x88] sm:$0xf]
      %v324 = vld [vmem:[%s270 + $0x8c] sm:$0xf]
      %v325 = vld [vmem:[%s270 + $0x90] sm:$0xf]
      %v326 = vld [vmem:[%s270 + $0x94] sm:$0xf]
      %v327 = vld [vmem:[%s270 + $0x98] sm:$0xf]
      %v328 = vld [vmem:[%s270 + $0x9c] sm:$0xf]
      %v329 = vld [vmem:[%s270 + $0xa0] sm:$0xf]
      %v330 = vld [vmem:[%s270 + $0xa4] sm:$0xf]
      %v331 = vld [vmem:[%s270 + $0xa8] sm:$0xf]
      %v332 = vld [vmem:[%s270 + $0xac] sm:$0xf]
      %v333 = vld [vmem:[%s270 + $0xb0] sm:$0xf]
      %v334 = vld [vmem:[%s270 + $0xb4] sm:$0xf]
      %v335 = vld [vmem:[%s270 + $0xb8] sm:$0xf]
      %v336 = vld [vmem:[%s270 + $0xbc] sm:$0xf]
      %v337 = vld [vmem:[%s270 + $0xc0] sm:$0xf]
      %v338 = vld [vmem:[%s270 + $0xc4] sm:$0xf]
      %v339 = vld [vmem:[%s270 + $0xc8] sm:$0xf]
      %v340 = vld [vmem:[%s270 + $0xcc] sm:$0xf]
      %v341 = vld [vmem:[%s270 + $0xd0] sm:$0xf]
      %v342 = vld [vmem:[%s270 + $0xd4] sm:$0xf]
      %v343 = vld [vmem:[%s270 + $0xd8] sm:$0xf]
      %v344 = vld [vmem:[%s270 + $0xdc] sm:$0xf]
      %v345 = vld [vmem:[%s270 + $0xe0] sm:$0xf]
      %v346 = vld [vmem:[%s270 + $0xe4] sm:$0xf]
      %v347 = vld [vmem:[%s270 + $0xe8] sm:$0xf]
      %v348 = vld [vmem:[%s270 + $0xec] sm:$0xf]
      %v349 = vld [vmem:[%s270 + $0xf0] sm:$0xf]
      %v350 = vld [vmem:[%s270 + $0xf4] sm:$0xf]
      %v351 = vld [vmem:[%s270 + $0xf8] sm:$0xf]
      %v352 = vld [vmem:[%s270 + $0xfc] sm:$0xf]
      %v353 = vld [vmem:[%s2] sm:$0xf]
      %v354 = vld [vmem:[%s2 + $0x4] sm:$0xf]
      %v355 = vld [vmem:[%s2 + $0x8] sm:$0xf]
      %v356 = vld [vmem:[%s2 + $0xc] sm:$0xf]
      %v357 = vld [vmem:[%s2 + $0x10] sm:$0xf]
      %v358 = vld [vmem:[%s2 + $0x14] sm:$0xf]
      %v359 = vld [vmem:[%s2 + $0x18] sm:$0xf]
      %v360 = vld [vmem:[%s2 + $0x1c] sm:$0xf]
      %v361 = vld [vmem:[%s2 + $0x20] sm:$0xf]
      %v362 = vld [vmem:[%s2 + $0x24] sm:$0xf]
      %v363 = vld [vmem:[%s2 + $0x28] sm:$0xf]
      %v364 = vld [vmem:[%s2 + $0x2c] sm:$0xf]
      %v365 = vld [vmem:[%s2 + $0x30] sm:$0xf]
      %v366 = vld [vmem:[%s2 + $0x34] sm:$0xf]
      %v367 = vld [vmem:[%s2 + $0x38] sm:$0xf]
      %v368 = vld [vmem:[%s2 + $0x3c] sm:$0xf]
      %v369 = vld [vmem:[%s276] sm:$0xf]
      %v370 = vld [vmem:[%s276 + $0x4] sm:$0xf]
      %v371 = vld [vmem:[%s276 + $0x8] sm:$0xf]
      %v372 = vld [vmem:[%s276 + $0xc] sm:$0xf]
      %v373 = vld [vmem:[%s276 + $0x10] sm:$0xf]
      %v374 = vld [vmem:[%s276 + $0x14] sm:$0xf]
      %v375 = vld [vmem:[%s276 + $0x18] sm:$0xf]
      %v376 = vld [vmem:[%s276 + $0x1c] sm:$0xf]
      %v377 = vld [vmem:[%s276 + $0x20] sm:$0xf]
      %v378 = vld [vmem:[%s276 + $0x24] sm:$0xf]
      %v379 = vld [vmem:[%s276 + $0x28] sm:$0xf]
      %v380 = vld [vmem:[%s276 + $0x2c] sm:$0xf]
      %v381 = vld [vmem:[%s276 + $0x30] sm:$0xf]
      %v382 = vld [vmem:[%s276 + $0x34] sm:$0xf]
      %v383 = vld [vmem:[%s276 + $0x38] sm:$0xf]
      %v384 = vld [vmem:[%s276 + $0x3c] sm:$0xf]
      %v385 = vld [vmem:[%s276 + $0x40] sm:$0xf]
      %v386 = vld [vmem:[%s276 + $0x44] sm:$0xf]
      %v387 = vld [vmem:[%s276 + $0x48] sm:$0xf]
      %v388 = vld [vmem:[%s276 + $0x4c] sm:$0xf]
      %v389 = vld [vmem:[%s276 + $0x50] sm:$0xf]
      %v390 = vld [vmem:[%s276 + $0x54] sm:$0xf]
      %v391 = vld [vmem:[%s276 + $0x58] sm:$0xf]
      %v392 = vld [vmem:[%s276 + $0x5c] sm:$0xf]
      %v393 = vld [vmem:[%s276 + $0x60] sm:$0xf]
      %v394 = vld [vmem:[%s276 + $0x64] sm:$0xf]
      %v395 = vld [vmem:[%s276 + $0x68] sm:$0xf]
      %v396 = vld [vmem:[%s276 + $0x6c] sm:$0xf]
      %v397 = vld [vmem:[%s276 + $0x70] sm:$0xf]
      %v398 = vld [vmem:[%s276 + $0x74] sm:$0xf]
      %v399 = vld [vmem:[%s276 + $0x78] sm:$0xf]
      %v400 = vld [vmem:[%s276 + $0x7c] sm:$0xf]
      %v401 = vld [vmem:[%s276 + $0x80] sm:$0xf]
      %v402 = vld [vmem:[%s276 + $0x84] sm:$0xf]
      %v403 = vld [vmem:[%s276 + $0x88] sm:$0xf]
      %v404 = vld [vmem:[%s276 + $0x8c] sm:$0xf]
      %v405 = vld [vmem:[%s276 + $0x90] sm:$0xf]
      %v406 = vld [vmem:[%s276 + $0x94] sm:$0xf]
      %v407 = vld [vmem:[%s276 + $0x98] sm:$0xf]
      %v408 = vld [vmem:[%s276 + $0x9c] sm:$0xf]
      %v409 = vld [vmem:[%s276 + $0xa0] sm:$0xf]
      %v410 = vld [vmem:[%s276 + $0xa4] sm:$0xf]
      %v411 = vld [vmem:[%s276 + $0xa8] sm:$0xf]
      %v412 = vld [vmem:[%s276 + $0xac] sm:$0xf]
      %v413 = vld [vmem:[%s276 + $0xb0] sm:$0xf]
      %v414 = vld [vmem:[%s276 + $0xb4] sm:$0xf]
      %v415 = vld [vmem:[%s276 + $0xb8] sm:$0xf]
      %v416 = vld [vmem:[%s276 + $0xbc] sm:$0xf]
      %v417 = vld [vmem:[%s276 + $0xc0] sm:$0xf]
      %v418 = vld [vmem:[%s276 + $0xc4] sm:$0xf]
      %v419 = vld [vmem:[%s276 + $0xc8] sm:$0xf]
      %v420 = vld [vmem:[%s276 + $0xcc] sm:$0xf]
      %v421 = vld [vmem:[%s276 + $0xd0] sm:$0xf]
      %v422 = vld [vmem:[%s276 + $0xd4] sm:$0xf]
      %v423 = vld [vmem:[%s276 + $0xd8] sm:$0xf]
      %v424 = vld [vmem:[%s276 + $0xdc] sm:$0xf]
      %v425 = vld [vmem:[%s276 + $0xe0] sm:$0xf]
      %v426 = vld [vmem:[%s276 + $0xe4] sm:$0xf]
      %v427 = vld [vmem:[%s276 + $0xe8] sm:$0xf]
      %v428 = vld [vmem:[%s276 + $0xec] sm:$0xf]
      %v429 = vld [vmem:[%s276 + $0xf0] sm:$0xf]
      %v430 = vld [vmem:[%s276 + $0xf4] sm:$0xf]
      %v431 = vld [vmem:[%s276 + $0xf8] sm:$0xf]
      %v432 = vld [vmem:[%s276 + $0xfc] sm:$0xf]
      %v433 = vld [vmem:[%s3] sm:$0xf]
      %v434 = vld [vmem:[%s3 + $0x4] sm:$0xf]
      %v435 = vld [vmem:[%s3 + $0x8] sm:$0xf]
      %v436 = vld [vmem:[%s3 + $0xc] sm:$0xf]
      %v437 = vld [vmem:[%s3 + $0x10] sm:$0xf]
      %v438 = vld [vmem:[%s3 + $0x14] sm:$0xf]
      %v439 = vld [vmem:[%s3 + $0x18] sm:$0xf]
      %v440 = vld [vmem:[%s3 + $0x1c] sm:$0xf]
      %v441 = vld [vmem:[%s3 + $0x20] sm:$0xf]
      %v442 = vld [vmem:[%s3 + $0x24] sm:$0xf]
      %v443 = vld [vmem:[%s3 + $0x28] sm:$0xf]
      %v444 = vld [vmem:[%s3 + $0x2c] sm:$0xf]
      %v445 = vld [vmem:[%s3 + $0x30] sm:$0xf]
      %v446 = vld [vmem:[%s3 + $0x34] sm:$0xf]
      %v447 = vld [vmem:[%s3 + $0x38] sm:$0xf]
      %v448 = vld [vmem:[%s3 + $0x3c] sm:$0xf]
      %v513 = vunpack.c.l.b16 %v369
      %v514 = vunpack.c.l.b16 %v370
      %v515 = vunpack.c.l.b16 %v371
      %v516 = vunpack.c.l.b16 %v372
      %v517 = vunpack.c.l.b16 %v373
      %v518 = vunpack.c.l.b16 %v374
      %v519 = vunpack.c.l.b16 %v375
      %v520 = vunpack.c.l.b16 %v376
      %v521 = vunpack.c.l.b16 %v377
      %v522 = vunpack.c.l.b16 %v378
      %v523 = vunpack.c.l.b16 %v379
      %v524 = vunpack.c.l.b16 %v380
      %v525 = vunpack.c.l.b16 %v381
      %v526 = vunpack.c.l.b16 %v382
      %v527 = vunpack.c.l.b16 %v383
      %v528 = vunpack.c.l.b16 %v384
      %v529 = vunpack.c.l.b16 %v385
      %v530 = vunpack.c.l.b16 %v386
      %v531 = vunpack.c.l.b16 %v387
      %v532 = vunpack.c.l.b16 %v388
      %v533 = vunpack.c.l.b16 %v389
      %v534 = vunpack.c.l.b16 %v390
      %v535 = vunpack.c.l.b16 %v391
      %v536 = vunpack.c.l.b16 %v392
      %v537 = vunpack.c.l.b16 %v393
      %v538 = vunpack.c.l.b16 %v394
      %v539 = vunpack.c.l.b16 %v395
      %v540 = vunpack.c.l.b16 %v396
      %v541 = vunpack.c.l.b16 %v397
      %v542 = vunpack.c.l.b16 %v398
      %v543 = vunpack.c.l.b16 %v399
      %v544 = vunpack.c.l.b16 %v400
      %v545 = vunpack.c.l.b16 %v401
      %v546 = vunpack.c.l.b16 %v402
      %v547 = vunpack.c.l.b16 %v403
      %v548 = vunpack.c.l.b16 %v404
      %v549 = vunpack.c.l.b16 %v405
      %v550 = vunpack.c.l.b16 %v406
      %v551 = vunpack.c.l.b16 %v407
      %v552 = vunpack.c.l.b16 %v408
      %v553 = vunpack.c.l.b16 %v409
      %v554 = vunpack.c.l.b16 %v410
      %v555 = vunpack.c.l.b16 %v411
      %v556 = vunpack.c.l.b16 %v412
      %v557 = vunpack.c.l.b16 %v413
      %v558 = vunpack.c.l.b16 %v414
      %v559 = vunpack.c.l.b16 %v415
      %v560 = vunpack.c.l.b16 %v416
      %v561 = vunpack.c.l.b16 %v417
      %v562 = vunpack.c.l.b16 %v418
      %v563 = vunpack.c.l.b16 %v419
      %v564 = vunpack.c.l.b16 %v420
      %v565 = vunpack.c.l.b16 %v421
      %v566 = vunpack.c.l.b16 %v422
      %v567 = vunpack.c.l.b16 %v423
      %v568 = vunpack.c.l.b16 %v424
      %v569 = vunpack.c.l.b16 %v425
      %v570 = vunpack.c.l.b16 %v426
      %v571 = vunpack.c.l.b16 %v427
      %v572 = vunpack.c.l.b16 %v428
      %v573 = vunpack.c.l.b16 %v429
      %v574 = vunpack.c.l.b16 %v430
      %v575 = vunpack.c.l.b16 %v431
      %v576 = vunpack.c.l.b16 %v432
      %v577 = vpack.c.b16 %v514, %v513
      %v578 = vpack.c.b16 %v516, %v515
      %v579 = vpack.c.b16 %v518, %v517
      %v580 = vpack.c.b16 %v520, %v519
      %v581 = vpack.c.b16 %v522, %v521
      %v582 = vpack.c.b16 %v524, %v523
      %v583 = vpack.c.b16 %v526, %v525
      %v584 = vpack.c.b16 %v528, %v527
      %v585 = vpack.c.b16 %v530, %v529
      %v586 = vpack.c.b16 %v532, %v531
      %v587 = vpack.c.b16 %v534, %v533
      %v588 = vpack.c.b16 %v536, %v535
      %v589 = vpack.c.b16 %v538, %v537
      %v590 = vpack.c.b16 %v540, %v539
      %v591 = vpack.c.b16 %v542, %v541
      %v592 = vpack.c.b16 %v544, %v543
      %v593 = vpack.c.b16 %v546, %v545
      %v594 = vpack.c.b16 %v548, %v547
      %v595 = vpack.c.b16 %v550, %v549
      %v596 = vpack.c.b16 %v552, %v551
      %v597 = vpack.c.b16 %v554, %v553
      %v598 = vpack.c.b16 %v556, %v555
      %v599 = vpack.c.b16 %v558, %v557
      %v600 = vpack.c.b16 %v560, %v559
      %v601 = vpack.c.b16 %v562, %v561
      %v602 = vpack.c.b16 %v564, %v563
      %v603 = vpack.c.b16 %v566, %v565
      %v604 = vpack.c.b16 %v568, %v567
      %v605 = vpack.c.b16 %v570, %v569
      %v606 = vpack.c.b16 %v572, %v571
      %v607 = vpack.c.b16 %v574, %v573
      %v608 = vpack.c.b16 %v576, %v575
      %v657 = vunpack.c.l.b16 %v433
      %v658 = vunpack.c.l.b16 %v434
      %v659 = vunpack.c.l.b16 %v435
      %v660 = vunpack.c.l.b16 %v436
      %v661 = vunpack.c.l.b16 %v437
      %v662 = vunpack.c.l.b16 %v438
      %v663 = vunpack.c.l.b16 %v439
      %v664 = vunpack.c.l.b16 %v440
      %v665 = vunpack.c.l.b16 %v441
      %v666 = vunpack.c.l.b16 %v442
      %v667 = vunpack.c.l.b16 %v443
      %v668 = vunpack.c.l.b16 %v444
      %v669 = vunpack.c.l.b16 %v445
      %v670 = vunpack.c.l.b16 %v446
      %v671 = vunpack.c.l.b16 %v447
      %v672 = vunpack.c.l.b16 %v448
      %v673 = vpack.c.b16 %v658, %v657
      %v674 = vpack.c.b16 %v660, %v659
      %v675 = vpack.c.b16 %v662, %v661
      %v676 = vpack.c.b16 %v664, %v663
      %v677 = vpack.c.b16 %v666, %v665
      %v678 = vpack.c.b16 %v668, %v667
      %v679 = vpack.c.b16 %v670, %v669
      %v680 = vpack.c.b16 %v672, %v671
      %689 = vmatprep.subr.bf16.mxu0 0
      %690 = vmatpush1.bf16.msra.mxu0 %v680
      %691 = vmatprep.subr.bf16.mxu0 0
      %692 = vmatpush1.bf16.msra.mxu0 %v679
      %693 = vmatprep.subr.bf16.mxu0 0
      %694 = vmatpush1.bf16.msra.mxu0 %v678
      %695 = vmatprep.subr.bf16.mxu0 0
      %696 = vmatpush1.bf16.msra.mxu0 %v677
      %697 = vmatprep.subr.bf16.mxu0 0
      %698 = vmatpush1.bf16.msra.mxu0 %v676
      %699 = vmatprep.subr.bf16.mxu0 0
      %700 = vmatpush1.bf16.msra.mxu0 %v675
      %701 = vmatprep.subr.bf16.mxu0 0
      %702 = vmatpush1.bf16.msra.mxu0 %v674
      %703 = vmatprep.subr.bf16.mxu0 0
      %704 = vmatpush1.bf16.msra.mxu0 %v673
      %705 = vmatprep.subr.bf16.mxu0 0
      %706 = vmatpush2.bf16.msra.mxu0 0
      %707 = vmatprep.subr.bf16.mxu0 0
      %708 = vmatpush2.bf16.msra.mxu0 0
      %709 = vmatprep.subr.bf16.mxu0 0
      %710 = vmatpush2.bf16.msra.mxu0 0
      %711 = vmatprep.subr.bf16.mxu0 0
      %712 = vmatpush2.bf16.msra.mxu0 0
      %713 = vmatprep.subr.bf16.mxu0 0
      %714 = vmatpush2.bf16.msra.mxu0 0
      %715 = vmatprep.subr.bf16.mxu0 0
      %716 = vmatpush2.bf16.msra.mxu0 0
      %717 = vmatprep.subr.bf16.mxu0 0
      %718 = vmatpush2.bf16.msra.mxu0 0
      %719 = vmatprep.subr.bf16.mxu0 0
      %720 = vmatpush2.bf16.msra.mxu0 0
      %721 = vmatprep.mubr.bf16.mxu0 0
      %722 = vmatmul.mubr.bf16.gmra.mxu0 %v577
      %v723 = vpop.f32.mrf.mxu0
      %v724 = vadd.f32 0.0, %v723
      %v725 = vpop.f32.mrf.mxu0
      %v726 = vpop.f32.mrf.mxu0
      %v727 = vadd.f32 0.0, %v726
      %v728 = vpop.f32.mrf.mxu0
      %729 = vmatprep.mubr.bf16.mxu0 0
      %730 = vmatmul.mubr.bf16.gmra.mxu0 %v578
      %v731 = vpop.f32.mrf.mxu0
      %v732 = vadd.f32 0.0, %v731
      %v733 = vpop.f32.mrf.mxu0
      %v734 = vpop.f32.mrf.mxu0
      %v735 = vadd.f32 0.0, %v734
      %v736 = vpop.f32.mrf.mxu0
      %737 = vmatprep.mubr.bf16.mxu0 0
      %738 = vmatmul.mubr.bf16.gmra.mxu0 %v579
      %v739 = vpop.f32.mrf.mxu0
      %v740 = vadd.f32 0.0, %v739
      %v741 = vpop.f32.mrf.mxu0
      %v742 = vpop.f32.mrf.mxu0
      %v743 = vadd.f32 0.0, %v742
      %v744 = vpop.f32.mrf.mxu0
      %745 = vmatprep.mubr.bf16.mxu0 0
      %746 = vmatmul.mubr.bf16.gmra.mxu0 %v580
      %v747 = vpop.f32.mrf.mxu0
      %v748 = vadd.f32 0.0, %v747
      %v749 = vpop.f32.mrf.mxu0
      %v750 = vpop.f32.mrf.mxu0
      %v751 = vadd.f32 0.0, %v750
      %v752 = vpop.f32.mrf.mxu0
      %753 = vmatprep.mubr.bf16.mxu0 0
      %754 = vmatmul.mubr.bf16.gmra.mxu0 %v581
      %v755 = vpop.f32.mrf.mxu0
      %v756 = vadd.f32 0.0, %v755
      %v757 = vpop.f32.mrf.mxu0
      %v758 = vpop.f32.mrf.mxu0
      %v759 = vadd.f32 0.0, %v758
      %v760 = vpop.f32.mrf.mxu0
      %761 = vmatprep.mubr.bf16.mxu0 0
      %762 = vmatmul.mubr.bf16.gmra.mxu0 %v582
      %v763 = vpop.f32.mrf.mxu0
      %v764 = vadd.f32 0.0, %v763
      %v765 = vpop.f32.mrf.mxu0
      %v766 = vpop.f32.mrf.mxu0
      %v767 = vadd.f32 0.0, %v766
      %v768 = vpop.f32.mrf.mxu0
      %769 = vmatprep.mubr.bf16.mxu0 0
      %770 = vmatmul.mubr.bf16.gmra.mxu0 %v583
      %v771 = vpop.f32.mrf.mxu0
      %v772 = vadd.f32 0.0, %v771
      %v773 = vpop.f32.mrf.mxu0
      %v774 = vpop.f32.mrf.mxu0
      %v775 = vadd.f32 0.0, %v774
      %v776 = vpop.f32.mrf.mxu0
      %777 = vmatprep.mubr.bf16.mxu0 0
      %778 = vmatmul.mubr.bf16.gmra.mxu0 %v584
      %v779 = vpop.f32.mrf.mxu0
      %v780 = vadd.f32 0.0, %v779
      %v781 = vpop.f32.mrf.mxu0
      %v782 = vpop.f32.mrf.mxu0
      %v783 = vadd.f32 0.0, %v782
      %v784 = vpop.f32.mrf.mxu0
      %785 = vmatprep.mubr.bf16.mxu0 0
      %786 = vmatmul.mubr.bf16.gmra.mxu0 %v585
      %v787 = vpop.f32.mrf.mxu0
      %v788 = vadd.f32 0.0, %v787
      %v789 = vpop.f32.mrf.mxu0
      %v790 = vpop.f32.mrf.mxu0
      %v791 = vadd.f32 0.0, %v790
      %v792 = vpop.f32.mrf.mxu0
      %793 = vmatprep.mubr.bf16.mxu0 0
      %794 = vmatmul.mubr.bf16.gmra.mxu0 %v586
      %v795 = vpop.f32.mrf.mxu0
      %v796 = vadd.f32 0.0, %v795
      %v797 = vpop.f32.mrf.mxu0
      %v798 = vpop.f32.mrf.mxu0
      %v799 = vadd.f32 0.0, %v798
      %v800 = vpop.f32.mrf.mxu0
      %801 = vmatprep.mubr.bf16.mxu0 0
      %802 = vmatmul.mubr.bf16.gmra.mxu0 %v587
      %v803 = vpop.f32.mrf.mxu0
      %v804 = vadd.f32 0.0, %v803
      %v805 = vpop.f32.mrf.mxu0
      %v806 = vpop.f32.mrf.mxu0
      %v807 = vadd.f32 0.0, %v806
      %v808 = vpop.f32.mrf.mxu0
      %809 = vmatprep.mubr.bf16.mxu0 0
      %810 = vmatmul.mubr.bf16.gmra.mxu0 %v588
      %v811 = vpop.f32.mrf.mxu0
      %v812 = vadd.f32 0.0, %v811
      %v813 = vpop.f32.mrf.mxu0
      %v814 = vpop.f32.mrf.mxu0
      %v815 = vadd.f32 0.0, %v814
      %v816 = vpop.f32.mrf.mxu0
      %817 = vmatprep.mubr.bf16.mxu0 0
      %818 = vmatmul.mubr.bf16.gmra.mxu0 %v589
      %v819 = vpop.f32.mrf.mxu0
      %v820 = vadd.f32 0.0, %v819
      %v821 = vpop.f32.mrf.mxu0
      %v822 = vpop.f32.mrf.mxu0
      %v823 = vadd.f32 0.0, %v822
      %v824 = vpop.f32.mrf.mxu0
      %825 = vmatprep.mubr.bf16.mxu0 0
      %826 = vmatmul.mubr.bf16.gmra.mxu0 %v590
      %v827 = vpop.f32.mrf.mxu0
      %v828 = vadd.f32 0.0, %v827
      %v829 = vpop.f32.mrf.mxu0
      %v830 = vpop.f32.mrf.mxu0
      %v831 = vadd.f32 0.0, %v830
      %v832 = vpop.f32.mrf.mxu0
      %833 = vmatprep.mubr.bf16.mxu0 0
      %834 = vmatmul.mubr.bf16.gmra.mxu0 %v591
      %v835 = vpop.f32.mrf.mxu0
      %v836 = vadd.f32 0.0, %v835
      %v837 = vpop.f32.mrf.mxu0
      %v838 = vpop.f32.mrf.mxu0
      %v839 = vadd.f32 0.0, %v838
      %v840 = vpop.f32.mrf.mxu0
      %841 = vmatprep.mubr.bf16.mxu0 0
      %842 = vmatmul.mubr.bf16.gmra.mxu0 %v592
      %v843 = vpop.f32.mrf.mxu0
      %v844 = vadd.f32 0.0, %v843
      %v845 = vpop.f32.mrf.mxu0
      %v846 = vpop.f32.mrf.mxu0
      %v847 = vadd.f32 0.0, %v846
      %v848 = vpop.f32.mrf.mxu0
      %849 = vmatprep.mubr.bf16.mxu0 0
      %850 = vmatmul.mubr.bf16.gmra.mxu0 %v593
      %v851 = vpop.f32.mrf.mxu0
      %v852 = vadd.f32 0.0, %v851
      %v853 = vpop.f32.mrf.mxu0
      %v854 = vpop.f32.mrf.mxu0
      %v855 = vadd.f32 0.0, %v854
      %v856 = vpop.f32.mrf.mxu0
      %857 = vmatprep.mubr.bf16.mxu0 0
      %858 = vmatmul.mubr.bf16.gmra.mxu0 %v594
      %v859 = vpop.f32.mrf.mxu0
      %v860 = vadd.f32 0.0, %v859
      %v861 = vpop.f32.mrf.mxu0
      %v862 = vpop.f32.mrf.mxu0
      %v863 = vadd.f32 0.0, %v862
      %v864 = vpop.f32.mrf.mxu0
      %865 = vmatprep.mubr.bf16.mxu0 0
      %866 = vmatmul.mubr.bf16.gmra.mxu0 %v595
      %v867 = vpop.f32.mrf.mxu0
      %v868 = vadd.f32 0.0, %v867
      %v869 = vpop.f32.mrf.mxu0
      %v870 = vpop.f32.mrf.mxu0
      %v871 = vadd.f32 0.0, %v870
      %v872 = vpop.f32.mrf.mxu0
      %873 = vmatprep.mubr.bf16.mxu0 0
      %874 = vmatmul.mubr.bf16.gmra.mxu0 %v596
      %v875 = vpop.f32.mrf.mxu0
      %v876 = vadd.f32 0.0, %v875
      %v877 = vpop.f32.mrf.mxu0
      %v878 = vpop.f32.mrf.mxu0
      %v879 = vadd.f32 0.0, %v878
      %v880 = vpop.f32.mrf.mxu0
      %881 = vmatprep.mubr.bf16.mxu0 0
      %882 = vmatmul.mubr.bf16.gmra.mxu0 %v597
      %v883 = vpop.f32.mrf.mxu0
      %v884 = vadd.f32 0.0, %v883
      %v885 = vpop.f32.mrf.mxu0
      %v886 = vpop.f32.mrf.mxu0
      %v887 = vadd.f32 0.0, %v886
      %v888 = vpop.f32.mrf.mxu0
      %889 = vmatprep.mubr.bf16.mxu0 0
      %890 = vmatmul.mubr.bf16.gmra.mxu0 %v598
      %v891 = vpop.f32.mrf.mxu0
      %v892 = vadd.f32 0.0, %v891
      %v893 = vpop.f32.mrf.mxu0
      %v894 = vpop.f32.mrf.mxu0
      %v895 = vadd.f32 0.0, %v894
      %v896 = vpop.f32.mrf.mxu0
      %897 = vmatprep.mubr.bf16.mxu0 0
      %898 = vmatmul.mubr.bf16.gmra.mxu0 %v599
      %v899 = vpop.f32.mrf.mxu0
      %v900 = vadd.f32 0.0, %v899
      %v901 = vpop.f32.mrf.mxu0
      %v902 = vpop.f32.mrf.mxu0
      %v903 = vadd.f32 0.0, %v902
      %v904 = vpop.f32.mrf.mxu0
      %905 = vmatprep.mubr.bf16.mxu0 0
      %906 = vmatmul.mubr.bf16.gmra.mxu0 %v600
      %v907 = vpop.f32.mrf.mxu0
      %v908 = vadd.f32 0.0, %v907
      %v909 = vpop.f32.mrf.mxu0
      %v910 = vpop.f32.mrf.mxu0
      %v911 = vadd.f32 0.0, %v910
      %v912 = vpop.f32.mrf.mxu0
      %913 = vmatprep.mubr.bf16.mxu0 0
      %914 = vmatmul.mubr.bf16.gmra.mxu0 %v601
      %v915 = vpop.f32.mrf.mxu0
      %v916 = vadd.f32 0.0, %v915
      %v917 = vpop.f32.mrf.mxu0
      %v918 = vpop.f32.mrf.mxu0
      %v919 = vadd.f32 0.0, %v918
      %v920 = vpop.f32.mrf.mxu0
      %921 = vmatprep.mubr.bf16.mxu0 0
      %922 = vmatmul.mubr.bf16.gmra.mxu0 %v602
      %v923 = vpop.f32.mrf.mxu0
      %v924 = vadd.f32 0.0, %v923
      %v925 = vpop.f32.mrf.mxu0
      %v926 = vpop.f32.mrf.mxu0
      %v927 = vadd.f32 0.0, %v926
      %v928 = vpop.f32.mrf.mxu0
      %929 = vmatprep.mubr.bf16.mxu0 0
      %930 = vmatmul.mubr.bf16.gmra.mxu0 %v603
      %v931 = vpop.f32.mrf.mxu0
      %v932 = vadd.f32 0.0, %v931
      %v933 = vpop.f32.mrf.mxu0
      %v934 = vpop.f32.mrf.mxu0
      %v935 = vadd.f32 0.0, %v934
      %v936 = vpop.f32.mrf.mxu0
      %937 = vmatprep.mubr.bf16.mxu0 0
      %938 = vmatmul.mubr.bf16.gmra.mxu0 %v604
      %v939 = vpop.f32.mrf.mxu0
      %v940 = vadd.f32 0.0, %v939
      %v941 = vpop.f32.mrf.mxu0
      %v942 = vpop.f32.mrf.mxu0
      %v943 = vadd.f32 0.0, %v942
      %v944 = vpop.f32.mrf.mxu0
      %945 = vmatprep.mubr.bf16.mxu0 0
      %946 = vmatmul.mubr.bf16.gmra.mxu0 %v605
      %v947 = vpop.f32.mrf.mxu0
      %v948 = vadd.f32 0.0, %v947
      %v949 = vpop.f32.mrf.mxu0
      %v950 = vpop.f32.mrf.mxu0
      %v951 = vadd.f32 0.0, %v950
      %v952 = vpop.f32.mrf.mxu0
      %953 = vmatprep.mubr.bf16.mxu0 0
      %954 = vmatmul.mubr.bf16.gmra.mxu0 %v606
      %v955 = vpop.f32.mrf.mxu0
      %v956 = vadd.f32 0.0, %v955
      %v957 = vpop.f32.mrf.mxu0
      %v958 = vpop.f32.mrf.mxu0
      %v959 = vadd.f32 0.0, %v958
      %v960 = vpop.f32.mrf.mxu0
      %961 = vmatprep.mubr.bf16.mxu0 0
      %962 = vmatmul.mubr.bf16.gmra.mxu0 %v607
      %v963 = vpop.f32.mrf.mxu0
      %v964 = vadd.f32 0.0, %v963
      %v965 = vpop.f32.mrf.mxu0
      %v966 = vpop.f32.mrf.mxu0
      %v967 = vadd.f32 0.0, %v966
      %v968 = vpop.f32.mrf.mxu0
      %969 = vmatprep.mubr.bf16.mxu0 0
      %970 = vmatmul.mubr.bf16.gmra.mxu0 %v608
      %v971 = vpop.f32.mrf.mxu0
      %v972 = vadd.f32 0.0, %v971
      %v973 = vpop.f32.mrf.mxu0
      %v974 = vpop.f32.mrf.mxu0
      %v975 = vadd.f32 0.0, %v974
      %v976 = vpop.f32.mrf.mxu0
      %977 = vdwg.mxu0
      %v1042 = vunpack.c.l.b16 %v289
      %v1043 = vunpack.c.l.b16 %v290
      %v1044 = vunpack.c.l.b16 %v291
      %v1045 = vunpack.c.l.b16 %v292
      %v1046 = vunpack.c.l.b16 %v293
      %v1047 = vunpack.c.l.b16 %v294
      %v1048 = vunpack.c.l.b16 %v295
      %v1049 = vunpack.c.l.b16 %v296
      %v1050 = vunpack.c.l.b16 %v297
      %v1051 = vunpack.c.l.b16 %v298
      %v1052 = vunpack.c.l.b16 %v299
      %v1053 = vunpack.c.l.b16 %v300
      %v1054 = vunpack.c.l.b16 %v301
      %v1055 = vunpack.c.l.b16 %v302
      %v1056 = vunpack.c.l.b16 %v303
      %v1057 = vunpack.c.l.b16 %v304
      %v1058 = vunpack.c.l.b16 %v305
      %v1059 = vunpack.c.l.b16 %v306
      %v1060 = vunpack.c.l.b16 %v307
      %v1061 = vunpack.c.l.b16 %v308
      %v1062 = vunpack.c.l.b16 %v309
      %v1063 = vunpack.c.l.b16 %v310
      %v1064 = vunpack.c.l.b16 %v311
      %v1065 = vunpack.c.l.b16 %v312
      %v1066 = vunpack.c.l.b16 %v313
      %v1067 = vunpack.c.l.b16 %v314
      %v1068 = vunpack.c.l.b16 %v315
      %v1069 = vunpack.c.l.b16 %v316
      %v1070 = vunpack.c.l.b16 %v317
      %v1071 = vunpack.c.l.b16 %v318
      %v1072 = vunpack.c.l.b16 %v319
      %v1073 = vunpack.c.l.b16 %v320
      %v1074 = vunpack.c.l.b16 %v321
      %v1075 = vunpack.c.l.b16 %v322
      %v1076 = vunpack.c.l.b16 %v323
      %v1077 = vunpack.c.l.b16 %v324
      %v1078 = vunpack.c.l.b16 %v325
      %v1079 = vunpack.c.l.b16 %v326
      %v1080 = vunpack.c.l.b16 %v327
      %v1081 = vunpack.c.l.b16 %v328
      %v1082 = vunpack.c.l.b16 %v329
      %v1083 = vunpack.c.l.b16 %v330
      %v1084 = vunpack.c.l.b16 %v331
      %v1085 = vunpack.c.l.b16 %v332
      %v1086 = vunpack.c.l.b16 %v333
      %v1087 = vunpack.c.l.b16 %v334
      %v1088 = vunpack.c.l.b16 %v335
      %v1089 = vunpack.c.l.b16 %v336
      %v1090 = vunpack.c.l.b16 %v337
      %v1091 = vunpack.c.l.b16 %v338
      %v1092 = vunpack.c.l.b16 %v339
      %v1093 = vunpack.c.l.b16 %v340
      %v1094 = vunpack.c.l.b16 %v341
      %v1095 = vunpack.c.l.b16 %v342
      %v1096 = vunpack.c.l.b16 %v343
      %v1097 = vunpack.c.l.b16 %v344
      %v1098 = vunpack.c.l.b16 %v345
      %v1099 = vunpack.c.l.b16 %v346
      %v1100 = vunpack.c.l.b16 %v347
      %v1101 = vunpack.c.l.b16 %v348
      %v1102 = vunpack.c.l.b16 %v349
      %v1103 = vunpack.c.l.b16 %v350
      %v1104 = vunpack.c.l.b16 %v351
      %v1105 = vunpack.c.l.b16 %v352
      %v1106 = vpack.c.b16 %v1043, %v1042
      %v1107 = vpack.c.b16 %v1045, %v1044
      %v1108 = vpack.c.b16 %v1047, %v1046
      %v1109 = vpack.c.b16 %v1049, %v1048
      %v1110 = vpack.c.b16 %v1051, %v1050
      %v1111 = vpack.c.b16 %v1053, %v1052
      %v1112 = vpack.c.b16 %v1055, %v1054
      %v1113 = vpack.c.b16 %v1057, %v1056
      %v1114 = vpack.c.b16 %v1059, %v1058
      %v1115 = vpack.c.b16 %v1061, %v1060
      %v1116 = vpack.c.b16 %v1063, %v1062
      %v1117 = vpack.c.b16 %v1065, %v1064
      %v1118 = vpack.c.b16 %v1067, %v1066
      %v1119 = vpack.c.b16 %v1069, %v1068
      %v1120 = vpack.c.b16 %v1071, %v1070
      %v1121 = vpack.c.b16 %v1073, %v1072
      %v1122 = vpack.c.b16 %v1075, %v1074
      %v1123 = vpack.c.b16 %v1077, %v1076
      %v1124 = vpack.c.b16 %v1079, %v1078
      %v1125 = vpack.c.b16 %v1081, %v1080
      %v1126 = vpack.c.b16 %v1083, %v1082
      %v1127 = vpack.c.b16 %v1085, %v1084
      %v1128 = vpack.c.b16 %v1087, %v1086
      %v1129 = vpack.c.b16 %v1089, %v1088
      %v1130 = vpack.c.b16 %v1091, %v1090
      %v1131 = vpack.c.b16 %v1093, %v1092
      %v1132 = vpack.c.b16 %v1095, %v1094
      %v1133 = vpack.c.b16 %v1097, %v1096
      %v1134 = vpack.c.b16 %v1099, %v1098
      %v1135 = vpack.c.b16 %v1101, %v1100
      %v1136 = vpack.c.b16 %v1103, %v1102
      %v1137 = vpack.c.b16 %v1105, %v1104
      %v1186 = vunpack.c.l.b16 %v353
      %v1187 = vunpack.c.l.b16 %v354
      %v1188 = vunpack.c.l.b16 %v355
      %v1189 = vunpack.c.l.b16 %v356
      %v1190 = vunpack.c.l.b16 %v357
      %v1191 = vunpack.c.l.b16 %v358
      %v1192 = vunpack.c.l.b16 %v359
      %v1193 = vunpack.c.l.b16 %v360
      %v1194 = vunpack.c.l.b16 %v361
      %v1195 = vunpack.c.l.b16 %v362
      %v1196 = vunpack.c.l.b16 %v363
      %v1197 = vunpack.c.l.b16 %v364
      %v1198 = vunpack.c.l.b16 %v365
      %v1199 = vunpack.c.l.b16 %v366
      %v1200 = vunpack.c.l.b16 %v367
      %v1201 = vunpack.c.l.b16 %v368
      %v1202 = vpack.c.b16 %v1187, %v1186
      %v1203 = vpack.c.b16 %v1189, %v1188
      %v1204 = vpack.c.b16 %v1191, %v1190
      %v1205 = vpack.c.b16 %v1193, %v1192
      %v1206 = vpack.c.b16 %v1195, %v1194
      %v1207 = vpack.c.b16 %v1197, %v1196
      %v1208 = vpack.c.b16 %v1199, %v1198
      %v1209 = vpack.c.b16 %v1201, %v1200
      %1218 = vmatprep.subr.bf16.mxu0 0
      %1219 = vmatpush1.bf16.msra.mxu0 %v1209
      %1220 = vmatprep.subr.bf16.mxu0 0
      %1221 = vmatpush1.bf16.msra.mxu0 %v1208
      %1222 = vmatprep.subr.bf16.mxu0 0
      %1223 = vmatpush1.bf16.msra.mxu0 %v1207
      %1224 = vmatprep.subr.bf16.mxu0 0
      %1225 = vmatpush1.bf16.msra.mxu0 %v1206
      %1226 = vmatprep.subr.bf16.mxu0 0
      %1227 = vmatpush1.bf16.msra.mxu0 %v1205
      %1228 = vmatprep.subr.bf16.mxu0 0
      %1229 = vmatpush1.bf16.msra.mxu0 %v1204
      %1230 = vmatprep.subr.bf16.mxu0 0
      %1231 = vmatpush1.bf16.msra.mxu0 %v1203
      %1232 = vmatprep.subr.bf16.mxu0 0
      %1233 = vmatpush1.bf16.msra.mxu0 %v1202
      %1234 = vmatprep.subr.bf16.mxu0 0
      %1235 = vmatpush2.bf16.msra.mxu0 0
      %1236 = vmatprep.subr.bf16.mxu0 0
      %1237 = vmatpush2.bf16.msra.mxu0 0
      %1238 = vmatprep.subr.bf16.mxu0 0
      %1239 = vmatpush2.bf16.msra.mxu0 0
      %1240 = vmatprep.subr.bf16.mxu0 0
      %1241 = vmatpush2.bf16.msra.mxu0 0
      %1242 = vmatprep.subr.bf16.mxu0 0
      %1243 = vmatpush2.bf16.msra.mxu0 0
      %1244 = vmatprep.subr.bf16.mxu0 0
      %1245 = vmatpush2.bf16.msra.mxu0 0
      %1246 = vmatprep.subr.bf16.mxu0 0
      %1247 = vmatpush2.bf16.msra.mxu0 0
      %1248 = vmatprep.subr.bf16.mxu0 0
      %1249 = vmatpush2.bf16.msra.mxu0 0
      %1250 = vmatprep.mubr.bf16.mxu0 0
      %1251 = vmatmul.mubr.bf16.gmra.mxu0 %v1106
      %v1252 = vpop.f32.mrf.mxu0
      %v1253 = vadd.f32 %v724, %v1252
      %v1254 = vpop.f32.mrf.mxu0
      %v1255 = vpop.f32.mrf.mxu0
      %v1256 = vadd.f32 %v727, %v1255
      %v1257 = vpop.f32.mrf.mxu0
      %1258 = vmatprep.mubr.bf16.mxu0 0
      %1259 = vmatmul.mubr.bf16.gmra.mxu0 %v1107
      %v1260 = vpop.f32.mrf.mxu0
      %v1261 = vadd.f32 %v732, %v1260
      %v1262 = vpop.f32.mrf.mxu0
      %v1263 = vpop.f32.mrf.mxu0
      %v1264 = vadd.f32 %v735, %v1263
      %v1265 = vpop.f32.mrf.mxu0
      %1266 = vmatprep.mubr.bf16.mxu0 0
      %1267 = vmatmul.mubr.bf16.gmra.mxu0 %v1108
      %v1268 = vpop.f32.mrf.mxu0
      %v1269 = vadd.f32 %v740, %v1268
      %v1270 = vpop.f32.mrf.mxu0
      %v1271 = vpop.f32.mrf.mxu0
      %v1272 = vadd.f32 %v743, %v1271
      %v1273 = vpop.f32.mrf.mxu0
      %1274 = vmatprep.mubr.bf16.mxu0 0
      %1275 = vmatmul.mubr.bf16.gmra.mxu0 %v1109
      %v1276 = vpop.f32.mrf.mxu0
      %v1277 = vadd.f32 %v748, %v1276
      %v1278 = vpop.f32.mrf.mxu0
      %v1279 = vpop.f32.mrf.mxu0
      %v1280 = vadd.f32 %v751, %v1279
      %v1281 = vpop.f32.mrf.mxu0
      %1282 = vmatprep.mubr.bf16.mxu0 0
      %1283 = vmatmul.mubr.bf16.gmra.mxu0 %v1110
      %v1284 = vpop.f32.mrf.mxu0
      %v1285 = vadd.f32 %v756, %v1284
      %v1286 = vpop.f32.mrf.mxu0
      %v1287 = vpop.f32.mrf.mxu0
      %v1288 = vadd.f32 %v759, %v1287
      %v1289 = vpop.f32.mrf.mxu0
      %1290 = vmatprep.mubr.bf16.mxu0 0
      %1291 = vmatmul.mubr.bf16.gmra.mxu0 %v1111
      %v1292 = vpop.f32.mrf.mxu0
      %v1293 = vadd.f32 %v764, %v1292
      %v1294 = vpop.f32.mrf.mxu0
      %v1295 = vpop.f32.mrf.mxu0
      %v1296 = vadd.f32 %v767, %v1295
      %v1297 = vpop.f32.mrf.mxu0
      %1298 = vmatprep.mubr.bf16.mxu0 0
      %1299 = vmatmul.mubr.bf16.gmra.mxu0 %v1112
      %v1300 = vpop.f32.mrf.mxu0
      %v1301 = vadd.f32 %v772, %v1300
      %v1302 = vpop.f32.mrf.mxu0
      %v1303 = vpop.f32.mrf.mxu0
      %v1304 = vadd.f32 %v775, %v1303
      %v1305 = vpop.f32.mrf.mxu0
      %1306 = vmatprep.mubr.bf16.mxu0 0
      %1307 = vmatmul.mubr.bf16.gmra.mxu0 %v1113
      %v1308 = vpop.f32.mrf.mxu0
      %v1309 = vadd.f32 %v780, %v1308
      %v1310 = vpop.f32.mrf.mxu0
      %v1311 = vpop.f32.mrf.mxu0
      %v1312 = vadd.f32 %v783, %v1311
      %v1313 = vpop.f32.mrf.mxu0
      %1314 = vmatprep.mubr.bf16.mxu0 0
      %1315 = vmatmul.mubr.bf16.gmra.mxu0 %v1114
      %v1316 = vpop.f32.mrf.mxu0
      %v1317 = vadd.f32 %v788, %v1316
      %v1318 = vpop.f32.mrf.mxu0
      %v1319 = vpop.f32.mrf.mxu0
      %v1320 = vadd.f32 %v791, %v1319
      %v1321 = vpop.f32.mrf.mxu0
      %1322 = vmatprep.mubr.bf16.mxu0 0
      %1323 = vmatmul.mubr.bf16.gmra.mxu0 %v1115
      %v1324 = vpop.f32.mrf.mxu0
      %v1325 = vadd.f32 %v796, %v1324
      %v1326 = vpop.f32.mrf.mxu0
      %v1327 = vpop.f32.mrf.mxu0
      %v1328 = vadd.f32 %v799, %v1327
      %v1329 = vpop.f32.mrf.mxu0
      %1330 = vmatprep.mubr.bf16.mxu0 0
      %1331 = vmatmul.mubr.bf16.gmra.mxu0 %v1116
      %v1332 = vpop.f32.mrf.mxu0
      %v1333 = vadd.f32 %v804, %v1332
      %v1334 = vpop.f32.mrf.mxu0
      %v1335 = vpop.f32.mrf.mxu0
      %v1336 = vadd.f32 %v807, %v1335
      %v1337 = vpop.f32.mrf.mxu0
      %1338 = vmatprep.mubr.bf16.mxu0 0
      %1339 = vmatmul.mubr.bf16.gmra.mxu0 %v1117
      %v1340 = vpop.f32.mrf.mxu0
      %v1341 = vadd.f32 %v812, %v1340
      %v1342 = vpop.f32.mrf.mxu0
      %v1343 = vpop.f32.mrf.mxu0
      %v1344 = vadd.f32 %v815, %v1343
      %v1345 = vpop.f32.mrf.mxu0
      %1346 = vmatprep.mubr.bf16.mxu0 0
      %1347 = vmatmul.mubr.bf16.gmra.mxu0 %v1118
      %v1348 = vpop.f32.mrf.mxu0
      %v1349 = vadd.f32 %v820, %v1348
      %v1350 = vpop.f32.mrf.mxu0
      %v1351 = vpop.f32.mrf.mxu0
      %v1352 = vadd.f32 %v823, %v1351
      %v1353 = vpop.f32.mrf.mxu0
      %1354 = vmatprep.mubr.bf16.mxu0 0
      %1355 = vmatmul.mubr.bf16.gmra.mxu0 %v1119
      %v1356 = vpop.f32.mrf.mxu0
      %v1357 = vadd.f32 %v828, %v1356
      %v1358 = vpop.f32.mrf.mxu0
      %v1359 = vpop.f32.mrf.mxu0
      %v1360 = vadd.f32 %v831, %v1359
      %v1361 = vpop.f32.mrf.mxu0
      %1362 = vmatprep.mubr.bf16.mxu0 0
      %1363 = vmatmul.mubr.bf16.gmra.mxu0 %v1120
      %v1364 = vpop.f32.mrf.mxu0
      %v1365 = vadd.f32 %v836, %v1364
      %v1366 = vpop.f32.mrf.mxu0
      %v1367 = vpop.f32.mrf.mxu0
      %v1368 = vadd.f32 %v839, %v1367
      %v1369 = vpop.f32.mrf.mxu0
      %1370 = vmatprep.mubr.bf16.mxu0 0
      %1371 = vmatmul.mubr.bf16.gmra.mxu0 %v1121
      %v1372 = vpop.f32.mrf.mxu0
      %v1373 = vadd.f32 %v844, %v1372
      %v1374 = vpop.f32.mrf.mxu0
      %v1375 = vpop.f32.mrf.mxu0
      %v1376 = vadd.f32 %v847, %v1375
      %v1377 = vpop.f32.mrf.mxu0
      %1378 = vmatprep.mubr.bf16.mxu0 0
      %1379 = vmatmul.mubr.bf16.gmra.mxu0 %v1122
      %v1380 = vpop.f32.mrf.mxu0
      %v1381 = vadd.f32 %v852, %v1380
      %v1382 = vpop.f32.mrf.mxu0
      %v1383 = vpop.f32.mrf.mxu0
      %v1384 = vadd.f32 %v855, %v1383
      %v1385 = vpop.f32.mrf.mxu0
      %1386 = vmatprep.mubr.bf16.mxu0 0
      %1387 = vmatmul.mubr.bf16.gmra.mxu0 %v1123
      %v1388 = vpop.f32.mrf.mxu0
      %v1389 = vadd.f32 %v860, %v1388
      %v1390 = vpop.f32.mrf.mxu0
      %v1391 = vpop.f32.mrf.mxu0
      %v1392 = vadd.f32 %v863, %v1391
      %v1393 = vpop.f32.mrf.mxu0
      %1394 = vmatprep.mubr.bf16.mxu0 0
      %1395 = vmatmul.mubr.bf16.gmra.mxu0 %v1124
      %v1396 = vpop.f32.mrf.mxu0
      %v1397 = vadd.f32 %v868, %v1396
      %v1398 = vpop.f32.mrf.mxu0
      %v1399 = vpop.f32.mrf.mxu0
      %v1400 = vadd.f32 %v871, %v1399
      %v1401 = vpop.f32.mrf.mxu0
      %1402 = vmatprep.mubr.bf16.mxu0 0
      %1403 = vmatmul.mubr.bf16.gmra.mxu0 %v1125
      %v1404 = vpop.f32.mrf.mxu0
      %v1405 = vadd.f32 %v876, %v1404
      %v1406 = vpop.f32.mrf.mxu0
      %v1407 = vpop.f32.mrf.mxu0
      %v1408 = vadd.f32 %v879, %v1407
      %v1409 = vpop.f32.mrf.mxu0
      %1410 = vmatprep.mubr.bf16.mxu0 0
      %1411 = vmatmul.mubr.bf16.gmra.mxu0 %v1126
      %v1412 = vpop.f32.mrf.mxu0
      %v1413 = vadd.f32 %v884, %v1412
      %v1414 = vpop.f32.mrf.mxu0
      %v1415 = vpop.f32.mrf.mxu0
      %v1416 = vadd.f32 %v887, %v1415
      %v1417 = vpop.f32.mrf.mxu0
      %1418 = vmatprep.mubr.bf16.mxu0 0
      %1419 = vmatmul.mubr.bf16.gmra.mxu0 %v1127
      %v1420 = vpop.f32.mrf.mxu0
      %v1421 = vadd.f32 %v892, %v1420
      %v1422 = vpop.f32.mrf.mxu0
      %v1423 = vpop.f32.mrf.mxu0
      %v1424 = vadd.f32 %v895, %v1423
      %v1425 = vpop.f32.mrf.mxu0
      %1426 = vmatprep.mubr.bf16.mxu0 0
      %1427 = vmatmul.mubr.bf16.gmra.mxu0 %v1128
      %v1428 = vpop.f32.mrf.mxu0
      %v1429 = vadd.f32 %v900, %v1428
      %v1430 = vpop.f32.mrf.mxu0
      %v1431 = vpop.f32.mrf.mxu0
      %v1432 = vadd.f32 %v903, %v1431
      %v1433 = vpop.f32.mrf.mxu0
      %1434 = vmatprep.mubr.bf16.mxu0 0
      %1435 = vmatmul.mubr.bf16.gmra.mxu0 %v1129
      %v1436 = vpop.f32.mrf.mxu0
      %v1437 = vadd.f32 %v908, %v1436
      %v1438 = vpop.f32.mrf.mxu0
      %v1439 = vpop.f32.mrf.mxu0
      %v1440 = vadd.f32 %v911, %v1439
      %v1441 = vpop.f32.mrf.mxu0
      %1442 = vmatprep.mubr.bf16.mxu0 0
      %1443 = vmatmul.mubr.bf16.gmra.mxu0 %v1130
      %v1444 = vpop.f32.mrf.mxu0
      %v1445 = vadd.f32 %v916, %v1444
      %v1446 = vpop.f32.mrf.mxu0
      %v1447 = vpop.f32.mrf.mxu0
      %v1448 = vadd.f32 %v919, %v1447
      %v1449 = vpop.f32.mrf.mxu0
      %1450 = vmatprep.mubr.bf16.mxu0 0
      %1451 = vmatmul.mubr.bf16.gmra.mxu0 %v1131
      %v1452 = vpop.f32.mrf.mxu0
      %v1453 = vadd.f32 %v924, %v1452
      %v1454 = vpop.f32.mrf.mxu0
      %v1455 = vpop.f32.mrf.mxu0
      %v1456 = vadd.f32 %v927, %v1455
      %v1457 = vpop.f32.mrf.mxu0
      %1458 = vmatprep.mubr.bf16.mxu0 0
      %1459 = vmatmul.mubr.bf16.gmra.mxu0 %v1132
      %v1460 = vpop.f32.mrf.mxu0
      %v1461 = vadd.f32 %v932, %v1460
      %v1462 = vpop.f32.mrf.mxu0
      %v1463 = vpop.f32.mrf.mxu0
      %v1464 = vadd.f32 %v935, %v1463
      %v1465 = vpop.f32.mrf.mxu0
      %1466 = vmatprep.mubr.bf16.mxu0 0
      %1467 = vmatmul.mubr.bf16.gmra.mxu0 %v1133
      %v1468 = vpop.f32.mrf.mxu0
      %v1469 = vadd.f32 %v940, %v1468
      %v1470 = vpop.f32.mrf.mxu0
      %v1471 = vpop.f32.mrf.mxu0
      %v1472 = vadd.f32 %v943, %v1471
      %v1473 = vpop.f32.mrf.mxu0
      %1474 = vmatprep.mubr.bf16.mxu0 0
      %1475 = vmatmul.mubr.bf16.gmra.mxu0 %v1134
      %v1476 = vpop.f32.mrf.mxu0
      %v1477 = vadd.f32 %v948, %v1476
      %v1478 = vpop.f32.mrf.mxu0
      %v1479 = vpop.f32.mrf.mxu0
      %v1480 = vadd.f32 %v951, %v1479
      %v1481 = vpop.f32.mrf.mxu0
      %1482 = vmatprep.mubr.bf16.mxu0 0
      %1483 = vmatmul.mubr.bf16.gmra.mxu0 %v1135
      %v1484 = vpop.f32.mrf.mxu0
      %v1485 = vadd.f32 %v956, %v1484
      %v1486 = vpop.f32.mrf.mxu0
      %v1487 = vpop.f32.mrf.mxu0
      %v1488 = vadd.f32 %v959, %v1487
      %v1489 = vpop.f32.mrf.mxu0
      %1490 = vmatprep.mubr.bf16.mxu0 0
      %1491 = vmatmul.mubr.bf16.gmra.mxu0 %v1136
      %v1492 = vpop.f32.mrf.mxu0
      %v1493 = vadd.f32 %v964, %v1492
      %v1494 = vpop.f32.mrf.mxu0
      %v1495 = vpop.f32.mrf.mxu0
      %v1496 = vadd.f32 %v967, %v1495
      %v1497 = vpop.f32.mrf.mxu0
      %1498 = vmatprep.mubr.bf16.mxu0 0
      %1499 = vmatmul.mubr.bf16.gmra.mxu0 %v1137
      %v1500 = vpop.f32.mrf.mxu0
      %v1501 = vadd.f32 %v972, %v1500
      %v1502 = vpop.f32.mrf.mxu0
      %v1503 = vpop.f32.mrf.mxu0
      %v1504 = vadd.f32 %v975, %v1503
      %v1505 = vpop.f32.mrf.mxu0
      %1506 = vdwg.mxu0
      %v1507 = vld [vmem:[%s4] sm:$0x1]
      %v1508 = vlaneseq
      %v1509 = vshrl.u32 %v1508, 7
      %v1510 = vsub.s32 0, %v1509
      %v1511 = vrot.slane %v1507, %v1510
      %v1512 = vadd.f32 %v1253, %v1511
      %v1513 = vadd.f32 %v1256, %v1511
      %v1514 = vadd.f32 %v1261, %v1511
      %v1515 = vadd.f32 %v1264, %v1511
      %v1516 = vadd.f32 %v1269, %v1511
      %v1517 = vadd.f32 %v1272, %v1511
      %v1518 = vadd.f32 %v1277, %v1511
      %v1519 = vadd.f32 %v1280, %v1511
      %v1520 = vadd.f32 %v1285, %v1511
      %v1521 = vadd.f32 %v1288, %v1511
      %v1522 = vadd.f32 %v1293, %v1511
      %v1523 = vadd.f32 %v1296, %v1511
      %v1524 = vadd.f32 %v1301, %v1511
      %v1525 = vadd.f32 %v1304, %v1511
      %v1526 = vadd.f32 %v1309, %v1511
      %v1527 = vadd.f32 %v1312, %v1511
      %v1528 = vadd.f32 %v1317, %v1511
      %v1529 = vadd.f32 %v1320, %v1511
      %v1530 = vadd.f32 %v1325, %v1511
      %v1531 = vadd.f32 %v1328, %v1511
      %v1532 = vadd.f32 %v1333, %v1511
      %v1533 = vadd.f32 %v1336, %v1511
      %v1534 = vadd.f32 %v1341, %v1511
      %v1535 = vadd.f32 %v1344, %v1511
      %v1536 = vadd.f32 %v1349, %v1511
      %v1537 = vadd.f32 %v1352, %v1511
      %v1538 = vadd.f32 %v1357, %v1511
      %v1539 = vadd.f32 %v1360, %v1511
      %v1540 = vadd.f32 %v1365, %v1511
      %v1541 = vadd.f32 %v1368, %v1511
      %v1542 = vadd.f32 %v1373, %v1511
      %v1543 = vadd.f32 %v1376, %v1511
      %v1544 = vadd.f32 %v1381, %v1511
      %v1545 = vadd.f32 %v1384, %v1511
      %v1546 = vadd.f32 %v1389, %v1511
      %v1547 = vadd.f32 %v1392, %v1511
      %v1548 = vadd.f32 %v1397, %v1511
      %v1549 = vadd.f32 %v1400, %v1511
      %v1550 = vadd.f32 %v1405, %v1511
      %v1551 = vadd.f32 %v1408, %v1511
      %v1552 = vadd.f32 %v1413, %v1511
      %v1553 = vadd.f32 %v1416, %v1511
      %v1554 = vadd.f32 %v1421, %v1511
      %v1555 = vadd.f32 %v1424, %v1511
      %v1556 = vadd.f32 %v1429, %v1511
      %v1557 = vadd.f32 %v1432, %v1511
      %v1558 = vadd.f32 %v1437, %v1511
      %v1559 = vadd.f32 %v1440, %v1511
      %v1560 = vadd.f32 %v1445, %v1511
      %v1561 = vadd.f32 %v1448, %v1511
      %v1562 = vadd.f32 %v1453, %v1511
      %v1563 = vadd.f32 %v1456, %v1511
      %v1564 = vadd.f32 %v1461, %v1511
      %v1565 = vadd.f32 %v1464, %v1511
      %v1566 = vadd.f32 %v1469, %v1511
      %v1567 = vadd.f32 %v1472, %v1511
      %v1568 = vadd.f32 %v1477, %v1511
      %v1569 = vadd.f32 %v1480, %v1511
      %v1570 = vadd.f32 %v1485, %v1511
      %v1571 = vadd.f32 %v1488, %v1511
      %v1572 = vadd.f32 %v1493, %v1511
      %v1573 = vadd.f32 %v1496, %v1511
      %v1574 = vadd.f32 %v1501, %v1511
      %v1575 = vadd.f32 %v1504, %v1511
      %v1576 = vpack.c.bf16 %v1513, %v1512
      %v1577 = vpack.c.bf16 %v1515, %v1514
      %v1578 = vpack.c.bf16 %v1517, %v1516
      %v1579 = vpack.c.bf16 %v1519, %v1518
      %v1580 = vpack.c.bf16 %v1521, %v1520
      %v1581 = vpack.c.bf16 %v1523, %v1522
      %v1582 = vpack.c.bf16 %v1525, %v1524
      %v1583 = vpack.c.bf16 %v1527, %v1526
      %v1584 = vpack.c.bf16 %v1529, %v1528
      %v1585 = vpack.c.bf16 %v1531, %v1530
      %v1586 = vpack.c.bf16 %v1533, %v1532
      %v1587 = vpack.c.bf16 %v1535, %v1534
      %v1588 = vpack.c.bf16 %v1537, %v1536
      %v1589 = vpack.c.bf16 %v1539, %v1538
      %v1590 = vpack.c.bf16 %v1541, %v1540
      %v1591 = vpack.c.bf16 %v1543, %v1542
      %v1592 = vpack.c.bf16 %v1545, %v1544
      %v1593 = vpack.c.bf16 %v1547, %v1546
      %v1594 = vpack.c.bf16 %v1549, %v1548
      %v1595 = vpack.c.bf16 %v1551, %v1550
      %v1596 = vpack.c.bf16 %v1553, %v1552
      %v1597 = vpack.c.bf16 %v1555, %v1554
      %v1598 = vpack.c.bf16 %v1557, %v1556
      %v1599 = vpack.c.bf16 %v1559, %v1558
      %v1600 = vpack.c.bf16 %v1561, %v1560
      %v1601 = vpack.c.bf16 %v1563, %v1562
      %v1602 = vpack.c.bf16 %v1565, %v1564
      %v1603 = vpack.c.bf16 %v1567, %v1566
      %v1604 = vpack.c.bf16 %v1569, %v1568
      %v1605 = vpack.c.bf16 %v1571, %v1570
      %v1606 = vpack.c.bf16 %v1573, %v1572
      %v1607 = vpack.c.bf16 %v1575, %v1574
      %v1640 = vunpack.c.l.b16 %v1576
      %v1641 = vunpack.c.h.b16 %v1576
      %v1642 = vunpack.c.l.b16 %v1577
      %v1643 = vunpack.c.h.b16 %v1577
      %v1644 = vunpack.c.l.b16 %v1578
      %v1645 = vunpack.c.h.b16 %v1578
      %v1646 = vunpack.c.l.b16 %v1579
      %v1647 = vunpack.c.h.b16 %v1579
      %v1648 = vunpack.c.l.b16 %v1580
      %v1649 = vunpack.c.h.b16 %v1580
      %v1650 = vunpack.c.l.b16 %v1581
      %v1651 = vunpack.c.h.b16 %v1581
      %v1652 = vunpack.c.l.b16 %v1582
      %v1653 = vunpack.c.h.b16 %v1582
      %v1654 = vunpack.c.l.b16 %v1583
      %v1655 = vunpack.c.h.b16 %v1583
      %v1656 = vunpack.c.l.b16 %v1584
      %v1657 = vunpack.c.h.b16 %v1584
      %v1658 = vunpack.c.l.b16 %v1585
      %v1659 = vunpack.c.h.b16 %v1585
      %v1660 = vunpack.c.l.b16 %v1586
      %v1661 = vunpack.c.h.b16 %v1586
      %v1662 = vunpack.c.l.b16 %v1587
      %v1663 = vunpack.c.h.b16 %v1587
      %v1664 = vunpack.c.l.b16 %v1588
      %v1665 = vunpack.c.h.b16 %v1588
      %v1666 = vunpack.c.l.b16 %v1589
      %v1667 = vunpack.c.h.b16 %v1589
      %v1668 = vunpack.c.l.b16 %v1590
      %v1669 = vunpack.c.h.b16 %v1590
      %v1670 = vunpack.c.l.b16 %v1591
      %v1671 = vunpack.c.h.b16 %v1591
      %v1672 = vunpack.c.l.b16 %v1592
      %v1673 = vunpack.c.h.b16 %v1592
      %v1674 = vunpack.c.l.b16 %v1593
      %v1675 = vunpack.c.h.b16 %v1593
      %v1676 = vunpack.c.l.b16 %v1594
      %v1677 = vunpack.c.h.b16 %v1594
      %v1678 = vunpack.c.l.b16 %v1595
      %v1679 = vunpack.c.h.b16 %v1595
      %v1680 = vunpack.c.l.b16 %v1596
      %v1681 = vunpack.c.h.b16 %v1596
      %v1682 = vunpack.c.l.b16 %v1597
      %v1683 = vunpack.c.h.b16 %v1597
      %v1684 = vunpack.c.l.b16 %v1598
      %v1685 = vunpack.c.h.b16 %v1598
      %v1686 = vunpack.c.l.b16 %v1599
      %v1687 = vunpack.c.h.b16 %v1599
      %v1688 = vunpack.c.l.b16 %v1600
      %v1689 = vunpack.c.h.b16 %v1600
      %v1690 = vunpack.c.l.b16 %v1601
      %v1691 = vunpack.c.h.b16 %v1601
      %v1692 = vunpack.c.l.b16 %v1602
      %v1693 = vunpack.c.h.b16 %v1602
      %v1694 = vunpack.c.l.b16 %v1603
      %v1695 = vunpack.c.h.b16 %v1603
      %v1696 = vunpack.c.l.b16 %v1604
      %v1697 = vunpack.c.h.b16 %v1604
      %v1698 = vunpack.c.l.b16 %v1605
      %v1699 = vunpack.c.h.b16 %v1605
      %v1700 = vunpack.c.l.b16 %v1606
      %v1701 = vunpack.c.h.b16 %v1606
      %v1702 = vunpack.c.l.b16 %v1607
      %v1703 = vunpack.c.h.b16 %v1607
      %v1704 = vpack.c.b16 %v1640, %v1640
      %v1705 = vpack.c.b16 %v1641, %v1641
      %v1706 = vpack.c.b16 %v1642, %v1642
      %v1707 = vpack.c.b16 %v1643, %v1643
      %v1708 = vpack.c.b16 %v1644, %v1644
      %v1709 = vpack.c.b16 %v1645, %v1645
      %v1710 = vpack.c.b16 %v1646, %v1646
      %v1711 = vpack.c.b16 %v1647, %v1647
      %v1712 = vpack.c.b16 %v1648, %v1648
      %v1713 = vpack.c.b16 %v1649, %v1649
      %v1714 = vpack.c.b16 %v1650, %v1650
      %v1715 = vpack.c.b16 %v1651, %v1651
      %v1716 = vpack.c.b16 %v1652, %v1652
      %v1717 = vpack.c.b16 %v1653, %v1653
      %v1718 = vpack.c.b16 %v1654, %v1654
      %v1719 = vpack.c.b16 %v1655, %v1655
      %v1720 = vpack.c.b16 %v1656, %v1656
      %v1721 = vpack.c.b16 %v1657, %v1657
      %v1722 = vpack.c.b16 %v1658, %v1658
      %v1723 = vpack.c.b16 %v1659, %v1659
      %v1724 = vpack.c.b16 %v1660, %v1660
      %v1725 = vpack.c.b16 %v1661, %v1661
      %v1726 = vpack.c.b16 %v1662, %v1662
      %v1727 = vpack.c.b16 %v1663, %v1663
      %v1728 = vpack.c.b16 %v1664, %v1664
      %v1729 = vpack.c.b16 %v1665, %v1665
      %v1730 = vpack.c.b16 %v1666, %v1666
      %v1731 = vpack.c.b16 %v1667, %v1667
      %v1732 = vpack.c.b16 %v1668, %v1668
      %v1733 = vpack.c.b16 %v1669, %v1669
      %v1734 = vpack.c.b16 %v1670, %v1670
      %v1735 = vpack.c.b16 %v1671, %v1671
      %v1736 = vpack.c.b16 %v1672, %v1672
      %v1737 = vpack.c.b16 %v1673, %v1673
      %v1738 = vpack.c.b16 %v1674, %v1674
      %v1739 = vpack.c.b16 %v1675, %v1675
      %v1740 = vpack.c.b16 %v1676, %v1676
      %v1741 = vpack.c.b16 %v1677, %v1677
      %v1742 = vpack.c.b16 %v1678, %v1678
      %v1743 = vpack.c.b16 %v1679, %v1679
      %v1744 = vpack.c.b16 %v1680, %v1680
      %v1745 = vpack.c.b16 %v1681, %v1681
      %v1746 = vpack.c.b16 %v1682, %v1682
      %v1747 = vpack.c.b16 %v1683, %v1683
      %v1748 = vpack.c.b16 %v1684, %v1684
      %v1749 = vpack.c.b16 %v1685, %v1685
      %v1750 = vpack.c.b16 %v1686, %v1686
      %v1751 = vpack.c.b16 %v1687, %v1687
      %v1752 = vpack.c.b16 %v1688, %v1688
      %v1753 = vpack.c.b16 %v1689, %v1689
      %v1754 = vpack.c.b16 %v1690, %v1690
      %v1755 = vpack.c.b16 %v1691, %v1691
      %v1756 = vpack.c.b16 %v1692, %v1692
      %v1757 = vpack.c.b16 %v1693, %v1693
      %v1758 = vpack.c.b16 %v1694, %v1694
      %v1759 = vpack.c.b16 %v1695, %v1695
      %v1760 = vpack.c.b16 %v1696, %v1696
      %v1761 = vpack.c.b16 %v1697, %v1697
      %v1762 = vpack.c.b16 %v1698, %v1698
      %v1763 = vpack.c.b16 %v1699, %v1699
      %v1764 = vpack.c.b16 %v1700, %v1700
      %v1765 = vpack.c.b16 %v1701, %v1701
      %v1766 = vpack.c.b16 %v1702, %v1702
      %v1767 = vpack.c.b16 %v1703, %v1703
      %1832 = vst [vmem:[%s282] sm:$0xf] %v1704
      %1833 = vst [vmem:[%s282 + $0x4] sm:$0xf] %v1705
      %1834 = vst [vmem:[%s282 + $0x8] sm:$0xf] %v1706
      %1835 = vst [vmem:[%s282 + $0xc] sm:$0xf] %v1707
      %1836 = vst [vmem:[%s282 + $0x10] sm:$0xf] %v1708
      %1837 = vst [vmem:[%s282 + $0x14] sm:$0xf] %v1709
      %1838 = vst [vmem:[%s282 + $0x18] sm:$0xf] %v1710
      %1839 = vst [vmem:[%s282 + $0x1c] sm:$0xf] %v1711
      %1840 = vst [vmem:[%s282 + $0x20] sm:$0xf] %v1712
      %1841 = vst [vmem:[%s282 + $0x24] sm:$0xf] %v1713
      %1842 = vst [vmem:[%s282 + $0x28] sm:$0xf] %v1714
      %1843 = vst [vmem:[%s282 + $0x2c] sm:$0xf] %v1715
      %1844 = vst [vmem:[%s282 + $0x30] sm:$0xf] %v1716
      %1845 = vst [vmem:[%s282 + $0x34] sm:$0xf] %v1717
      %1846 = vst [vmem:[%s282 + $0x38] sm:$0xf] %v1718
      %1847 = vst [vmem:[%s282 + $0x3c] sm:$0xf] %v1719
      %1848 = vst [vmem:[%s282 + $0x40] sm:$0xf] %v1720
      %1849 = vst [vmem:[%s282 + $0x44] sm:$0xf] %v1721
      %1850 = vst [vmem:[%s282 + $0x48] sm:$0xf] %v1722
      %1851 = vst [vmem:[%s282 + $0x4c] sm:$0xf] %v1723
      %1852 = vst [vmem:[%s282 + $0x50] sm:$0xf] %v1724
      %1853 = vst [vmem:[%s282 + $0x54] sm:$0xf] %v1725
      %1854 = vst [vmem:[%s282 + $0x58] sm:$0xf] %v1726
      %1855 = vst [vmem:[%s282 + $0x5c] sm:$0xf] %v1727
      %1856 = vst [vmem:[%s282 + $0x60] sm:$0xf] %v1728
      %1857 = vst [vmem:[%s282 + $0x64] sm:$0xf] %v1729
      %1858 = vst [vmem:[%s282 + $0x68] sm:$0xf] %v1730
      %1859 = vst [vmem:[%s282 + $0x6c] sm:$0xf] %v1731
      %1860 = vst [vmem:[%s282 + $0x70] sm:$0xf] %v1732
      %1861 = vst [vmem:[%s282 + $0x74] sm:$0xf] %v1733
      %1862 = vst [vmem:[%s282 + $0x78] sm:$0xf] %v1734
      %1863 = vst [vmem:[%s282 + $0x7c] sm:$0xf] %v1735
      %1864 = vst [vmem:[%s282 + $0x80] sm:$0xf] %v1736
      %1865 = vst [vmem:[%s282 + $0x84] sm:$0xf] %v1737
      %1866 = vst [vmem:[%s282 + $0x88] sm:$0xf] %v1738
      %1867 = vst [vmem:[%s282 + $0x8c] sm:$0xf] %v1739
      %1868 = vst [vmem:[%s282 + $0x90] sm:$0xf] %v1740
      %1869 = vst [vmem:[%s282 + $0x94] sm:$0xf] %v1741
      %1870 = vst [vmem:[%s282 + $0x98] sm:$0xf] %v1742
      %1871 = vst [vmem:[%s282 + $0x9c] sm:$0xf] %v1743
      %1872 = vst [vmem:[%s282 + $0xa0] sm:$0xf] %v1744
      %1873 = vst [vmem:[%s282 + $0xa4] sm:$0xf] %v1745
      %1874 = vst [vmem:[%s282 + $0xa8] sm:$0xf] %v1746
      %1875 = vst [vmem:[%s282 + $0xac] sm:$0xf] %v1747
      %1876 = vst [vmem:[%s282 + $0xb0] sm:$0xf] %v1748
      %1877 = vst [vmem:[%s282 + $0xb4] sm:$0xf] %v1749
      %1878 = vst [vmem:[%s282 + $0xb8] sm:$0xf] %v1750
      %1879 = vst [vmem:[%s282 + $0xbc] sm:$0xf] %v1751
      %1880 = vst [vmem:[%s282 + $0xc0] sm:$0xf] %v1752
      %1881 = vst [vmem:[%s282 + $0xc4] sm:$0xf] %v1753
      %1882 = vst [vmem:[%s282 + $0xc8] sm:$0xf] %v1754
      %1883 = vst [vmem:[%s282 + $0xcc] sm:$0xf] %v1755
      %1884 = vst [vmem:[%s282 + $0xd0] sm:$0xf] %v1756
      %1885 = vst [vmem:[%s282 + $0xd4] sm:$0xf] %v1757
      %1886 = vst [vmem:[%s282 + $0xd8] sm:$0xf] %v1758
      %1887 = vst [vmem:[%s282 + $0xdc] sm:$0xf] %v1759
      %1888 = vst [vmem:[%s282 + $0xe0] sm:$0xf] %v1760
      %1889 = vst [vmem:[%s282 + $0xe4] sm:$0xf] %v1761
      %1890 = vst [vmem:[%s282 + $0xe8] sm:$0xf] %v1762
      %1891 = vst [vmem:[%s282 + $0xec] sm:$0xf] %v1763
      %1892 = vst [vmem:[%s282 + $0xf0] sm:$0xf] %v1764
      %1893 = vst [vmem:[%s282 + $0xf4] sm:$0xf] %v1765
      %1894 = vst [vmem:[%s282 + $0xf8] sm:$0xf] %v1766
      %1895 = vst [vmem:[%s282 + $0xfc] sm:$0xf] %v1767
      %1896 = vst [vmem:[%s287] sm:$0xff] 0.0
      %v1897 = vadd.f32 %v1512, %v1513
      %v1898 = vadd.f32 %v1897, %v1514
      %v1899 = vadd.f32 %v1898, %v1515
      %v1900 = vadd.f32 %v1899, %v1516
      %v1901 = vadd.f32 %v1900, %v1517
      %v1902 = vadd.f32 %v1901, %v1518
      %v1903 = vadd.f32 %v1902, %v1519
      %v1904 = vadd.f32 %v1903, %v1520
      %v1905 = vadd.f32 %v1904, %v1521
      %v1906 = vadd.f32 %v1905, %v1522
      %v1907 = vadd.f32 %v1906, %v1523
      %v1908 = vadd.f32 %v1907, %v1524
      %v1909 = vadd.f32 %v1908, %v1525
      %v1910 = vadd.f32 %v1909, %v1526
      %v1911 = vadd.f32 %v1910, %v1527
      %v1912 = vadd.f32 %v1911, %v1528
      %v1913 = vadd.f32 %v1912, %v1529
      %v1914 = vadd.f32 %v1913, %v1530
      %v1915 = vadd.f32 %v1914, %v1531
      %v1916 = vadd.f32 %v1915, %v1532
      %v1917 = vadd.f32 %v1916, %v1533
      %v1918 = vadd.f32 %v1917, %v1534
      %v1919 = vadd.f32 %v1918, %v1535
      %v1920 = vadd.f32 %v1919, %v1536
      %v1921 = vadd.f32 %v1920, %v1537
      %v1922 = vadd.f32 %v1921, %v1538
      %v1923 = vadd.f32 %v1922, %v1539
      %v1924 = vadd.f32 %v1923, %v1540
      %v1925 = vadd.f32 %v1924, %v1541
      %v1926 = vadd.f32 %v1925, %v1542
      %v1927 = vadd.f32 %v1926, %v1543
      %v1928 = vadd.f32 %v1927, %v1544
      %v1929 = vadd.f32 %v1928, %v1545
      %v1930 = vadd.f32 %v1929, %v1546
      %v1931 = vadd.f32 %v1930, %v1547
      %v1932 = vadd.f32 %v1931, %v1548
      %v1933 = vadd.f32 %v1932, %v1549
      %v1934 = vadd.f32 %v1933, %v1550
      %v1935 = vadd.f32 %v1934, %v1551
      %v1936 = vadd.f32 %v1935, %v1552
      %v1937 = vadd.f32 %v1936, %v1553
      %v1938 = vadd.f32 %v1937, %v1554
      %v1939 = vadd.f32 %v1938, %v1555
      %v1940 = vadd.f32 %v1939, %v1556
      %v1941 = vadd.f32 %v1940, %v1557
      %v1942 = vadd.f32 %v1941, %v1558
      %v1943 = vadd.f32 %v1942, %v1559
      %v1944 = vadd.f32 %v1943, %v1560
      %v1945 = vadd.f32 %v1944, %v1561
      %v1946 = vadd.f32 %v1945, %v1562
      %v1947 = vadd.f32 %v1946, %v1563
      %v1948 = vadd.f32 %v1947, %v1564
      %v1949 = vadd.f32 %v1948, %v1565
      %v1950 = vadd.f32 %v1949, %v1566
      %v1951 = vadd.f32 %v1950, %v1567
      %v1952 = vadd.f32 %v1951, %v1568
      %v1953 = vadd.f32 %v1952, %v1569
      %v1954 = vadd.f32 %v1953, %v1570
      %v1955 = vadd.f32 %v1954, %v1571
      %v1956 = vadd.f32 %v1955, %v1572
      %v1957 = vadd.f32 %v1956, %v1573
      %v1958 = vadd.f32 %v1957, %v1574
      %v1959 = vadd.f32 %v1958, %v1575
      %v1960 = vrot.slane %v1959, 4
      %v1961 = vadd.f32 %v1959, %v1960
      %v1962 = vrot.slane %v1961, 2
      %v1963 = vadd.f32 %v1961, %v1962
      %v1964 = vrot.slane %v1963, 1
      %v1965 = vadd.f32 %v1963, %v1964
      %1966 = vst [vmem:[%s287] sm:$0x1] %v1965
      %v1967 = vmul.f32 %v1512, %v1512
      %v1968 = vmul.f32 %v1513, %v1513
      %v1969 = vmul.f32 %v1514, %v1514
      %v1970 = vmul.f32 %v1515, %v1515
      %v1971 = vmul.f32 %v1516, %v1516
      %v1972 = vmul.f32 %v1517, %v1517
      %v1973 = vmul.f32 %v1518, %v1518
      %v1974 = vmul.f32 %v1519, %v1519
      %v1975 = vmul.f32 %v1520, %v1520
      %v1976 = vmul.f32 %v1521, %v1521
      %v1977 = vmul.f32 %v1522, %v1522
      %v1978 = vmul.f32 %v1523, %v1523
      %v1979 = vmul.f32 %v1524, %v1524
      %v1980 = vmul.f32 %v1525, %v1525
      %v1981 = vmul.f32 %v1526, %v1526
      %v1982 = vmul.f32 %v1527, %v1527
      %v1983 = vmul.f32 %v1528, %v1528
      %v1984 = vmul.f32 %v1529, %v1529
      %v1985 = vmul.f32 %v1530, %v1530
      %v1986 = vmul.f32 %v1531, %v1531
      %v1987 = vmul.f32 %v1532, %v1532
      %v1988 = vmul.f32 %v1533, %v1533
      %v1989 = vmul.f32 %v1534, %v1534
      %v1990 = vmul.f32 %v1535, %v1535
      %v1991 = vmul.f32 %v1536, %v1536
      %v1992 = vmul.f32 %v1537, %v1537
      %v1993 = vmul.f32 %v1538, %v1538
      %v1994 = vmul.f32 %v1539, %v1539
      %v1995 = vmul.f32 %v1540, %v1540
      %v1996 = vmul.f32 %v1541, %v1541
      %v1997 = vmul.f32 %v1542, %v1542
      %v1998 = vmul.f32 %v1543, %v1543
      %v1999 = vmul.f32 %v1544, %v1544
      %v2000 = vmul.f32 %v1545, %v1545
      %v2001 = vmul.f32 %v1546, %v1546
      %v2002 = vmul.f32 %v1547, %v1547
      %v2003 = vmul.f32 %v1548, %v1548
      %v2004 = vmul.f32 %v1549, %v1549
      %v2005 = vmul.f32 %v1550, %v1550
      %v2006 = vmul.f32 %v1551, %v1551
      %v2007 = vmul.f32 %v1552, %v1552
      %v2008 = vmul.f32 %v1553, %v1553
      %v2009 = vmul.f32 %v1554, %v1554
      %v2010 = vmul.f32 %v1555, %v1555
      %v2011 = vmul.f32 %v1556, %v1556
      %v2012 = vmul.f32 %v1557, %v1557
      %v2013 = vmul.f32 %v1558, %v1558
      %v2014 = vmul.f32 %v1559, %v1559
      %v2015 = vmul.f32 %v1560, %v1560
      %v2016 = vmul.f32 %v1561, %v1561
      %v2017 = vmul.f32 %v1562, %v1562
      %v2018 = vmul.f32 %v1563, %v1563
      %v2019 = vmul.f32 %v1564, %v1564
      %v2020 = vmul.f32 %v1565, %v1565
      %v2021 = vmul.f32 %v1566, %v1566
      %v2022 = vmul.f32 %v1567, %v1567
      %v2023 = vmul.f32 %v1568, %v1568
      %v2024 = vmul.f32 %v1569, %v1569
      %v2025 = vmul.f32 %v1570, %v1570
      %v2026 = vmul.f32 %v1571, %v1571
      %v2027 = vmul.f32 %v1572, %v1572
      %v2028 = vmul.f32 %v1573, %v1573
      %v2029 = vmul.f32 %v1574, %v1574
      %v2030 = vmul.f32 %v1575, %v1575
      %v2031 = vadd.f32 %v1967, %v1968
      %v2032 = vadd.f32 %v2031, %v1969
      %v2033 = vadd.f32 %v2032, %v1970
      %v2034 = vadd.f32 %v2033, %v1971
      %v2035 = vadd.f32 %v2034, %v1972
      %v2036 = vadd.f32 %v2035, %v1973
      %v2037 = vadd.f32 %v2036, %v1974
      %v2038 = vadd.f32 %v2037, %v1975
      %v2039 = vadd.f32 %v2038, %v1976
      %v2040 = vadd.f32 %v2039, %v1977
      %v2041 = vadd.f32 %v2040, %v1978
      %v2042 = vadd.f32 %v2041, %v1979
      %v2043 = vadd.f32 %v2042, %v1980
      %v2044 = vadd.f32 %v2043, %v1981
      %v2045 = vadd.f32 %v2044, %v1982
      %v2046 = vadd.f32 %v2045, %v1983
      %v2047 = vadd.f32 %v2046, %v1984
      %v2048 = vadd.f32 %v2047, %v1985
      %v2049 = vadd.f32 %v2048, %v1986
      %v2050 = vadd.f32 %v2049, %v1987
      %v2051 = vadd.f32 %v2050, %v1988
      %v2052 = vadd.f32 %v2051, %v1989
      %v2053 = vadd.f32 %v2052, %v1990
      %v2054 = vadd.f32 %v2053, %v1991
      %v2055 = vadd.f32 %v2054, %v1992
      %v2056 = vadd.f32 %v2055, %v1993
      %v2057 = vadd.f32 %v2056, %v1994
      %v2058 = vadd.f32 %v2057, %v1995
      %v2059 = vadd.f32 %v2058, %v1996
      %v2060 = vadd.f32 %v2059, %v1997
      %v2061 = vadd.f32 %v2060, %v1998
      %v2062 = vadd.f32 %v2061, %v1999
      %v2063 = vadd.f32 %v2062, %v2000
      %v2064 = vadd.f32 %v2063, %v2001
      %v2065 = vadd.f32 %v2064, %v2002
      %v2066 = vadd.f32 %v2065, %v2003
      %v2067 = vadd.f32 %v2066, %v2004
      %v2068 = vadd.f32 %v2067, %v2005
      %v2069 = vadd.f32 %v2068, %v2006
      %v2070 = vadd.f32 %v2069, %v2007
      %v2071 = vadd.f32 %v2070, %v2008
      %v2072 = vadd.f32 %v2071, %v2009
      %v2073 = vadd.f32 %v2072, %v2010
      %v2074 = vadd.f32 %v2073, %v2011
      %v2075 = vadd.f32 %v2074, %v2012
      %v2076 = vadd.f32 %v2075, %v2013
      %v2077 = vadd.f32 %v2076, %v2014
      %v2078 = vadd.f32 %v2077, %v2015
      %v2079 = vadd.f32 %v2078, %v2016
      %v2080 = vadd.f32 %v2079, %v2017
      %v2081 = vadd.f32 %v2080, %v2018
      %v2082 = vadd.f32 %v2081, %v2019
      %v2083 = vadd.f32 %v2082, %v2020
      %v2084 = vadd.f32 %v2083, %v2021
      %v2085 = vadd.f32 %v2084, %v2022
      %v2086 = vadd.f32 %v2085, %v2023
      %v2087 = vadd.f32 %v2086, %v2024
      %v2088 = vadd.f32 %v2087, %v2025
      %v2089 = vadd.f32 %v2088, %v2026
      %v2090 = vadd.f32 %v2089, %v2027
      %v2091 = vadd.f32 %v2090, %v2028
      %v2092 = vadd.f32 %v2091, %v2029
      %v2093 = vadd.f32 %v2092, %v2030
      %v2094 = vrot.slane %v2093, 4
      %v2095 = vadd.f32 %v2093, %v2094
      %v2096 = vrot.slane %v2095, 2
      %v2097 = vadd.f32 %v2095, %v2096
      %v2098 = vrot.slane %v2097, 1
      %v2099 = vadd.f32 %v2097, %v2098
      %2100 = vst [vmem:[%s287 + $0x1] sm:$0x1] %v2099
      %s2101 = smul.u32 64, %s18
      %p2102 = scmp.lt.s32.totalorder %s2101, 127
      %s2103 = scalar_select %p2102, %s2101, 127
      %s2104 = smul.addr %s2103, 4
      %s2105 = scalar_lea.vmem %s5, %s2104
      %p2106 = scmp.lt.s32.totalorder %s18, 1
      %s2107 = scalar_select %p2106, %s18, 1
      %s2108 = smul.addr %s2107, 8
      %s2109 = scalar_lea.vmem %s6, %s2108
      // Predicated region
      $region41: #{dgnn_layer_forward.4} parent=39 // pred_check
        %p2110 = pneg %p151
      $region42: #{dgnn_layer_forward.4} parent=39 // pred_check_branch
        %2112 = sbr.rel (%p2110) target = $region44
      $region43: #{dgnn_layer_forward.4} parent=39 // pred_region
        %s2113 = smul.u32 64, %s18
      $region44: #{dgnn_layer_forward.4} parent=39 // pred_fallthru
        _
      // Predicated region
      $region45: #{dgnn_layer_forward.4} parent=39 // pred_check
        %p2114 = pneg %p177
      $region46: #{dgnn_layer_forward.4} parent=39 // pred_check_branch
        %2116 = sbr.rel (%p2114) target = $region48
      $region47: #{dgnn_layer_forward.4} parent=39 // pred_region
        _
      $region48: #{dgnn_layer_forward.4} parent=39 // pred_fallthru
        _
    $region40: #{dgnn_layer_forward.4} parent=5 // pred_fallthru
      _
    %p2117 = scmp.le.s32.totalorder 2, %s13
    // Predicated region
    $region49: #{dgnn_layer_forward.4} parent=5 // pred_check
      %p2118 = pneg %p2117
    $region50: #{dgnn_layer_forward.4} parent=5 // pred_check_branch
      %2120 = sbr.rel (%p2118) target = $region52
    $region51: #{dgnn_layer_forward.4} parent=5 // pred_region
      %s2121 = ssub.s32 %s13, 2
      // Predicated region
      $region53: #{dgnn_layer_forward.4} parent=51 // pred_check
        %p2122 = pneg %p157
      $region54: #{dgnn_layer_forward.4} parent=51 // pred_check_branch
        %2124 = sbr.rel (%p2122) target = $region56
      $region55: #{dgnn_layer_forward.4} parent=51 // pred_region
        %s2125 = smul.u32 64, %s19
        %p2126 = scmp.lt.s32.totalorder %s2125, 127
        %s2127 = scalar_select %p2126, %s2125, 127
        %s2128 = smul.addr %s2127, 4
        %s2129 = scalar_lea.vmem %s5, %s2128
      $region56: #{dgnn_layer_forward.4} parent=51 // pred_fallthru
        _
      // Predicated region
      $region57: #{dgnn_layer_forward.4} parent=51 // pred_check
        %p2130 = pneg %p183
      $region58: #{dgnn_layer_forward.4} parent=51 // pred_check_branch
        %2132 = sbr.rel (%p2130) target = $region60
      $region59: #{dgnn_layer_forward.4} parent=51 // pred_region
        %p2133 = scmp.lt.s32.totalorder %s19, 1
        %s2134 = scalar_select %p2133, %s19, 1
        %s2135 = smul.addr %s2134, 8
        %s2136 = scalar_lea.vmem %s6, %s2135
      $region60: #{dgnn_layer_forward.4} parent=51 // pred_fallthru
        _
    $region52: #{dgnn_layer_forward.4} parent=5 // pred_fallthru
      _
  $region6: #{dgnn_layer_forward.4} parent=0 // loop_footer
    %s17 = sadd.s32 1, %s13
  $region7: #{dgnn_layer_forward.4} parent=0 // loop_footer_branch
    %12 = sbr.rel target = $region3
  $region8: #{dgnn_layer_forward.4} parent=0 // loop_exit
    _

// kernel: dgnn_layer_forward.3
$region0: #{dgnn_layer_forward.3}
  #allocation0 [shape = 'u32[]', space=smem, size = 0x4, offset = 0x4, fixed_abs, tag = 'smem constant byte address 0x4 - core index']
  #allocation1 [shape = 'u32[144,128]{1,0:T(1,128)}', space=vmem, size = 0x12000, scoped, tag = 'internal scratch']
  %s0 = inlined_call_operand.vmem [shape: s8[1024,1024], index: 0, kind: input, shape index: {}]
  %s1 = inlined_call_operand.vmem [shape: bf16[1024,128], index: 1, kind: input, shape index: {}]
  %s2 = inlined_call_operand.vmem [shape: bf16[1024,128], index: 2, kind: output, shape index: {0}]
  %s3 = inlined_call_operand.vmem [shape: f32[16,128], index: 3, kind: output, shape index: {1}]
  %4 = xla_tuple %s2, %s3
  %s5 = sld [smem:[#allocation0]]
  $region49: #{dgnn_layer_forward.3} parent=0
    _
  %s7 = ssub.s32 1, %s5
  %s8 = scalar_select 0, %s7, %s5
  loop: start=0, step=1, limit=4
  $region2: #{dgnn_layer_forward.3} parent=0 // loop_pre_header
    _
  $region3: #{dgnn_layer_forward.3} parent=0 // loop_header
    %s10 = sphi 0, %s14
    %p11 = scmp.ge.s32.totalorder %s10, 4
    %s20 = sphi 0, %s22
    %s23 = sphi 0, %s20
    %s24 = sphi 0, %s23
    %s40 = sphi 0, %s24
    %s44 = sphi 0, %s44
    %s46 = sphi 0, %s44
    %s47 = sphi 0, %s46
    %s61 = sphi 0, %s47
    %s67 = sphi 0, %s69
    %s70 = sphi 0, %s67
    %s71 = sphi 0, %s70
    %s87 = sphi 0, %s71
    %s93 = sphi 0, %s95
    %s96 = sphi 0, %s93
    %s97 = sphi 0, %s96
    %s113 = sphi 0, %s97
  $region4: #{dgnn_layer_forward.3} parent=0 // loop_header_branch
    %13 = sbr.rel (%p11) target = $region8
  $region5: #{dgnn_layer_forward.3} parent=0 // loop_body
    %s15 = ssub.s32 %s10, 1
    %s16 = ssub.s32 %s10, 2
    %s17 = sadd.s32 %s10, 1
    %s18 = ssub.s32 %s10, %s17
    %p19 = scmp.eq.s32.totalorder %s18, 0
    %s21 = sadd.s32 %s20, 1
    %s22 = scalar_select %p19, %s20, %s21
    %p25 = pneg %p19
    %p26 = scmp.eq.s32.totalorder %s10, 1
    %p27 = por %p25, %p26
    %p28 = scmp.ne.s32.totalorder %s20, %s23
    %p29 = scmp.eq.s32.totalorder %s10, 0
    %p30 = por %p28, %p29
    %p31 = scmp.ne.s32.totalorder %s20, %s23
    %p32 = scmp.eq.s32.totalorder %s15, 1
    %p33 = por %p31, %p32
    %p34 = scmp.ne.s32.totalorder %s23, %s24
    %p35 = scmp.eq.s32.totalorder %s15, 0
    %p36 = por %p34, %p35
    %p37 = scmp.ne.s32.totalorder %s23, %s24
    %p38 = scmp.eq.s32.totalorder %s16, 1
    %p39 = por %p37, %p38
    %p41 = scmp.ne.s32.totalorder %s24, %s40
    %p42 = scmp.eq.s32.totalorder %s16, 0
    %p43 = por %p41, %p42
    %s45 = sadd.s32 %s44, 1
    %p48 = scmp.eq.s32.totalorder %s10, 1
    %p49 = scmp.ne.s32.totalorder %s44, %s46
    %p50 = scmp.eq.s32.totalorder %s10, 0
    %p51 = por %p49, %p50
    %p52 = scmp.ne.s32.totalorder %s44, %s46
    %p53 = scmp.eq.s32.totalorder %s15, 1
    %p54 = por %p52, %p53
    %p55 = scmp.ne.s32.totalorder %s46, %s47
    %p56 = scmp.eq.s32.totalorder %s15, 0
    %p57 = por %p55, %p56
    %p58 = scmp.ne.s32.totalorder %s46, %s47
    %p59 = scmp.eq.s32.totalorder %s16, 1
    %p60 = por %p58, %p59
    %p62 = scmp.ne.s32.totalorder %s47, %s61
    %p63 = scmp.eq.s32.totalorder %s16, 0
    %p64 = por %p62, %p63
    %s65 = ssub.s32 %s10, %s17
    %p66 = scmp.eq.s32.totalorder %s65, 0
    %s68 = sadd.s32 %s67, 1
    %s69 = scalar_select %p66, %s67, %s68
    %p72 = pneg %p66
    %p73 = scmp.eq.s32.totalorder %s10, 1
    %p74 = por %p72, %p73
    %p75 = scmp.ne.s32.totalorder %s67, %s70
    %p76 = scmp.eq.s32.totalorder %s10, 0
    %p77 = por %p75, %p76
    %p78 = scmp.ne.s32.totalorder %s67, %s70
    %p79 = scmp.eq.s32.totalorder %s15, 1
    %p80 = por %p78, %p79
    %p81 = scmp.ne.s32.totalorder %s70, %s71
    %p82 = scmp.eq.s32.totalorder %s15, 0
    %p83 = por %p81, %p82
    %p84 = scmp.ne.s32.totalorder %s70, %s71
    %p85 = scmp.eq.s32.totalorder %s16, 1
    %p86 = por %p84, %p85
    %p88 = scmp.ne.s32.totalorder %s71, %s87
    %p89 = scmp.eq.s32.totalorder %s16, 0
    %p90 = por %p88, %p89
    %s91 = ssub.s32 %s10, %s17
    %p92 = scmp.eq.s32.totalorder %s91, 0
    %s94 = sadd.s32 %s93, 1
    %s95 = scalar_select %p92, %s93, %s94
    %p98 = pneg %p92
    %p99 = scmp.eq.s32.totalorder %s10, 1
    %p100 = por %p98, %p99
    %p101 = scmp.ne.s32.totalorder %s93, %s96
    %p102 = scmp.eq.s32.totalorder %s10, 0
    %p103 = por %p101, %p102
    %p104 = scmp.ne.s32.totalorder %s93, %s96
    %p105 = scmp.eq.s32.totalorder %s15, 1
    %p106 = por %p104, %p105
    %p107 = scmp.ne.s32.totalorder %s96, %s97
    %p108 = scmp.eq.s32.totalorder %s15, 0
    %p109 = por %p107, %p108
    %p110 = scmp.ne.s32.totalorder %s96, %s97
    %p111 = scmp.eq.s32.totalorder %s16, 1
    %p112 = por %p110, %p111
    %p114 = scmp.ne.s32.totalorder %s97, %s113
    %p115 = scmp.eq.s32.totalorder %s16, 0
    %p116 = por %p114, %p115
    %p117 = scmp.le.s32.totalorder 1, %s10
    %p118 = scmp.lt.s32.totalorder %s10, 3
    %p119 = pnand %p117, %p118
    %p120 = pneg %p119
    // Predicated region
    $region9: #{dgnn_layer_forward.3} parent=5 // pred_check
      _
    $region10: #{dgnn_layer_forward.3} parent=5 // pred_check_branch
      %122 = sbr.rel (%p119) target = $region12
    $region11: #{dgnn_layer_forward.3} parent=5 // pred_region
      %s123 = ssub.s32 %s10, 1
      // Predicated region
      $region13: #{dgnn_layer_forward.3} parent=11 // pred_check
        %p124 = pneg %p57
      $region14: #{dgnn_layer_forward.3} parent=11 // pred_check_branch
        %126 = sbr.rel (%p124) target = $region16
      $region15: #{dgnn_layer_forward.3} parent=11 // pred_region
        _
      $region16: #{dgnn_layer_forward.3} parent=11 // pred_fallthru
        _
    $region12: #{dgnn_layer_forward.3} parent=5 // pred_fallthru
      _
    %p127 = scmp.lt.s32.totalorder %s10, 2
    // Predicated region
    $region17: #{dgnn_layer_forward.3} parent=5 // pred_check
      %p128 = pneg %p127
    $region18: #{dgnn_layer_forward.3} parent=5 // pred_check_branch
      %130 = sbr.rel (%p128) target = $region20
    $region19: #{dgnn_layer_forward.3} parent=5 // pred_region
      // Predicated region
      $region21: #{dgnn_layer_forward.3} parent=19 // pred_check
        %p131 = pneg %p30
      $region22: #{dgnn_layer_forward.3} parent=19 // pred_check_branch
        %133 = sbr.rel (%p131) target = $region24
      $region23: #{dgnn_layer_forward.3} parent=19 // pred_region
        %s134 = smul.u32 16, %s10
        %p135 = scmp.lt.s32.totalorder %s134, 31
        %s136 = scalar_select %p135, %s134, 31
        %s137 = smul.addr %s136, 8
        %s138 = smul.addr %s137, 8
        %s139 = scalar_lea.vmem %s0, %s138
        %s140 = smul.u32 16, %s10
      $region24: #{dgnn_layer_forward.3} parent=19 // pred_fallthru
        _
    $region20: #{dgnn_layer_forward.3} parent=5 // pred_fallthru
      _
    %p141 = scmp.le.s32.totalorder 1, %s10
    %p142 = scmp.lt.s32.totalorder %s10, 3
    %p143 = pnand %p141, %p142
    %p144 = pneg %p143
    // Predicated region
    $region25: #{dgnn_layer_forward.3} parent=5 // pred_check
      _
    $region26: #{dgnn_layer_forward.3} parent=5 // pred_check_branch
      %146 = sbr.rel (%p143) target = $region28
    $region27: #{dgnn_layer_forward.3} parent=5 // pred_region
      %s147 = ssub.s32 %s10, 1
      %s148 = smul.u32 16, %s15
      %p149 = scmp.lt.s32.totalorder %s148, 31
      %s150 = scalar_select %p149, %s148, 31
      %s151 = smul.addr %s150, 8
      %s152 = smul.addr %s151, 8
      %s153 = scalar_lea.vmem %s0, %s152
      %p154 = pneg %p36
      %p155 = pneg %p33
      %p156 = pneg %p57
      %p157 = pneg %p54
      %p158 = pneg %p83
      %p159 = pneg %p80
      %s160 = smul.u32 64, %s15
      %p161 = scmp.lt.s32.totalorder %s160, 127
      %s162 = scalar_select %p161, %s160, 127
      %s163 = smul.addr %s162, 4
      %s164 = scalar_lea.vmem %s2, %s163
      %p165 = pneg %p109
      %p166 = pneg %p106
      %p167 = scmp.lt.s32.totalorder %s15, 1
      %s168 = scalar_select %p167, %s15, 1
      %s169 = smul.addr %s168, 8
      %s170 = scalar_lea.vmem %s3, %s169
      %s171 = smul.u32 16, %s15
      %p172 = scmp.lt.s32.totalorder %s171, 31
      %s173 = scalar_select %p172, %s171, 31
      %s174 = smul.addr %s173, 8
      %s175 = smul.addr %s174, 8
      %s176 = scalar_lea.vmem %s0, %s175
      %s177 = smul.u32 16, %s15
      %s178 = smul.u32 64, %s15
      %p179 = scmp.lt.s32.totalorder %s178, 127
      %s180 = scalar_select %p179, %s178, 127
      %s181 = smul.addr %s180, 4
      %s182 = scalar_lea.vmem %s2, %s181
      %s183 = smul.u32 64, %s15
      %p184 = scmp.lt.s32.totalorder %s15, 1
      %s185 = scalar_select %p184, %s15, 1
      %s186 = smul.addr %s185, 8
      %s187 = scalar_lea.vmem %s3, %s186
      %v189 = vld [vmem:[%s176] sm:$0xff]
      %v190 = vld [vmem:[%s176 + $0x8] sm:$0xff]
      %v191 = vld [vmem:[%s176 + $0x10] sm:$0xff]
      %v192 = vld [vmem:[%s176 + $0x18] sm:$0xff]
      %v193 = vld [vmem:[%s176 + $0x20] sm:$0xff]
      %v194 = vld [vmem:[%s176 + $0x28] sm:$0xff]
      %v195 = vld [vmem:[%s176 + $0x30] sm:$0xff]
      %v196 = vld [vmem:[%s176 + $0x38] sm:$0xff]
      %v197 = vld [vmem:[%s176 + $0x40] sm:$0xff]
      %v198 = vld [vmem:[%s176 + $0x48] sm:$0xff]
      %v199 = vld [vmem:[%s176 + $0x50] sm:$0xff]
      %v200 = vld [vmem:[%s176 + $0x58] sm:$0xff]
      %v201 = vld [vmem:[%s176 + $0x60] sm:$0xff]
      %v202 = vld [vmem:[%s176 + $0x68] sm:$0xff]
      %v203 = vld [vmem:[%s176 + $0x70] sm:$0xff]
      %v204 = vld [vmem:[%s176 + $0x78] sm:$0xff]
      %v205 = vld [vmem:[%s176 + $0x80] sm:$0xff]
      %v206 = vld [vmem:[%s176 + $0x88] sm:$0xff]
      %v207 = vld [vmem:[%s176 + $0x90] sm:$0xff]
      %v208 = vld [vmem:[%s176 + $0x98] sm:$0xff]
      %v209 = vld [vmem:[%s176 + $0xa0] sm:$0xff]
      %v210 = vld [vmem:[%s176 + $0xa8] sm:$0xff]
      %v211 = vld [vmem:[%s176 + $0xb0] sm:$0xff]
      %v212 = vld [vmem:[%s176 + $0xb8] sm:$0xff]
      %v213 = vld [vmem:[%s176 + $0xc0] sm:$0xff]
      %v214 = vld [vmem:[%s176 + $0xc8] sm:$0xff]
      %v215 = vld [vmem:[%s176 + $0xd0] sm:$0xff]
      %v216 = vld [vmem:[%s176 + $0xd8] sm:$0xff]
      %v217 = vld [vmem:[%s176 + $0xe0] sm:$0xff]
      %v218 = vld [vmem:[%s176 + $0xe8] sm:$0xff]
      %v219 = vld [vmem:[%s176 + $0xf0] sm:$0xff]
      %v220 = vld [vmem:[%s176 + $0xf8] sm:$0xff]
      %v221 = vld [vmem:[%s176 + $0x100] sm:$0xff]
      %v222 = vld [vmem:[%s176 + $0x108] sm:$0xff]
      %v223 = vld [vmem:[%s176 + $0x110] sm:$0xff]
      %v224 = vld [vmem:[%s176 + $0x118] sm:$0xff]
      %v225 = vld [vmem:[%s176 + $0x120] sm:$0xff]
      %v226 = vld [vmem:[%s176 + $0x128] sm:$0xff]
      %v227 = vld [vmem:[%s176 + $0x130] sm:$0xff]
      %v228 = vld [vmem:[%s176 + $0x138] sm:$0xff]
      %v229 = vld [vmem:[%s176 + $0x140] sm:$0xff]
      %v230 = vld [vmem:[%s176 + $0x148] sm:$0xff]
      %v231 = vld [vmem:[%s176 + $0x150] sm:$0xff]
      %v232 = vld [vmem:[%s176 + $0x158] sm:$0xff]
      %v233 = vld [vmem:[%s176 + $0x160] sm:$0xff]
      %v234 = vld [vmem:[%s176 + $0x168] sm:$0xff]
      %v235 = vld [vmem:[%s176 + $0x170] sm:$0xff]
      %v236 = vld [vmem:[%s176 + $0x178] sm:$0xff]
      %v237 = vld [vmem:[%s176 + $0x180] sm:$0xff]
      %v238 = vld [vmem:[%s176 + $0x188] sm:$0xff]
      %v239 = vld [vmem:[%s176 + $0x190] sm:$0xff]
      %v240 = vld [vmem:[%s176 + $0x198] sm:$0xff]
      %v241 = vld [vmem:[%s176 + $0x1a0] sm:$0xff]
      %v242 = vld [vmem:[%s176 + $0x1a8] sm:$0xff]
      %v243 = vld [vmem:[%s176 + $0x1b0] sm:$0xff]
      %v244 = vld [vmem:[%s176 + $0x1b8] sm:$0xff]
      %v245 = vld [vmem:[%s176 + $0x1c0] sm:$0xff]
      %v246 = vld [vmem:[%s176 + $0x1c8] sm:$0xff]
      %v247 = vld [vmem:[%s176 + $0x1d0] sm:$0xff]
      %v248 = vld [vmem:[%s176 + $0x1d8] sm:$0xff]
      %v249 = vld [vmem:[%s176 + $0x1e0] sm:$0xff]
      %v250 = vld [vmem:[%s176 + $0x1e8] sm:$0xff]
      %v251 = vld [vmem:[%s176 + $0x1f0] sm:$0xff]
      %v252 = vld [vmem:[%s176 + $0x1f8] sm:$0xff]
      %v253 = vld [vmem:[%s176 + $0x200] sm:$0xff]
      %v254 = vld [vmem:[%s176 + $0x208] sm:$0xff]
      %v255 = vld [vmem:[%s176 + $0x210] sm:$0xff]
      %v256 = vld [vmem:[%s176 + $0x218] sm:$0xff]
      %v257 = vld [vmem:[%s176 + $0x220] sm:$0xff]
      %v258 = vld [vmem:[%s176 + $0x228] sm:$0xff]
      %v259 = vld [vmem:[%s176 + $0x230] sm:$0xff]
      %v260 = vld [vmem:[%s176 + $0x238] sm:$0xff]
      %v261 = vld [vmem:[%s176 + $0x240] sm:$0xff]
      %v262 = vld [vmem:[%s176 + $0x248] sm:$0xff]
      %v263 = vld [vmem:[%s176 + $0x250] sm:$0xff]
      %v264 = vld [vmem:[%s176 + $0x258] sm:$0xff]
      %v265 = vld [vmem:[%s176 + $0x260] sm:$0xff]
      %v266 = vld [vmem:[%s176 + $0x268] sm:$0xff]
      %v267 = vld [vmem:[%s176 + $0x270] sm:$0xff]
      %v268 = vld [vmem:[%s176 + $0x278] sm:$0xff]
      %v269 = vld [vmem:[%s176 + $0x280] sm:$0xff]
      %v270 = vld [vmem:[%s176 + $0x288] sm:$0xff]
      %v271 = vld [vmem:[%s176 + $0x290] sm:$0xff]
      %v272 = vld [vmem:[%s176 + $0x298] sm:$0xff]
      %v273 = vld [vmem:[%s176 + $0x2a0] sm:$0xff]
      %v274 = vld [vmem:[%s176 + $0x2a8] sm:$0xff]
      %v275 = vld [vmem:[%s176 + $0x2b0] sm:$0xff]
      %v276 = vld [vmem:[%s176 + $0x2b8] sm:$0xff]
      %v277 = vld [vmem:[%s176 + $0x2c0] sm:$0xff]
      %v278 = vld [vmem:[%s176 + $0x2c8] sm:$0xff]
      %v279 = vld [vmem:[%s176 + $0x2d0] sm:$0xff]
      %v280 = vld [vmem:[%s176 + $0x2d8] sm:$0xff]
      %v281 = vld [vmem:[%s176 + $0x2e0] sm:$0xff]
      %v282 = vld [vmem:[%s176 + $0x2e8] sm:$0xff]
      %v283 = vld [vmem:[%s176 + $0x2f0] sm:$0xff]
      %v284 = vld [vmem:[%s176 + $0x2f8] sm:$0xff]
      %v285 = vld [vmem:[%s176 + $0x300] sm:$0xff]
      %v286 = vld [vmem:[%s176 + $0x308] sm:$0xff]
      %v287 = vld [vmem:[%s176 + $0x310] sm:$0xff]
      %v288 = vld [vmem:[%s176 + $0x318] sm:$0xff]
      %v289 = vld [vmem:[%s176 + $0x320] sm:$0xff]
      %v290 = vld [vmem:[%s176 + $0x328] sm:$0xff]
      %v291 = vld [vmem:[%s176 + $0x330] sm:$0xff]
      %v292 = vld [vmem:[%s176 + $0x338] sm:$0xff]
      %v293 = vld [vmem:[%s176 + $0x340] sm:$0xff]
      %v294 = vld [vmem:[%s176 + $0x348] sm:$0xff]
      %v295 = vld [vmem:[%s176 + $0x350] sm:$0xff]
      %v296 = vld [vmem:[%s176 + $0x358] sm:$0xff]
      %v297 = vld [vmem:[%s176 + $0x360] sm:$0xff]
      %v298 = vld [vmem:[%s176 + $0x368] sm:$0xff]
      %v299 = vld [vmem:[%s176 + $0x370] sm:$0xff]
      %v300 = vld [vmem:[%s176 + $0x378] sm:$0xff]
      %v301 = vld [vmem:[%s176 + $0x380] sm:$0xff]
      %v302 = vld [vmem:[%s176 + $0x388] sm:$0xff]
      %v303 = vld [vmem:[%s176 + $0x390] sm:$0xff]
      %v304 = vld [vmem:[%s176 + $0x398] sm:$0xff]
      %v305 = vld [vmem:[%s176 + $0x3a0] sm:$0xff]
      %v306 = vld [vmem:[%s176 + $0x3a8] sm:$0xff]
      %v307 = vld [vmem:[%s176 + $0x3b0] sm:$0xff]
      %v308 = vld [vmem:[%s176 + $0x3b8] sm:$0xff]
      %v309 = vld [vmem:[%s176 + $0x3c0] sm:$0xff]
      %v310 = vld [vmem:[%s176 + $0x3c8] sm:$0xff]
      %v311 = vld [vmem:[%s176 + $0x3d0] sm:$0xff]
      %v312 = vld [vmem:[%s176 + $0x3d8] sm:$0xff]
      %v313 = vld [vmem:[%s176 + $0x3e0] sm:$0xff]
      %v314 = vld [vmem:[%s176 + $0x3e8] sm:$0xff]
      %v315 = vld [vmem:[%s176 + $0x3f0] sm:$0xff]
      %v316 = vld [vmem:[%s176 + $0x3f8] sm:$0xff]
      %v317 = vunpack.c.l.s8.bf16 %v189
      %v318 = vunpack.c.l.s8.bf16 %v190
      %v319 = vunpack.c.l.s8.bf16 %v191
      %v320 = vunpack.c.l.s8.bf16 %v192
      %v321 = vunpack.c.l.s8.bf16 %v193
      %v322 = vunpack.c.l.s8.bf16 %v194
      %v323 = vunpack.c.l.s8.bf16 %v195
      %v324 = vunpack.c.l.s8.bf16 %v196
      %v325 = vunpack.c.h.s8.bf16 %v189
      %v326 = vunpack.c.h.s8.bf16 %v190
      %v327 = vunpack.c.h.s8.bf16 %v191
      %v328 = vunpack.c.h.s8.bf16 %v192
      %v329 = vunpack.c.h.s8.bf16 %v193
      %v330 = vunpack.c.h.s8.bf16 %v194
      %v331 = vunpack.c.h.s8.bf16 %v195
      %v332 = vunpack.c.h.s8.bf16 %v196
      %v333 = vunpack.c.l.s8.bf16 %v197
      %v334 = vunpack.c.l.s8.bf16 %v198
      %v335 = vunpack.c.l.s8.bf16 %v199
      %v336 = vunpack.c.l.s8.bf16 %v200
      %v337 = vunpack.c.l.s8.bf16 %v201
      %v338 = vunpack.c.l.s8.bf16 %v202
      %v339 = vunpack.c.l.s8.bf16 %v203
      %v340 = vunpack.c.l.s8.bf16 %v204
      %v341 = vunpack.c.h.s8.bf16 %v197
      %v342 = vunpack.c.h.s8.bf16 %v198
      %v343 = vunpack.c.h.s8.bf16 %v199
      %v344 = vunpack.c.h.s8.bf16 %v200
      %v345 = vunpack.c.h.s8.bf16 %v201
      %v346 = vunpack.c.h.s8.bf16 %v202
      %v347 = vunpack.c.h.s8.bf16 %v203
      %v348 = vunpack.c.h.s8.bf16 %v204
      %v349 = vunpack.c.l.s8.bf16 %v205
      %v350 = vunpack.c.l.s8.bf16 %v206
      %v351 = vunpack.c.l.s8.bf16 %v207
      %v352 = vunpack.c.l.s8.bf16 %v208
      %v353 = vunpack.c.l.s8.bf16 %v209
      %v354 = vunpack.c.l.s8.bf16 %v210
      %v355 = vunpack.c.l.s8.bf16 %v211
      %v356 = vunpack.c.l.s8.bf16 %v212
      %v357 = vunpack.c.h.s8.bf16 %v205
      %v358 = vunpack.c.h.s8.bf16 %v206
      %v359 = vunpack.c.h.s8.bf16 %v207
      %v360 = vunpack.c.h.s8.bf16 %v208
      %v361 = vunpack.c.h.s8.bf16 %v209
      %v362 = vunpack.c.h.s8.bf16 %v210
      %v363 = vunpack.c.h.s8.bf16 %v211
      %v364 = vunpack.c.h.s8.bf16 %v212
      %v365 = vunpack.c.l.s8.bf16 %v213
      %v366 = vunpack.c.l.s8.bf16 %v214
      %v367 = vunpack.c.l.s8.bf16 %v215
      %v368 = vunpack.c.l.s8.bf16 %v216
      %v369 = vunpack.c.l.s8.bf16 %v217
      %v370 = vunpack.c.l.s8.bf16 %v218
      %v371 = vunpack.c.l.s8.bf16 %v219
      %v372 = vunpack.c.l.s8.bf16 %v220
      %v373 = vunpack.c.h.s8.bf16 %v213
      %v374 = vunpack.c.h.s8.bf16 %v214
      %v375 = vunpack.c.h.s8.bf16 %v215
      %v376 = vunpack.c.h.s8.bf16 %v216
      %v377 = vunpack.c.h.s8.bf16 %v217
      %v378 = vunpack.c.h.s8.bf16 %v218
      %v379 = vunpack.c.h.s8.bf16 %v219
      %v380 = vunpack.c.h.s8.bf16 %v220
      %v381 = vunpack.c.l.s8.bf16 %v221
      %v382 = vunpack.c.l.s8.bf16 %v222
      %v383 = vunpack.c.l.s8.bf16 %v223
      %v384 = vunpack.c.l.s8.bf16 %v224
      %v385 = vunpack.c.l.s8.bf16 %v225
      %v386 = vunpack.c.l.s8.bf16 %v226
      %v387 = vunpack.c.l.s8.bf16 %v227
      %v388 = vunpack.c.l.s8.bf16 %v228
      %v389 = vunpack.c.h.s8.bf16 %v221
      %v390 = vunpack.c.h.s8.bf16 %v222
      %v391 = vunpack.c.h.s8.bf16 %v223
      %v392 = vunpack.c.h.s8.bf16 %v224
      %v393 = vunpack.c.h.s8.bf16 %v225
      %v394 = vunpack.c.h.s8.bf16 %v226
      %v395 = vunpack.c.h.s8.bf16 %v227
      %v396 = vunpack.c.h.s8.bf16 %v228
      %v397 = vunpack.c.l.s8.bf16 %v229
      %v398 = vunpack.c.l.s8.bf16 %v230
      %v399 = vunpack.c.l.s8.bf16 %v231
      %v400 = vunpack.c.l.s8.bf16 %v232
      %v401 = vunpack.c.l.s8.bf16 %v233
      %v402 = vunpack.c.l.s8.bf16 %v234
      %v403 = vunpack.c.l.s8.bf16 %v235
      %v404 = vunpack.c.l.s8.bf16 %v236
      %v405 = vunpack.c.h.s8.bf16 %v229
      %v406 = vunpack.c.h.s8.bf16 %v230
      %v407 = vunpack.c.h.s8.bf16 %v231
      %v408 = vunpack.c.h.s8.bf16 %v232
      %v409 = vunpack.c.h.s8.bf16 %v233
      %v410 = vunpack.c.h.s8.bf16 %v234
      %v411 = vunpack.c.h.s8.bf16 %v235
      %v412 = vunpack.c.h.s8.bf16 %v236
      %v413 = vunpack.c.l.s8.bf16 %v237
      %v414 = vunpack.c.l.s8.bf16 %v238
      %v415 = vunpack.c.l.s8.bf16 %v239
      %v416 = vunpack.c.l.s8.bf16 %v240
      %v417 = vunpack.c.l.s8.bf16 %v241
      %v418 = vunpack.c.l.s8.bf16 %v242
      %v419 = vunpack.c.l.s8.bf16 %v243
      %v420 = vunpack.c.l.s8.bf16 %v244
      %v421 = vunpack.c.h.s8.bf16 %v237
      %v422 = vunpack.c.h.s8.bf16 %v238
      %v423 = vunpack.c.h.s8.bf16 %v239
      %v424 = vunpack.c.h.s8.bf16 %v240
      %v425 = vunpack.c.h.s8.bf16 %v241
      %v426 = vunpack.c.h.s8.bf16 %v242
      %v427 = vunpack.c.h.s8.bf16 %v243
      %v428 = vunpack.c.h.s8.bf16 %v244
      %v429 = vunpack.c.l.s8.bf16 %v245
      %v430 = vunpack.c.l.s8.bf16 %v246
      %v431 = vunpack.c.l.s8.bf16 %v247
      %v432 = vunpack.c.l.s8.bf16 %v248
      %v433 = vunpack.c.l.s8.bf16 %v249
      %v434 = vunpack.c.l.s8.bf16 %v250
      %v435 = vunpack.c.l.s8.bf16 %v251
      %v436 = vunpack.c.l.s8.bf16 %v252
      %v437 = vunpack.c.h.s8.bf16 %v245
      %v438 = vunpack.c.h.s8.bf16 %v246
      %v439 = vunpack.c.h.s8.bf16 %v247
      %v440 = vunpack.c.h.s8.bf16 %v248
      %v441 = vunpack.c.h.s8.bf16 %v249
      %v442 = vunpack.c.h.s8.bf16 %v250
      %v443 = vunpack.c.h.s8.bf16 %v251
      %v444 = vunpack.c.h.s8.bf16 %v252
      %v445 = vunpack.c.l.s8.bf16 %v253
      %v446 = vunpack.c.l.s8.bf16 %v254
      %v447 = vunpack.c.l.s8.bf16 %v255
      %v448 = vunpack.c.l.s8.bf16 %v256
      %v449 = vunpack.c.l.s8.bf16 %v257
      %v450 = vunpack.c.l.s8.bf16 %v258
      %v451 = vunpack.c.l.s8.bf16 %v259
      %v452 = vunpack.c.l.s8.bf16 %v260
      %v453 = vunpack.c.h.s8.bf16 %v253
      %v454 = vunpack.c.h.s8.bf16 %v254
      %v455 = vunpack.c.h.s8.bf16 %v255
      %v456 = vunpack.c.h.s8.bf16 %v256
      %v457 = vunpack.c.h.s8.bf16 %v257
      %v458 = vunpack.c.h.s8.bf16 %v258
      %v459 = vunpack.c.h.s8.bf16 %v259
      %v460 = vunpack.c.h.s8.bf16 %v260
      %v461 = vunpack.c.l.s8.bf16 %v261
      %v462 = vunpack.c.l.s8.bf16 %v262
      %v463 = vunpack.c.l.s8.bf16 %v263
      %v464 = vunpack.c.l.s8.bf16 %v264
      %v465 = vunpack.c.l.s8.bf16 %v265
      %v466 = vunpack.c.l.s8.bf16 %v266
      %v467 = vunpack.c.l.s8.bf16 %v267
      %v468 = vunpack.c.l.s8.bf16 %v268
      %v469 = vunpack.c.h.s8.bf16 %v261
      %v470 = vunpack.c.h.s8.bf16 %v262
      %v471 = vunpack.c.h.s8.bf16 %v263
      %v472 = vunpack.c.h.s8.bf16 %v264
      %v473 = vunpack.c.h.s8.bf16 %v265
      %v474 = vunpack.c.h.s8.bf16 %v266
      %v475 = vunpack.c.h.s8.bf16 %v267
      %v476 = vunpack.c.h.s8.bf16 %v268
      %v477 = vunpack.c.l.s8.bf16 %v269
      %v478 = vunpack.c.l.s8.bf16 %v270
      %v479 = vunpack.c.l.s8.bf16 %v271
      %v480 = vunpack.c.l.s8.bf16 %v272
      %v481 = vunpack.c.l.s8.bf16 %v273
      %v482 = vunpack.c.l.s8.bf16 %v274
      %v483 = vunpack.c.l.s8.bf16 %v275
      %v484 = vunpack.c.l.s8.bf16 %v276
      %v485 = vunpack.c.h.s8.bf16 %v269
      %v486 = vunpack.c.h.s8.bf16 %v270
      %v487 = vunpack.c.h.s8.bf16 %v271
      %v488 = vunpack.c.h.s8.bf16 %v272
      %v489 = vunpack.c.h.s8.bf16 %v273
      %v490 = vunpack.c.h.s8.bf16 %v274
      %v491 = vunpack.c.h.s8.bf16 %v275
      %v492 = vunpack.c.h.s8.bf16 %v276
      %v493 = vunpack.c.l.s8.bf16 %v277
      %v494 = vunpack.c.l.s8.bf16 %v278
      %v495 = vunpack.c.l.s8.bf16 %v279
      %v496 = vunpack.c.l.s8.bf16 %v280
      %v497 = vunpack.c.l.s8.bf16 %v281
      %v498 = vunpack.c.l.s8.bf16 %v282
      %v499 = vunpack.c.l.s8.bf16 %v283
      %v500 = vunpack.c.l.s8.bf16 %v284
      %v501 = vunpack.c.h.s8.bf16 %v277
      %v502 = vunpack.c.h.s8.bf16 %v278
      %v503 = vunpack.c.h.s8.bf16 %v279
      %v504 = vunpack.c.h.s8.bf16 %v280
      %v505 = vunpack.c.h.s8.bf16 %v281
      %v506 = vunpack.c.h.s8.bf16 %v282
      %v507 = vunpack.c.h.s8.bf16 %v283
      %v508 = vunpack.c.h.s8.bf16 %v284
      %v509 = vunpack.c.l.s8.bf16 %v285
      %v510 = vunpack.c.l.s8.bf16 %v286
      %v511 = vunpack.c.l.s8.bf16 %v287
      %v512 = vunpack.c.l.s8.bf16 %v288
      %v513 = vunpack.c.l.s8.bf16 %v289
      %v514 = vunpack.c.l.s8.bf16 %v290
      %v515 = vunpack.c.l.s8.bf16 %v291
      %v516 = vunpack.c.l.s8.bf16 %v292
      %v517 = vunpack.c.h.s8.bf16 %v285
      %v518 = vunpack.c.h.s8.bf16 %v286
      %v519 = vunpack.c.h.s8.bf16 %v287
      %v520 = vunpack.c.h.s8.bf16 %v288
      %v521 = vunpack.c.h.s8.bf16 %v289
      %v522 = vunpack.c.h.s8.bf16 %v290
      %v523 = vunpack.c.h.s8.bf16 %v291
      %v524 = vunpack.c.h.s8.bf16 %v292
      %v525 = vunpack.c.l.s8.bf16 %v293
      %v526 = vunpack.c.l.s8.bf16 %v294
      %v527 = vunpack.c.l.s8.bf16 %v295
      %v528 = vunpack.c.l.s8.bf16 %v296
      %v529 = vunpack.c.l.s8.bf16 %v297
      %v530 = vunpack.c.l.s8.bf16 %v298
      %v531 = vunpack.c.l.s8.bf16 %v299
      %v532 = vunpack.c.l.s8.bf16 %v300
      %v533 = vunpack.c.h.s8.bf16 %v293
      %v534 = vunpack.c.h.s8.bf16 %v294
      %v535 = vunpack.c.h.s8.bf16 %v295
      %v536 = vunpack.c.h.s8.bf16 %v296
      %v537 = vunpack.c.h.s8.bf16 %v297
      %v538 = vunpack.c.h.s8.bf16 %v298
      %v539 = vunpack.c.h.s8.bf16 %v299
      %v540 = vunpack.c.h.s8.bf16 %v300
      %v541 = vunpack.c.l.s8.bf16 %v301
      %v542 = vunpack.c.l.s8.bf16 %v302
      %v543 = vunpack.c.l.s8.bf16 %v303
      %v544 = vunpack.c.l.s8.bf16 %v304
      %v545 = vunpack.c.l.s8.bf16 %v305
      %v546 = vunpack.c.l.s8.bf16 %v306
      %v547 = vunpack.c.l.s8.bf16 %v307
      %v548 = vunpack.c.l.s8.bf16 %v308
      %v549 = vunpack.c.h.s8.bf16 %v301
      %v550 = vunpack.c.h.s8.bf16 %v302
      %v551 = vunpack.c.h.s8.bf16 %v303
      %v552 = vunpack.c.h.s8.bf16 %v304
      %v553 = vunpack.c.h.s8.bf16 %v305
      %v554 = vunpack.c.h.s8.bf16 %v306
      %v555 = vunpack.c.h.s8.bf16 %v307
      %v556 = vunpack.c.h.s8.bf16 %v308
      %v557 = vunpack.c.l.s8.bf16 %v309
      %v558 = vunpack.c.l.s8.bf16 %v310
      %v559 = vunpack.c.l.s8.bf16 %v311
      %v560 = vunpack.c.l.s8.bf16 %v312
      %v561 = vunpack.c.l.s8.bf16 %v313
      %v562 = vunpack.c.l.s8.bf16 %v314
      %v563 = vunpack.c.l.s8.bf16 %v315
      %v564 = vunpack.c.l.s8.bf16 %v316
      %v565 = vunpack.c.h.s8.bf16 %v309
      %v566 = vunpack.c.h.s8.bf16 %v310
      %v567 = vunpack.c.h.s8.bf16 %v311
      %v568 = vunpack.c.h.s8.bf16 %v312
      %v569 = vunpack.c.h.s8.bf16 %v313
      %v570 = vunpack.c.h.s8.bf16 %v314
      %v571 = vunpack.c.h.s8.bf16 %v315
      %v572 = vunpack.c.h.s8.bf16 %v316
      %v573 = vld [vmem:[%s1] sm:$0xf]
      %v574 = vld [vmem:[%s1 + $0x4] sm:$0xf]
      %v575 = vld [vmem:[%s1 + $0x8] sm:$0xf]
      %v576 = vld [vmem:[%s1 + $0xc] sm:$0xf]
      %v577 = vld [vmem:[%s1 + $0x10] sm:$0xf]
      %v578 = vld [vmem:[%s1 + $0x14] sm:$0xf]
      %v579 = vld [vmem:[%s1 + $0x18] sm:$0xf]
      %v580 = vld [vmem:[%s1 + $0x1c] sm:$0xf]
      %v581 = vld [vmem:[%s1 + $0x20] sm:$0xf]
      %v582 = vld [vmem:[%s1 + $0x24] sm:$0xf]
      %v583 = vld [vmem:[%s1 + $0x28] sm:$0xf]
      %v584 = vld [vmem:[%s1 + $0x2c] sm:$0xf]
      %v585 = vld [vmem:[%s1 + $0x30] sm:$0xf]
      %v586 = vld [vmem:[%s1 + $0x34] sm:$0xf]
      %v587 = vld [vmem:[%s1 + $0x38] sm:$0xf]
      %v588 = vld [vmem:[%s1 + $0x3c] sm:$0xf]
      %v589 = vld [vmem:[%s1 + $0x40] sm:$0xf]
      %v590 = vld [vmem:[%s1 + $0x44] sm:$0xf]
      %v591 = vld [vmem:[%s1 + $0x48] sm:$0xf]
      %v592 = vld [vmem:[%s1 + $0x4c] sm:$0xf]
      %v593 = vld [vmem:[%s1 + $0x50] sm:$0xf]
      %v594 = vld [vmem:[%s1 + $0x54] sm:$0xf]
      %v595 = vld [vmem:[%s1 + $0x58] sm:$0xf]
      %v596 = vld [vmem:[%s1 + $0x5c] sm:$0xf]
      %v597 = vld [vmem:[%s1 + $0x60] sm:$0xf]
      %v598 = vld [vmem:[%s1 + $0x64] sm:$0xf]
      %v599 = vld [vmem:[%s1 + $0x68] sm:$0xf]
      %v600 = vld [vmem:[%s1 + $0x6c] sm:$0xf]
      %v601 = vld [vmem:[%s1 + $0x70] sm:$0xf]
      %v602 = vld [vmem:[%s1 + $0x74] sm:$0xf]
      %v603 = vld [vmem:[%s1 + $0x78] sm:$0xf]
      %v604 = vld [vmem:[%s1 + $0x7c] sm:$0xf]
      %v605 = vld [vmem:[%s1 + $0x80] sm:$0xf]
      %v606 = vld [vmem:[%s1 + $0x84] sm:$0xf]
      %v607 = vld [vmem:[%s1 + $0x88] sm:$0xf]
      %v608 = vld [vmem:[%s1 + $0x8c] sm:$0xf]
      %v609 = vld [vmem:[%s1 + $0x90] sm:$0xf]
      %v610 = vld [vmem:[%s1 + $0x94] sm:$0xf]
      %v611 = vld [vmem:[%s1 + $0x98] sm:$0xf]
      %v612 = vld [vmem:[%s1 + $0x9c] sm:$0xf]
      %v613 = vld [vmem:[%s1 + $0xa0] sm:$0xf]
      %v614 = vld [vmem:[%s1 + $0xa4] sm:$0xf]
      %v615 = vld [vmem:[%s1 + $0xa8] sm:$0xf]
      %v616 = vld [vmem:[%s1 + $0xac] sm:$0xf]
      %v617 = vld [vmem:[%s1 + $0xb0] sm:$0xf]
      %v618 = vld [vmem:[%s1 + $0xb4] sm:$0xf]
      %v619 = vld [vmem:[%s1 + $0xb8] sm:$0xf]
      %v620 = vld [vmem:[%s1 + $0xbc] sm:$0xf]
      %v621 = vld [vmem:[%s1 + $0xc0] sm:$0xf]
      %v622 = vld [vmem:[%s1 + $0xc4] sm:$0xf]
      %v623 = vld [vmem:[%s1 + $0xc8] sm:$0xf]
      %v624 = vld [vmem:[%s1 + $0xcc] sm:$0xf]
      %v625 = vld [vmem:[%s1 + $0xd0] sm:$0xf]
      %v626 = vld [vmem:[%s1 + $0xd4] sm:$0xf]
      %v627 = vld [vmem:[%s1 + $0xd8] sm:$0xf]
      %v628 = vld [vmem:[%s1 + $0xdc] sm:$0xf]
      %v629 = vld [vmem:[%s1 + $0xe0] sm:$0xf]
      %v630 = vld [vmem:[%s1 + $0xe4] sm:$0xf]
      %v631 = vld [vmem:[%s1 + $0xe8] sm:$0xf]
      %v632 = vld [vmem:[%s1 + $0xec] sm:$0xf]
      %v633 = vld [vmem:[%s1 + $0xf0] sm:$0xf]
      %v634 = vld [vmem:[%s1 + $0xf4] sm:$0xf]
      %v635 = vld [vmem:[%s1 + $0xf8] sm:$0xf]
      %v636 = vld [vmem:[%s1 + $0xfc] sm:$0xf]
      %v637 = vld [vmem:[%s1 + $0x100] sm:$0xf]
      %v638 = vld [vmem:[%s1 + $0x104] sm:$0xf]
      %v639 = vld [vmem:[%s1 + $0x108] sm:$0xf]
      %v640 = vld [vmem:[%s1 + $0x10c] sm:$0xf]
      %v641 = vld [vmem:[%s1 + $0x110] sm:$0xf]
      %v642 = vld [vmem:[%s1 + $0x114] sm:$0xf]
      %v643 = vld [vmem:[%s1 + $0x118] sm:$0xf]
      %v644 = vld [vmem:[%s1 + $0x11c] sm:$0xf]
      %v645 = vld [vmem:[%s1 + $0x120] sm:$0xf]
      %v646 = vld [vmem:[%s1 + $0x124] sm:$0xf]
      %v647 = vld [vmem:[%s1 + $0x128] sm:$0xf]
      %v648 = vld [vmem:[%s1 + $0x12c] sm:$0xf]
      %v649 = vld [vmem:[%s1 + $0x130] sm:$0xf]
      %v650 = vld [vmem:[%s1 + $0x134] sm:$0xf]
      %v651 = vld [vmem:[%s1 + $0x138] sm:$0xf]
      %v652 = vld [vmem:[%s1 + $0x13c] sm:$0xf]
      %v653 = vld [vmem:[%s1 + $0x140] sm:$0xf]
      %v654 = vld [vmem:[%s1 + $0x144] sm:$0xf]
      %v655 = vld [vmem:[%s1 + $0x148] sm:$0xf]
      %v656 = vld [vmem:[%s1 + $0x14c] sm:$0xf]
      %v657 = vld [vmem:[%s1 + $0x150] sm:$0xf]
      %v658 = vld [vmem:[%s1 + $0x154] sm:$0xf]
      %v659 = vld [vmem:[%s1 + $0x158] sm:$0xf]
      %v660 = vld [vmem:[%s1 + $0x15c] sm:$0xf]
      %v661 = vld [vmem:[%s1 + $0x160] sm:$0xf]
      %v662 = vld [vmem:[%s1 + $0x164] sm:$0xf]
      %v663 = vld [vmem:[%s1 + $0x168] sm:$0xf]
      %v664 = vld [vmem:[%s1 + $0x16c] sm:$0xf]
      %v665 = vld [vmem:[%s1 + $0x170] sm:$0xf]
      %v666 = vld [vmem:[%s1 + $0x174] sm:$0xf]
      %v667 = vld [vmem:[%s1 + $0x178] sm:$0xf]
      %v668 = vld [vmem:[%s1 + $0x17c] sm:$0xf]
      %v669 = vld [vmem:[%s1 + $0x180] sm:$0xf]
      %v670 = vld [vmem:[%s1 + $0x184] sm:$0xf]
      %v671 = vld [vmem:[%s1 + $0x188] sm:$0xf]
      %v672 = vld [vmem:[%s1 + $0x18c] sm:$0xf]
      %v673 = vld [vmem:[%s1 + $0x190] sm:$0xf]
      %v674 = vld [vmem:[%s1 + $0x194] sm:$0xf]
      %v675 = vld [vmem:[%s1 + $0x198] sm:$0xf]
      %v676 = vld [vmem:[%s1 + $0x19c] sm:$0xf]
      %v677 = vld [vmem:[%s1 + $0x1a0] sm:$0xf]
      %v678 = vld [vmem:[%s1 + $0x1a4] sm:$0xf]
      %v679 = vld [vmem:[%s1 + $0x1a8] sm:$0xf]
      %v680 = vld [vmem:[%s1 + $0x1ac] sm:$0xf]
      %v681 = vld [vmem:[%s1 + $0x1b0] sm:$0xf]
      %v682 = vld [vmem:[%s1 + $0x1b4] sm:$0xf]
      %v683 = vld [vmem:[%s1 + $0x1b8] sm:$0xf]
      %v684 = vld [vmem:[%s1 + $0x1bc] sm:$0xf]
      %v685 = vld [vmem:[%s1 + $0x1c0] sm:$0xf]
      %v686 = vld [vmem:[%s1 + $0x1c4] sm:$0xf]
      %v687 = vld [vmem:[%s1 + $0x1c8] sm:$0xf]
      %v688 = vld [vmem:[%s1 + $0x1cc] sm:$0xf]
      %v689 = vld [vmem:[%s1 + $0x1d0] sm:$0xf]
      %v690 = vld [vmem:[%s1 + $0x1d4] sm:$0xf]
      %v691 = vld [vmem:[%s1 + $0x1d8] sm:$0xf]
      %v692 = vld [vmem:[%s1 + $0x1dc] sm:$0xf]
      %v693 = vld [vmem:[%s1 + $0x1e0] sm:$0xf]
      %v694 = vld [vmem:[%s1 + $0x1e4] sm:$0xf]
      %v695 = vld [vmem:[%s1 + $0x1e8] sm:$0xf]
      %v696 = vld [vmem:[%s1 + $0x1ec] sm:$0xf]
      %v697 = vld [vmem:[%s1 + $0x1f0] sm:$0xf]
      %v698 = vld [vmem:[%s1 + $0x1f4] sm:$0xf]
      %v699 = vld [vmem:[%s1 + $0x1f8] sm:$0xf]
      %v700 = vld [vmem:[%s1 + $0x1fc] sm:$0xf]
      %v829 = vunpack.c.l.b16 %v573
      %v830 = vunpack.c.l.b16 %v574
      %v831 = vunpack.c.l.b16 %v575
      %v832 = vunpack.c.l.b16 %v576
      %v833 = vunpack.c.l.b16 %v577
      %v834 = vunpack.c.l.b16 %v578
      %v835 = vunpack.c.l.b16 %v579
      %v836 = vunpack.c.l.b16 %v580
      %v837 = vunpack.c.l.b16 %v581
      %v838 = vunpack.c.l.b16 %v582
      %v839 = vunpack.c.l.b16 %v583
      %v840 = vunpack.c.l.b16 %v584
      %v841 = vunpack.c.l.b16 %v585
      %v842 = vunpack.c.l.b16 %v586
      %v843 = vunpack.c.l.b16 %v587
      %v844 = vunpack.c.l.b16 %v588
      %v845 = vunpack.c.l.b16 %v589
      %v846 = vunpack.c.l.b16 %v590
      %v847 = vunpack.c.l.b16 %v591
      %v848 = vunpack.c.l.b16 %v592
      %v849 = vunpack.c.l.b16 %v593
      %v850 = vunpack.c.l.b16 %v594
      %v851 = vunpack.c.l.b16 %v595
      %v852 = vunpack.c.l.b16 %v596
      %v853 = vunpack.c.l.b16 %v597
      %v854 = vunpack.c.l.b16 %v598
      %v855 = vunpack.c.l.b16 %v599
      %v856 = vunpack.c.l.b16 %v600
      %v857 = vunpack.c.l.b16 %v601
      %v858 = vunpack.c.l.b16 %v602
      %v859 = vunpack.c.l.b16 %v603
      %v860 = vunpack.c.l.b16 %v604
      %v861 = vunpack.c.l.b16 %v605
      %v862 = vunpack.c.l.b16 %v606
      %v863 = vunpack.c.l.b16 %v607
      %v864 = vunpack.c.l.b16 %v608
      %v865 = vunpack.c.l.b16 %v609
      %v866 = vunpack.c.l.b16 %v610
      %v867 = vunpack.c.l.b16 %v611
      %v868 = vunpack.c.l.b16 %v612
      %v869 = vunpack.c.l.b16 %v613
      %v870 = vunpack.c.l.b16 %v614
      %v871 = vunpack.c.l.b16 %v615
      %v872 = vunpack.c.l.b16 %v616
      %v873 = vunpack.c.l.b16 %v617
      %v874 = vunpack.c.l.b16 %v618
      %v875 = vunpack.c.l.b16 %v619
      %v876 = vunpack.c.l.b16 %v620
      %v877 = vunpack.c.l.b16 %v621
      %v878 = vunpack.c.l.b16 %v622
      %v879 = vunpack.c.l.b16 %v623
      %v880 = vunpack.c.l.b16 %v624
      %v881 = vunpack.c.l.b16 %v625
      %v882 = vunpack.c.l.b16 %v626
      %v883 = vunpack.c.l.b16 %v627
      %v884 = vunpack.c.l.b16 %v628
      %v885 = vunpack.c.l.b16 %v629
      %v886 = vunpack.c.l.b16 %v630
      %v887 = vunpack.c.l.b16 %v631
      %v888 = vunpack.c.l.b16 %v632
      %v889 = vunpack.c.l.b16 %v633
      %v890 = vunpack.c.l.b16 %v634
      %v891 = vunpack.c.l.b16 %v635
      %v892 = vunpack.c.l.b16 %v636
      %v893 = vunpack.c.l.b16 %v637
      %v894 = vunpack.c.l.b16 %v638
      %v895 = vunpack.c.l.b16 %v639
      %v896 = vunpack.c.l.b16 %v640
      %v897 = vunpack.c.l.b16 %v641
      %v898 = vunpack.c.l.b16 %v642
      %v899 = vunpack.c.l.b16 %v643
      %v900 = vunpack.c.l.b16 %v644
      %v901 = vunpack.c.l.b16 %v645
      %v902 = vunpack.c.l.b16 %v646
      %v903 = vunpack.c.l.b16 %v647
      %v904 = vunpack.c.l.b16 %v648
      %v905 = vunpack.c.l.b16 %v649
      %v906 = vunpack.c.l.b16 %v650
      %v907 = vunpack.c.l.b16 %v651
      %v908 = vunpack.c.l.b16 %v652
      %v909 = vunpack.c.l.b16 %v653
      %v910 = vunpack.c.l.b16 %v654
      %v911 = vunpack.c.l.b16 %v655
      %v912 = vunpack.c.l.b16 %v656
      %v913 = vunpack.c.l.b16 %v657
      %v914 = vunpack.c.l.b16 %v658
      %v915 = vunpack.c.l.b16 %v659
      %v916 = vunpack.c.l.b16 %v660
      %v917 = vunpack.c.l.b16 %v661
      %v918 = vunpack.c.l.b16 %v662
      %v919 = vunpack.c.l.b16 %v663
      %v920 = vunpack.c.l.b16 %v664
      %v921 = vunpack.c.l.b16 %v665
      %v922 = vunpack.c.l.b16 %v666
      %v923 = vunpack.c.l.b16 %v667
      %v924 = vunpack.c.l.b16 %v668
      %v925 = vunpack.c.l.b16 %v669
      %v926 = vunpack.c.l.b16 %v670
      %v927 = vunpack.c.l.b16 %v671
      %v928 = vunpack.c.l.b16 %v672
      %v929 = vunpack.c.l.b16 %v673
      %v930 = vunpack.c.l.b16 %v674
      %v931 = vunpack.c.l.b16 %v675
      %v932 = vunpack.c.l.b16 %v676
      %v933 = vunpack.c.l.b16 %v677
      %v934 = vunpack.c.l.b16 %v678
      %v935 = vunpack.c.l.b16 %v679
      %v936 = vunpack.c.l.b16 %v680
      %v937 = vunpack.c.l.b16 %v681
      %v938 = vunpack.c.l.b16 %v682
      %v939 = vunpack.c.l.b16 %v683
      %v940 = vunpack.c.l.b16 %v684
      %v941 = vunpack.c.l.b16 %v685
      %v942 = vunpack.c.l.b16 %v686
      %v943 = vunpack.c.l.b16 %v687
      %v944 = vunpack.c.l.b16 %v688
      %v945 = vunpack.c.l.b16 %v689
      %v946 = vunpack.c.l.b16 %v690
      %v947 = vunpack.c.l.b16 %v691
      %v948 = vunpack.c.l.b16 %v692
      %v949 = vunpack.c.l.b16 %v693
      %v950 = vunpack.c.l.b16 %v694
      %v951 = vunpack.c.l.b16 %v695
      %v952 = vunpack.c.l.b16 %v696
      %v953 = vunpack.c.l.b16 %v697
      %v954 = vunpack.c.l.b16 %v698
      %v955 = vunpack.c.l.b16 %v699
      %v956 = vunpack.c.l.b16 %v700
      %v957 = vpack.c.b16 %v830, %v829
      %v958 = vpack.c.b16 %v832, %v831
      %v959 = vpack.c.b16 %v834, %v833
      %v960 = vpack.c.b16 %v836, %v835
      %v961 = vpack.c.b16 %v838, %v837
      %v962 = vpack.c.b16 %v840, %v839
      %v963 = vpack.c.b16 %v842, %v841
      %v964 = vpack.c.b16 %v844, %v843
      %v965 = vpack.c.b16 %v846, %v845
      %v966 = vpack.c.b16 %v848, %v847
      %v967 = vpack.c.b16 %v850, %v849
      %v968 = vpack.c.b16 %v852, %v851
      %v969 = vpack.c.b16 %v854, %v853
      %v970 = vpack.c.b16 %v856, %v855
      %v971 = vpack.c.b16 %v858, %v857
      %v972 = vpack.c.b16 %v860, %v859
      %v973 = vpack.c.b16 %v862, %v861
      %v974 = vpack.c.b16 %v864, %v863
      %v975 = vpack.c.b16 %v866, %v865
      %v976 = vpack.c.b16 %v868, %v867
      %v977 = vpack.c.b16 %v870, %v869
      %v978 = vpack.c.b16 %v872, %v871
      %v979 = vpack.c.b16 %v874, %v873
      %v980 = vpack.c.b16 %v876, %v875
      %v981 = vpack.c.b16 %v878, %v877
      %v982 = vpack.c.b16 %v880, %v879
      %v983 = vpack.c.b16 %v882, %v881
      %v984 = vpack.c.b16 %v884, %v883
      %v985 = vpack.c.b16 %v886, %v885
      %v986 = vpack.c.b16 %v888, %v887
      %v987 = vpack.c.b16 %v890, %v889
      %v988 = vpack.c.b16 %v892, %v891
      %v989 = vpack.c.b16 %v894, %v893
      %v990 = vpack.c.b16 %v896, %v895
      %v991 = vpack.c.b16 %v898, %v897
      %v992 = vpack.c.b16 %v900, %v899
      %v993 = vpack.c.b16 %v902, %v901
      %v994 = vpack.c.b16 %v904, %v903
      %v995 = vpack.c.b16 %v906, %v905
      %v996 = vpack.c.b16 %v908, %v907
      %v997 = vpack.c.b16 %v910, %v909
      %v998 = vpack.c.b16 %v912, %v911
      %v999 = vpack.c.b16 %v914, %v913
      %v1000 = vpack.c.b16 %v916, %v915
      %v1001 = vpack.c.b16 %v918, %v917
      %v1002 = vpack.c.b16 %v920, %v919
      %v1003 = vpack.c.b16 %v922, %v921
      %v1004 = vpack.c.b16 %v924, %v923
      %v1005 = vpack.c.b16 %v926, %v925
      %v1006 = vpack.c.b16 %v928, %v927
      %v1007 = vpack.c.b16 %v930, %v929
      %v1008 = vpack.c.b16 %v932, %v931
      %v1009 = vpack.c.b16 %v934, %v933
      %v1010 = vpack.c.b16 %v936, %v935
      %v1011 = vpack.c.b16 %v938, %v937
      %v1012 = vpack.c.b16 %v940, %v939
      %v1013 = vpack.c.b16 %v942, %v941
      %v1014 = vpack.c.b16 %v944, %v943
      %v1015 = vpack.c.b16 %v946, %v945
      %v1016 = vpack.c.b16 %v948, %v947
      %v1017 = vpack.c.b16 %v950, %v949
      %v1018 = vpack.c.b16 %v952, %v951
      %v1019 = vpack.c.b16 %v954, %v953
      %v1020 = vpack.c.b16 %v956, %v955
      %1085 = vmatprep.subr.bf16.mxu0 0
      %1086 = vmatpush1.bf16.msra.mxu0 %v964
      %1087 = vmatprep.subr.bf16.mxu0 0
      %1088 = vmatpush1.bf16.msra.mxu0 %v963
      %1089 = vmatprep.subr.bf16.mxu0 0
      %1090 = vmatpush1.bf16.msra.mxu0 %v962
      %1091 = vmatprep.subr.bf16.mxu0 0
      %1092 = vmatpush1.bf16.msra.mxu0 %v961
      %1093 = vmatprep.subr.bf16.mxu0 0
      %1094 = vmatpush1.bf16.msra.mxu0 %v960
      %1095 = vmatprep.subr.bf16.mxu0 0
      %1096 = vmatpush1.bf16.msra.mxu0 %v959
      %1097 = vmatprep.subr.bf16.mxu0 0
      %1098 = vmatpush1.bf16.msra.mxu0 %v958
      %1099 = vmatprep.subr.bf16.mxu0 0
      %1100 = vmatpush1.bf16.msra.mxu0 %v957
      %1101 = vmatprep.subr.bf16.mxu0 0
      %1102 = vmatpush2.bf16.msra.mxu0 %v972
      %1103 = vmatprep.subr.bf16.mxu0 0
      %1104 = vmatpush2.bf16.msra.mxu0 %v971
      %1105 = vmatprep.subr.bf16.mxu0 0
      %1106 = vmatpush2.bf16.msra.mxu0 %v970
      %1107 = vmatprep.subr.bf16.mxu0 0
      %1108 = vmatpush2.bf16.msra.mxu0 %v969
      %1109 = vmatprep.subr.bf16.mxu0 0
      %1110 = vmatpush2.bf16.msra.mxu0 %v968
      %1111 = vmatprep.subr.bf16.mxu0 0
      %1112 = vmatpush2.bf16.msra.mxu0 %v967
      %1113 = vmatprep.subr.bf16.mxu0 0
      %1114 = vmatpush2.bf16.msra.mxu0 %v966
      %1115 = vmatprep.subr.bf16.mxu0 0
      %1116 = vmatpush2.bf16.msra.mxu0 %v965
      %1117 = vmatprep.mubr.bf16.mxu0 %v318
      %1118 = vmatmul.mubr.bf16.gmra.mxu0 %v317
      %v1119 = vpop.f32.mrf.mxu0
      %v1120 = vadd.f32 0.0, %v1119
      %v1121 = vpop.f32.mrf.mxu0
      %v1122 = vpop.f32.mrf.mxu0
      %v1123 = vadd.f32 0.0, %v1122
      %v1124 = vpop.f32.mrf.mxu0
      %1125 = vmatprep.mubr.bf16.mxu0 %v326
      %1126 = vmatmul.mubr.bf16.gmra.mxu0 %v325
      %v1127 = vpop.f32.mrf.mxu0
      %v1128 = vadd.f32 0.0, %v1127
      %v1129 = vpop.f32.mrf.mxu0
      %v1130 = vpop.f32.mrf.mxu0
      %v1131 = vadd.f32 0.0, %v1130
      %v1132 = vpop.f32.mrf.mxu0
      %1133 = vmatprep.mubr.bf16.mxu0 %v334
      %1134 = vmatmul.mubr.bf16.gmra.mxu0 %v333
      %v1135 = vpop.f32.mrf.mxu0
      %v1136 = vadd.f32 0.0, %v1135
      %v1137 = vpop.f32.mrf.mxu0
      %v1138 = vpop.f32.mrf.mxu0
      %v1139 = vadd.f32 0.0, %v1138
      %v1140 = vpop.f32.mrf.mxu0
      %1141 = vmatprep.mubr.bf16.mxu0 %v342
      %1142 = vmatmul.mubr.bf16.gmra.mxu0 %v341
      %v1143 = vpop.f32.mrf.mxu0
      %v1144 = vadd.f32 0.0, %v1143
      %v1145 = vpop.f32.mrf.mxu0
      %v1146 = vpop.f32.mrf.mxu0
      %v1147 = vadd.f32 0.0, %v1146
      %v1148 = vpop.f32.mrf.mxu0
      %1149 = vmatprep.mubr.bf16.mxu0 %v350
      %1150 = vmatmul.mubr.bf16.gmra.mxu0 %v349
      %v1151 = vpop.f32.mrf.mxu0
      %v1152 = vadd.f32 0.0, %v1151
      %v1153 = vpop.f32.mrf.mxu0
      %v1154 = vpop.f32.mrf.mxu0
      %v1155 = vadd.f32 0.0, %v1154
      %v1156 = vpop.f32.mrf.mxu0
      %1157 = vmatprep.mubr.bf16.mxu0 %v358
      %1158 = vmatmul.mubr.bf16.gmra.mxu0 %v357
      %v1159 = vpop.f32.mrf.mxu0
      %v1160 = vadd.f32 0.0, %v1159
      %v1161 = vpop.f32.mrf.mxu0
      %v1162 = vpop.f32.mrf.mxu0
      %v1163 = vadd.f32 0.0, %v1162
      %v1164 = vpop.f32.mrf.mxu0
      %1165 = vmatprep.mubr.bf16.mxu0 %v366
      %1166 = vmatmul.mubr.bf16.gmra.mxu0 %v365
      %v1167 = vpop.f32.mrf.mxu0
      %v1168 = vadd.f32 0.0, %v1167
      %v1169 = vpop.f32.mrf.mxu0
      %v1170 = vpop.f32.mrf.mxu0
      %v1171 = vadd.f32 0.0, %v1170
      %v1172 = vpop.f32.mrf.mxu0
      %1173 = vmatprep.mubr.bf16.mxu0 %v374
      %1174 = vmatmul.mubr.bf16.gmra.mxu0 %v373
      %v1175 = vpop.f32.mrf.mxu0
      %v1176 = vadd.f32 0.0, %v1175
      %v1177 = vpop.f32.mrf.mxu0
      %v1178 = vpop.f32.mrf.mxu0
      %v1179 = vadd.f32 0.0, %v1178
      %v1180 = vpop.f32.mrf.mxu0
      %1181 = vmatprep.mubr.bf16.mxu0 %v382
      %1182 = vmatmul.mubr.bf16.gmra.mxu0 %v381
      %v1183 = vpop.f32.mrf.mxu0
      %v1184 = vadd.f32 0.0, %v1183
      %v1185 = vpop.f32.mrf.mxu0
      %v1186 = vpop.f32.mrf.mxu0
      %v1187 = vadd.f32 0.0, %v1186
      %v1188 = vpop.f32.mrf.mxu0
      %1189 = vmatprep.mubr.bf16.mxu0 %v390
      %1190 = vmatmul.mubr.bf16.gmra.mxu0 %v389
      %v1191 = vpop.f32.mrf.mxu0
      %v1192 = vadd.f32 0.0, %v1191
      %v1193 = vpop.f32.mrf.mxu0
      %v1194 = vpop.f32.mrf.mxu0
      %v1195 = vadd.f32 0.0, %v1194
      %v1196 = vpop.f32.mrf.mxu0
      %1197 = vmatprep.mubr.bf16.mxu0 %v398
      %1198 = vmatmul.mubr.bf16.gmra.mxu0 %v397
      %v1199 = vpop.f32.mrf.mxu0
      %v1200 = vadd.f32 0.0, %v1199
      %v1201 = vpop.f32.mrf.mxu0
      %v1202 = vpop.f32.mrf.mxu0
      %v1203 = vadd.f32 0.0, %v1202
      %v1204 = vpop.f32.mrf.mxu0
      %1205 = vmatprep.mubr.bf16.mxu0 %v406
      %1206 = vmatmul.mubr.bf16.gmra.mxu0 %v405
      %v1207 = vpop.f32.mrf.mxu0
      %v1208 = vadd.f32 0.0, %v1207
      %v1209 = vpop.f32.mrf.mxu0
      %v1210 = vpop.f32.mrf.mxu0
      %v1211 = vadd.f32 0.0, %v1210
      %v1212 = vpop.f32.mrf.mxu0
      %1213 = vmatprep.mubr.bf16.mxu0 %v414
      %1214 = vmatmul.mubr.bf16.gmra.mxu0 %v413
      %v1215 = vpop.f32.mrf.mxu0
      %v1216 = vadd.f32 0.0, %v1215
      %v1217 = vpop.f32.mrf.mxu0
      %v1218 = vpop.f32.mrf.mxu0
      %v1219 = vadd.f32 0.0, %v1218
      %v1220 = vpop.f32.mrf.mxu0
      %1221 = vmatprep.mubr.bf16.mxu0 %v422
      %1222 = vmatmul.mubr.bf16.gmra.mxu0 %v421
      %v1223 = vpop.f32.mrf.mxu0
      %v1224 = vadd.f32 0.0, %v1223
      %v1225 = vpop.f32.mrf.mxu0
      %v1226 = vpop.f32.mrf.mxu0
      %v1227 = vadd.f32 0.0, %v1226
      %v1228 = vpop.f32.mrf.mxu0
      %1229 = vmatprep.mubr.bf16.mxu0 %v430
      %1230 = vmatmul.mubr.bf16.gmra.mxu0 %v429
      %v1231 = vpop.f32.mrf.mxu0
      %v1232 = vadd.f32 0.0, %v1231
      %v1233 = vpop.f32.mrf.mxu0
      %v1234 = vpop.f32.mrf.mxu0
      %v1235 = vadd.f32 0.0, %v1234
      %v1236 = vpop.f32.mrf.mxu0
      %1237 = vmatprep.mubr.bf16.mxu0 %v438
      %1238 = vmatmul.mubr.bf16.gmra.mxu0 %v437
      %v1239 = vpop.f32.mrf.mxu0
      %v1240 = vadd.f32 0.0, %v1239
      %v1241 = vpop.f32.mrf.mxu0
      %v1242 = vpop.f32.mrf.mxu0
      %v1243 = vadd.f32 0.0, %v1242
      %v1244 = vpop.f32.mrf.mxu0
      %1245 = vmatprep.mubr.bf16.mxu0 %v446
      %1246 = vmatmul.mubr.bf16.gmra.mxu0 %v445
      %v1247 = vpop.f32.mrf.mxu0
      %v1248 = vadd.f32 0.0, %v1247
      %v1249 = vpop.f32.mrf.mxu0
      %v1250 = vpop.f32.mrf.mxu0
      %v1251 = vadd.f32 0.0, %v1250
      %v1252 = vpop.f32.mrf.mxu0
      %1253 = vmatprep.mubr.bf16.mxu0 %v454
      %1254 = vmatmul.mubr.bf16.gmra.mxu0 %v453
      %v1255 = vpop.f32.mrf.mxu0
      %v1256 = vadd.f32 0.0, %v1255
      %v1257 = vpop.f32.mrf.mxu0
      %v1258 = vpop.f32.mrf.mxu0
      %v1259 = vadd.f32 0.0, %v1258
      %v1260 = vpop.f32.mrf.mxu0
      %1261 = vmatprep.mubr.bf16.mxu0 %v462
      %1262 = vmatmul.mubr.bf16.gmra.mxu0 %v461
      %v1263 = vpop.f32.mrf.mxu0
      %v1264 = vadd.f32 0.0, %v1263
      %v1265 = vpop.f32.mrf.mxu0
      %v1266 = vpop.f32.mrf.mxu0
      %v1267 = vadd.f32 0.0, %v1266
      %v1268 = vpop.f32.mrf.mxu0
      %1269 = vmatprep.mubr.bf16.mxu0 %v470
      %1270 = vmatmul.mubr.bf16.gmra.mxu0 %v469
      %v1271 = vpop.f32.mrf.mxu0
      %v1272 = vadd.f32 0.0, %v1271
      %v1273 = vpop.f32.mrf.mxu0
      %v1274 = vpop.f32.mrf.mxu0
      %v1275 = vadd.f32 0.0, %v1274
      %v1276 = vpop.f32.mrf.mxu0
      %1277 = vmatprep.mubr.bf16.mxu0 %v478
      %1278 = vmatmul.mubr.bf16.gmra.mxu0 %v477
      %v1279 = vpop.f32.mrf.mxu0
      %v1280 = vadd.f32 0.0, %v1279
      %v1281 = vpop.f32.mrf.mxu0
      %v1282 = vpop.f32.mrf.mxu0
      %v1283 = vadd.f32 0.0, %v1282
      %v1284 = vpop.f32.mrf.mxu0
      %1285 = vmatprep.mubr.bf16.mxu0 %v486
      %1286 = vmatmul.mubr.bf16.gmra.mxu0 %v485
      %v1287 = vpop.f32.mrf.mxu0
      %v1288 = vadd.f32 0.0, %v1287
      %v1289 = vpop.f32.mrf.mxu0
      %v1290 = vpop.f32.mrf.mxu0
      %v1291 = vadd.f32 0.0, %v1290
      %v1292 = vpop.f32.mrf.mxu0
      %1293 = vmatprep.mubr.bf16.mxu0 %v494
      %1294 = vmatmul.mubr.bf16.gmra.mxu0 %v493
      %v1295 = vpop.f32.mrf.mxu0
      %v1296 = vadd.f32 0.0, %v1295
      %v1297 = vpop.f32.mrf.mxu0
      %v1298 = vpop.f32.mrf.mxu0
      %v1299 = vadd.f32 0.0, %v1298
      %v1300 = vpop.f32.mrf.mxu0
      %1301 = vmatprep.mubr.bf16.mxu0 %v502
      %1302 = vmatmul.mubr.bf16.gmra.mxu0 %v501
      %v1303 = vpop.f32.mrf.mxu0
      %v1304 = vadd.f32 0.0, %v1303
      %v1305 = vpop.f32.mrf.mxu0
      %v1306 = vpop.f32.mrf.mxu0
      %v1307 = vadd.f32 0.0, %v1306
      %v1308 = vpop.f32.mrf.mxu0
      %1309 = vmatprep.mubr.bf16.mxu0 %v510
      %1310 = vmatmul.mubr.bf16.gmra.mxu0 %v509
      %v1311 = vpop.f32.mrf.mxu0
      %v1312 = vadd.f32 0.0, %v1311
      %v1313 = vpop.f32.mrf.mxu0
      %v1314 = vpop.f32.mrf.mxu0
      %v1315 = vadd.f32 0.0, %v1314
      %v1316 = vpop.f32.mrf.mxu0
      %1317 = vmatprep.mubr.bf16.mxu0 %v518
      %1318 = vmatmul.mubr.bf16.gmra.mxu0 %v517
      %v1319 = vpop.f32.mrf.mxu0
      %v1320 = vadd.f32 0.0, %v1319
      %v1321 = vpop.f32.mrf.mxu0
      %v1322 = vpop.f32.mrf.mxu0
      %v1323 = vadd.f32 0.0, %v1322
      %v1324 = vpop.f32.mrf.mxu0
      %1325 = vmatprep.mubr.bf16.mxu0 %v526
      %1326 = vmatmul.mubr.bf16.gmra.mxu0 %v525
      %v1327 = vpop.f32.mrf.mxu0
      %v1328 = vadd.f32 0.0, %v1327
      %v1329 = vpop.f32.mrf.mxu0
      %v1330 = vpop.f32.mrf.mxu0
      %v1331 = vadd.f32 0.0, %v1330
      %v1332 = vpop.f32.mrf.mxu0
      %1333 = vmatprep.mubr.bf16.mxu0 %v534
      %1334 = vmatmul.mubr.bf16.gmra.mxu0 %v533
      %v1335 = vpop.f32.mrf.mxu0
      %v1336 = vadd.f32 0.0, %v1335
      %v1337 = vpop.f32.mrf.mxu0
      %v1338 = vpop.f32.mrf.mxu0
      %v1339 = vadd.f32 0.0, %v1338
      %v1340 = vpop.f32.mrf.mxu0
      %1341 = vmatprep.mubr.bf16.mxu0 %v542
      %1342 = vmatmul.mubr.bf16.gmra.mxu0 %v541
      %v1343 = vpop.f32.mrf.mxu0
      %v1344 = vadd.f32 0.0, %v1343
      %v1345 = vpop.f32.mrf.mxu0
      %v1346 = vpop.f32.mrf.mxu0
      %v1347 = vadd.f32 0.0, %v1346
      %v1348 = vpop.f32.mrf.mxu0
      %1349 = vmatprep.mubr.bf16.mxu0 %v550
      %1350 = vmatmul.mubr.bf16.gmra.mxu0 %v549
      %v1351 = vpop.f32.mrf.mxu0
      %v1352 = vadd.f32 0.0, %v1351
      %v1353 = vpop.f32.mrf.mxu0
      %v1354 = vpop.f32.mrf.mxu0
      %v1355 = vadd.f32 0.0, %v1354
      %v1356 = vpop.f32.mrf.mxu0
      %1357 = vmatprep.mubr.bf16.mxu0 %v558
      %1358 = vmatmul.mubr.bf16.gmra.mxu0 %v557
      %v1359 = vpop.f32.mrf.mxu0
      %v1360 = vadd.f32 0.0, %v1359
      %v1361 = vpop.f32.mrf.mxu0
      %v1362 = vpop.f32.mrf.mxu0
      %v1363 = vadd.f32 0.0, %v1362
      %v1364 = vpop.f32.mrf.mxu0
      %1365 = vmatprep.mubr.bf16.mxu0 %v566
      %1366 = vmatmul.mubr.bf16.gmra.mxu0 %v565
      %v1367 = vpop.f32.mrf.mxu0
      %v1368 = vadd.f32 0.0, %v1367
      %v1369 = vpop.f32.mrf.mxu0
      %v1370 = vpop.f32.mrf.mxu0
      %v1371 = vadd.f32 0.0, %v1370
      %v1372 = vpop.f32.mrf.mxu0
      %1373 = vdwg.mxu0
      %1374 = vmatprep.subr.bf16.mxu0 0
      %1375 = vmatpush1.bf16.msra.mxu0 %v980
      %1376 = vmatprep.subr.bf16.mxu0 0
      %1377 = vmatpush1.bf16.msra.mxu0 %v979
      %1378 = vmatprep.subr.bf16.mxu0 0
      %1379 = vmatpush1.bf16.msra.mxu0 %v978
      %1380 = vmatprep.subr.bf16.mxu0 0
      %1381 = vmatpush1.bf16.msra.mxu0 %v977
      %1382 = vmatprep.subr.bf16.mxu0 0
      %1383 = vmatpush1.bf16.msra.mxu0 %v976
      %1384 = vmatprep.subr.bf16.mxu0 0
      %1385 = vmatpush1.bf16.msra.mxu0 %v975
      %1386 = vmatprep.subr.bf16.mxu0 0
      %1387 = vmatpush1.bf16.msra.mxu0 %v974
      %1388 = vmatprep.subr.bf16.mxu0 0
      %1389 = vmatpush1.bf16.msra.mxu0 %v973
      %1390 = vmatprep.subr.bf16.mxu0 0
      %1391 = vmatpush2.bf16.msra.mxu0 %v988
      %1392 = vmatprep.subr.bf16.mxu0 0
      %1393 = vmatpush2.bf16.msra.mxu0 %v987
      %1394 = vmatprep.subr.bf16.mxu0 0
      %1395 = vmatpush2.bf16.msra.mxu0 %v986
      %1396 = vmatprep.subr.bf16.mxu0 0
      %1397 = vmatpush2.bf16.msra.mxu0 %v985
      %1398 = vmatprep.subr.bf16.mxu0 0
      %1399 = vmatpush2.bf16.msra.mxu0 %v984
      %1400 = vmatprep.subr.bf16.mxu0 0
      %1401 = vmatpush2.bf16.msra.mxu0 %v983
      %1402 = vmatprep.subr.bf16.mxu0 0
      %1403 = vmatpush2.bf16.msra.mxu0 %v982
      %1404 = vmatprep.subr.bf16.mxu0 0
      %1405 = vmatpush2.bf16.msra.mxu0 %v981
      %1406 = vmatprep.mubr.bf16.mxu0 %v320
      %1407 = vmatmul.mubr.bf16.gmra.mxu0 %v319
      %v1408 = vpop.f32.mrf.mxu0
      %v1409 = vadd.f32 %v1120, %v1408
      %v1410 = vpop.f32.mrf.mxu0
      %v1411 = vpop.f32.mrf.mxu0
      %v1412 = vadd.f32 %v1123, %v1411
      %v1413 = vpop.f32.mrf.mxu0
      %1414 = vmatprep.mubr.bf16.mxu0 %v328
      %1415 = vmatmul.mubr.bf16.gmra.mxu0 %v327
      %v1416 = vpop.f32.mrf.mxu0
      %v1417 = vadd.f32 %v1128, %v1416
      %v1418 = vpop.f32.mrf.mxu0
      %v1419 = vpop.f32.mrf.mxu0
      %v1420 = vadd.f32 %v1131, %v1419
      %v1421 = vpop.f32.mrf.mxu0
      %1422 = vmatprep.mubr.bf16.mxu0 %v336
      %1423 = vmatmul.mubr.bf16.gmra.mxu0 %v335
      %v1424 = vpop.f32.mrf.mxu0
      %v1425 = vadd.f32 %v1136, %v1424
      %v1426 = vpop.f32.mrf.mxu0
      %v1427 = vpop.f32.mrf.mxu0
      %v1428 = vadd.f32 %v1139, %v1427
      %v1429 = vpop.f32.mrf.mxu0
      %1430 = vmatprep.mubr.bf16.mxu0 %v344
      %1431 = vmatmul.mubr.bf16.gmra.mxu0 %v343
      %v1432 = vpop.f32.mrf.mxu0
      %v1433 = vadd.f32 %v1144, %v1432
      %v1434 = vpop.f32.mrf.mxu0
      %v1435 = vpop.f32.mrf.mxu0
      %v1436 = vadd.f32 %v1147, %v1435
      %v1437 = vpop.f32.mrf.mxu0
      %1438 = vmatprep.mubr.bf16.mxu0 %v352
      %1439 = vmatmul.mubr.bf16.gmra.mxu0 %v351
      %v1440 = vpop.f32.mrf.mxu0
      %v1441 = vadd.f32 %v1152, %v1440
      %v1442 = vpop.f32.mrf.mxu0
      %v1443 = vpop.f32.mrf.mxu0
      %v1444 = vadd.f32 %v1155, %v1443
      %v1445 = vpop.f32.mrf.mxu0
      %1446 = vmatprep.mubr.bf16.mxu0 %v360
      %1447 = vmatmul.mubr.bf16.gmra.mxu0 %v359
      %v1448 = vpop.f32.mrf.mxu0
      %v1449 = vadd.f32 %v1160, %v1448
      %v1450 = vpop.f32.mrf.mxu0
      %v1451 = vpop.f32.mrf.mxu0
      %v1452 = vadd.f32 %v1163, %v1451
      %v1453 = vpop.f32.mrf.mxu0
      %1454 = vmatprep.mubr.bf16.mxu0 %v368
      %1455 = vmatmul.mubr.bf16.gmra.mxu0 %v367
      %v1456 = vpop.f32.mrf.mxu0
      %v1457 = vadd.f32 %v1168, %v1456
      %v1458 = vpop.f32.mrf.mxu0
      %v1459 = vpop.f32.mrf.mxu0
      %v1460 = vadd.f32 %v1171, %v1459
      %v1461 = vpop.f32.mrf.mxu0
      %1462 = vmatprep.mubr.bf16.mxu0 %v376
      %1463 = vmatmul.mubr.bf16.gmra.mxu0 %v375
      %v1464 = vpop.f32.mrf.mxu0
      %v1465 = vadd.f32 %v1176, %v1464
      %v1466 = vpop.f32.mrf.mxu0
      %v1467 = vpop.f32.mrf.mxu0
      %v1468 = vadd.f32 %v1179, %v1467
      %v1469 = vpop.f32.mrf.mxu0
      %1470 = vmatprep.mubr.bf16.mxu0 %v384
      %1471 = vmatmul.mubr.bf16.gmra.mxu0 %v383
      %v1472 = vpop.f32.mrf.mxu0
      %v1473 = vadd.f32 %v1184, %v1472
      %v1474 = vpop.f32.mrf.mxu0
      %v1475 = vpop.f32.mrf.mxu0
      %v1476 = vadd.f32 %v1187, %v1475
      %v1477 = vpop.f32.mrf.mxu0
      %1478 = vmatprep.mubr.bf16.mxu0 %v392
      %1479 = vmatmul.mubr.bf16.gmra.mxu0 %v391
      %v1480 = vpop.f32.mrf.mxu0
      %v1481 = vadd.f32 %v1192, %v1480
      %v1482 = vpop.f32.mrf.mxu0
      %v1483 = vpop.f32.mrf.mxu0
      %v1484 = vadd.f32 %v1195, %v1483
      %v1485 = vpop.f32.mrf.mxu0
      %1486 = vmatprep.mubr.bf16.mxu0 %v400
      %1487 = vmatmul.mubr.bf16.gmra.mxu0 %v399
      %v1488 = vpop.f32.mrf.mxu0
      %v1489 = vadd.f32 %v1200, %v1488
      %v1490 = vpop.f32.mrf.mxu0
      %v1491 = vpop.f32.mrf.mxu0
      %v1492 = vadd.f32 %v1203, %v1491
      %v1493 = vpop.f32.mrf.mxu0
      %1494 = vmatprep.mubr.bf16.mxu0 %v408
      %1495 = vmatmul.mubr.bf16.gmra.mxu0 %v407
      %v1496 = vpop.f32.mrf.mxu0
      %v1497 = vadd.f32 %v1208, %v1496
      %v1498 = vpop.f32.mrf.mxu0
      %v1499 = vpop.f32.mrf.mxu0
      %v1500 = vadd.f32 %v1211, %v1499
      %v1501 = vpop.f32.mrf.mxu0
      %1502 = vmatprep.mubr.bf16.mxu0 %v416
      %1503 = vmatmul.mubr.bf16.gmra.mxu0 %v415
      %v1504 = vpop.f32.mrf.mxu0
      %v1505 = vadd.f32 %v1216, %v1504
      %v1506 = vpop.f32.mrf.mxu0
      %v1507 = vpop.f32.mrf.mxu0
      %v1508 = vadd.f32 %v1219, %v1507
      %v1509 = vpop.f32.mrf.mxu0
      %1510 = vmatprep.mubr.bf16.mxu0 %v424
      %1511 = vmatmul.mubr.bf16.gmra.mxu0 %v423
      %v1512 = vpop.f32.mrf.mxu0
      %v1513 = vadd.f32 %v1224, %v1512
      %v1514 = vpop.f32.mrf.mxu0
      %v1515 = vpop.f32.mrf.mxu0
      %v1516 = vadd.f32 %v1227, %v1515
      %v1517 = vpop.f32.mrf.mxu0
      %1518 = vmatprep.mubr.bf16.mxu0 %v432
      %1519 = vmatmul.mubr.bf16.gmra.mxu0 %v431
      %v1520 = vpop.f32.mrf.mxu0
      %v1521 = vadd.f32 %v1232, %v1520
      %v1522 = vpop.f32.mrf.mxu0
      %v1523 = vpop.f32.mrf.mxu0
      %v1524 = vadd.f32 %v1235, %v1523
      %v1525 = vpop.f32.mrf.mxu0
      %1526 = vmatprep.mubr.bf16.mxu0 %v440
      %1527 = vmatmul.mubr.bf16.gmra.mxu0 %v439
      %v1528 = vpop.f32.mrf.mxu0
      %v1529 = vadd.f32 %v1240, %v1528
      %v1530 = vpop.f32.mrf.mxu0
      %v1531 = vpop.f32.mrf.mxu0
      %v1532 = vadd.f32 %v1243, %v1531
      %v1533 = vpop.f32.mrf.mxu0
      %1534 = vmatprep.mubr.bf16.mxu0 %v448
      %1535 = vmatmul.mubr.bf16.gmra.mxu0 %v447
      %v1536 = vpop.f32.mrf.mxu0
      %v1537 = vadd.f32 %v1248, %v1536
      %v1538 = vpop.f32.mrf.mxu0
      %v1539 = vpop.f32.mrf.mxu0
      %v1540 = vadd.f32 %v1251, %v1539
      %v1541 = vpop.f32.mrf.mxu0
      %1542 = vmatprep.mubr.bf16.mxu0 %v456
      %1543 = vmatmul.mubr.bf16.gmra.mxu0 %v455
      %v1544 = vpop.f32.mrf.mxu0
      %v1545 = vadd.f32 %v1256, %v1544
      %v1546 = vpop.f32.mrf.mxu0
      %v1547 = vpop.f32.mrf.mxu0
      %v1548 = vadd.f32 %v1259, %v1547
      %v1549 = vpop.f32.mrf.mxu0
      %1550 = vmatprep.mubr.bf16.mxu0 %v464
      %1551 = vmatmul.mubr.bf16.gmra.mxu0 %v463
      %v1552 = vpop.f32.mrf.mxu0
      %v1553 = vadd.f32 %v1264, %v1552
      %v1554 = vpop.f32.mrf.mxu0
      %v1555 = vpop.f32.mrf.mxu0
      %v1556 = vadd.f32 %v1267, %v1555
      %v1557 = vpop.f32.mrf.mxu0
      %1558 = vmatprep.mubr.bf16.mxu0 %v472
      %1559 = vmatmul.mubr.bf16.gmra.mxu0 %v471
      %v1560 = vpop.f32.mrf.mxu0
      %v1561 = vadd.f32 %v1272, %v1560
      %v1562 = vpop.f32.mrf.mxu0
      %v1563 = vpop.f32.mrf.mxu0
      %v1564 = vadd.f32 %v1275, %v1563
      %v1565 = vpop.f32.mrf.mxu0
      %1566 = vmatprep.mubr.bf16.mxu0 %v480
      %1567 = vmatmul.mubr.bf16.gmra.mxu0 %v479
      %v1568 = vpop.f32.mrf.mxu0
      %v1569 = vadd.f32 %v1280, %v1568
      %v1570 = vpop.f32.mrf.mxu0
      %v1571 = vpop.f32.mrf.mxu0
      %v1572 = vadd.f32 %v1283, %v1571
      %v1573 = vpop.f32.mrf.mxu0
      %1574 = vmatprep.mubr.bf16.mxu0 %v488
      %1575 = vmatmul.mubr.bf16.gmra.mxu0 %v487
      %v1576 = vpop.f32.mrf.mxu0
      %v1577 = vadd.f32 %v1288, %v1576
      %v1578 = vpop.f32.mrf.mxu0
      %v1579 = vpop.f32.mrf.mxu0
      %v1580 = vadd.f32 %v1291, %v1579
      %v1581 = vpop.f32.mrf.mxu0
      %1582 = vmatprep.mubr.bf16.mxu0 %v496
      %1583 = vmatmul.mubr.bf16.gmra.mxu0 %v495
      %v1584 = vpop.f32.mrf.mxu0
      %v1585 = vadd.f32 %v1296, %v1584
      %v1586 = vpop.f32.mrf.mxu0
      %v1587 = vpop.f32.mrf.mxu0
      %v1588 = vadd.f32 %v1299, %v1587
      %v1589 = vpop.f32.mrf.mxu0
      %1590 = vmatprep.mubr.bf16.mxu0 %v504
      %1591 = vmatmul.mubr.bf16.gmra.mxu0 %v503
      %v1592 = vpop.f32.mrf.mxu0
      %v1593 = vadd.f32 %v1304, %v1592
      %v1594 = vpop.f32.mrf.mxu0
      %v1595 = vpop.f32.mrf.mxu0
      %v1596 = vadd.f32 %v1307, %v1595
      %v1597 = vpop.f32.mrf.mxu0
      %1598 = vmatprep.mubr.bf16.mxu0 %v512
      %1599 = vmatmul.mubr.bf16.gmra.mxu0 %v511
      %v1600 = vpop.f32.mrf.mxu0
      %v1601 = vadd.f32 %v1312, %v1600
      %v1602 = vpop.f32.mrf.mxu0
      %v1603 = vpop.f32.mrf.mxu0
      %v1604 = vadd.f32 %v1315, %v1603
      %v1605 = vpop.f32.mrf.mxu0
      %1606 = vmatprep.mubr.bf16.mxu0 %v520
      %1607 = vmatmul.mubr.bf16.gmra.mxu0 %v519
      %v1608 = vpop.f32.mrf.mxu0
      %v1609 = vadd.f32 %v1320, %v1608
      %v1610 = vpop.f32.mrf.mxu0
      %v1611 = vpop.f32.mrf.mxu0
      %v1612 = vadd.f32 %v1323, %v1611
      %v1613 = vpop.f32.mrf.mxu0
      %1614 = vmatprep.mubr.bf16.mxu0 %v528
      %1615 = vmatmul.mubr.bf16.gmra.mxu0 %v527
      %v1616 = vpop.f32.mrf.mxu0
      %v1617 = vadd.f32 %v1328, %v1616
      %v1618 = vpop.f32.mrf.mxu0
      %v1619 = vpop.f32.mrf.mxu0
      %v1620 = vadd.f32 %v1331, %v1619
      %v1621 = vpop.f32.mrf.mxu0
      %1622 = vmatprep.mubr.bf16.mxu0 %v536
      %1623 = vmatmul.mubr.bf16.gmra.mxu0 %v535
      %v1624 = vpop.f32.mrf.mxu0
      %v1625 = vadd.f32 %v1336, %v1624
      %v1626 = vpop.f32.mrf.mxu0
      %v1627 = vpop.f32.mrf.mxu0
      %v1628 = vadd.f32 %v1339, %v1627
      %v1629 = vpop.f32.mrf.mxu0
      %1630 = vmatprep.mubr.bf16.mxu0 %v544
      %1631 = vmatmul.mubr.bf16.gmra.mxu0 %v543
      %v1632 = vpop.f32.mrf.mxu0
      %v1633 = vadd.f32 %v1344, %v1632
      %v1634 = vpop.f32.mrf.mxu0
      %v1635 = vpop.f32.mrf.mxu0
      %v1636 = vadd.f32 %v1347, %v1635
      %v1637 = vpop.f32.mrf.mxu0
      %1638 = vmatprep.mubr.bf16.mxu0 %v552
      %1639 = vmatmul.mubr.bf16.gmra.mxu0 %v551
      %v1640 = vpop.f32.mrf.mxu0
      %v1641 = vadd.f32 %v1352, %v1640
      %v1642 = vpop.f32.mrf.mxu0
      %v1643 = vpop.f32.mrf.mxu0
      %v1644 = vadd.f32 %v1355, %v1643
      %v1645 = vpop.f32.mrf.mxu0
      %1646 = vmatprep.mubr.bf16.mxu0 %v560
      %1647 = vmatmul.mubr.bf16.gmra.mxu0 %v559
      %v1648 = vpop.f32.mrf.mxu0
      %v1649 = vadd.f32 %v1360, %v1648
      %v1650 = vpop.f32.mrf.mxu0
      %v1651 = vpop.f32.mrf.mxu0
      %v1652 = vadd.f32 %v1363, %v1651
      %v1653 = vpop.f32.mrf.mxu0
      %1654 = vmatprep.mubr.bf16.mxu0 %v568
      %1655 = vmatmul.mubr.bf16.gmra.mxu0 %v567
      %v1656 = vpop.f32.mrf.mxu0
      %v1657 = vadd.f32 %v1368, %v1656
      %v1658 = vpop.f32.mrf.mxu0
      %v1659 = vpop.f32.mrf.mxu0
      %v1660 = vadd.f32 %v1371, %v1659
      %v1661 = vpop.f32.mrf.mxu0
      %1662 = vdwg.mxu0
      %1663 = vmatprep.subr.bf16.mxu0 0
      %1664 = vmatpush1.bf16.msra.mxu0 %v996
      %1665 = vmatprep.subr.bf16.mxu0 0
      %1666 = vmatpush1.bf16.msra.mxu0 %v995
      %1667 = vmatprep.subr.bf16.mxu0 0
      %1668 = vmatpush1.bf16.msra.mxu0 %v994
      %1669 = vmatprep.subr.bf16.mxu0 0
      %1670 = vmatpush1.bf16.msra.mxu0 %v993
      %1671 = vmatprep.subr.bf16.mxu0 0
      %1672 = vmatpush1.bf16.msra.mxu0 %v992
      %1673 = vmatprep.subr.bf16.mxu0 0
      %1674 = vmatpush1.bf16.msra.mxu0 %v991
      %1675 = vmatprep.subr.bf16.mxu0 0
      %1676 = vmatpush1.bf16.msra.mxu0 %v990
      %1677 = vmatprep.subr.bf16.mxu0 0
      %1678 = vmatpush1.bf16.msra.mxu0 %v989
      %1679 = vmatprep.subr.bf16.mxu0 0
      %1680 = vmatpush2.bf16.msra.mxu0 %v1004
      %1681 = vmatprep.subr.bf16.mxu0 0
      %1682 = vmatpush2.bf16.msra.mxu0 %v1003
      %1683 = vmatprep.subr.bf16.mxu0 0
      %1684 = vmatpush2.bf16.msra.mxu0 %v1002
      %1685 = vmatprep.subr.bf16.mxu0 0
      %1686 = vmatpush2.bf16.msra.mxu0 %v1001
      %1687 = vmatprep.subr.bf16.mxu0 0
      %1688 = vmatpush2.bf16.msra.mxu0 %v1000
      %1689 = vmatprep.subr.bf16.mxu0 0
      %1690 = vmatpush2.bf16.msra.mxu0 %v999
      %1691 = vmatprep.subr.bf16.mxu0 0
      %1692 = vmatpush2.bf16.msra.mxu0 %v998
      %1693 = vmatprep.subr.bf16.mxu0 0
      %1694 = vmatpush2.bf16.msra.mxu0 %v997
      %1695 = vmatprep.mubr.bf16.mxu0 %v322
      %1696 = vmatmul.mubr.bf16.gmra.mxu0 %v321
      %v1697 = vpop.f32.mrf.mxu0
      %v1698 = vadd.f32 %v1409, %v1697
      %v1699 = vpop.f32.mrf.mxu0
      %v1700 = vpop.f32.mrf.mxu0
      %v1701 = vadd.f32 %v1412, %v1700
      %v1702 = vpop.f32.mrf.mxu0
      %1703 = vmatprep.mubr.bf16.mxu0 %v330
      %1704 = vmatmul.mubr.bf16.gmra.mxu0 %v329
      %v1705 = vpop.f32.mrf.mxu0
      %v1706 = vadd.f32 %v1417, %v1705
      %v1707 = vpop.f32.mrf.mxu0
      %v1708 = vpop.f32.mrf.mxu0
      %v1709 = vadd.f32 %v1420, %v1708
      %v1710 = vpop.f32.mrf.mxu0
      %1711 = vmatprep.mubr.bf16.mxu0 %v338
      %1712 = vmatmul.mubr.bf16.gmra.mxu0 %v337
      %v1713 = vpop.f32.mrf.mxu0
      %v1714 = vadd.f32 %v1425, %v1713
      %v1715 = vpop.f32.mrf.mxu0
      %v1716 = vpop.f32.mrf.mxu0
      %v1717 = vadd.f32 %v1428, %v1716
      %v1718 = vpop.f32.mrf.mxu0
      %1719 = vmatprep.mubr.bf16.mxu0 %v346
      %1720 = vmatmul.mubr.bf16.gmra.mxu0 %v345
      %v1721 = vpop.f32.mrf.mxu0
      %v1722 = vadd.f32 %v1433, %v1721
      %v1723 = vpop.f32.mrf.mxu0
      %v1724 = vpop.f32.mrf.mxu0
      %v1725 = vadd.f32 %v1436, %v1724
      %v1726 = vpop.f32.mrf.mxu0
      %1727 = vmatprep.mubr.bf16.mxu0 %v354
      %1728 = vmatmul.mubr.bf16.gmra.mxu0 %v353
      %v1729 = vpop.f32.mrf.mxu0
      %v1730 = vadd.f32 %v1441, %v1729
      %v1731 = vpop.f32.mrf.mxu0
      %v1732 = vpop.f32.mrf.mxu0
      %v1733 = vadd.f32 %v1444, %v1732
      %v1734 = vpop.f32.mrf.mxu0
      %1735 = vmatprep.mubr.bf16.mxu0 %v362
      %1736 = vmatmul.mubr.bf16.gmra.mxu0 %v361
      %v1737 = vpop.f32.mrf.mxu0
      %v1738 = vadd.f32 %v1449, %v1737
      %v1739 = vpop.f32.mrf.mxu0
      %v1740 = vpop.f32.mrf.mxu0
      %v1741 = vadd.f32 %v1452, %v1740
      %v1742 = vpop.f32.mrf.mxu0
      %1743 = vmatprep.mubr.bf16.mxu0 %v370
      %1744 = vmatmul.mubr.bf16.gmra.mxu0 %v369
      %v1745 = vpop.f32.mrf.mxu0
      %v1746 = vadd.f32 %v1457, %v1745
      %v1747 = vpop.f32.mrf.mxu0
      %v1748 = vpop.f32.mrf.mxu0
      %v1749 = vadd.f32 %v1460, %v1748
      %v1750 = vpop.f32.mrf.mxu0
      %1751 = vmatprep.mubr.bf16.mxu0 %v378
      %1752 = vmatmul.mubr.bf16.gmra.mxu0 %v377
      %v1753 = vpop.f32.mrf.mxu0
      %v1754 = vadd.f32 %v1465, %v1753
      %v1755 = vpop.f32.mrf.mxu0
      %v1756 = vpop.f32.mrf.mxu0
      %v1757 = vadd.f32 %v1468, %v1756
      %v1758 = vpop.f32.mrf.mxu0
      %1759 = vmatprep.mubr.bf16.mxu0 %v386
      %1760 = vmatmul.mubr.bf16.gmra.mxu0 %v385
      %v1761 = vpop.f32.mrf.mxu0
      %v1762 = vadd.f32 %v1473, %v1761
      %v1763 = vpop.f32.mrf.mxu0
      %v1764 = vpop.f32.mrf.mxu0
      %v1765 = vadd.f32 %v1476, %v1764
      %v1766 = vpop.f32.mrf.mxu0
      %1767 = vmatprep.mubr.bf16.mxu0 %v394
      %1768 = vmatmul.mubr.bf16.gmra.mxu0 %v393
      %v1769 = vpop.f32.mrf.mxu0
      %v1770 = vadd.f32 %v1481, %v1769
      %v1771 = vpop.f32.mrf.mxu0
      %v1772 = vpop.f32.mrf.mxu0
      %v1773 = vadd.f32 %v1484, %v1772
      %v1774 = vpop.f32.mrf.mxu0
      %1775 = vmatprep.mubr.bf16.mxu0 %v402
      %1776 = vmatmul.mubr.bf16.gmra.mxu0 %v401
      %v1777 = vpop.f32.mrf.mxu0
      %v1778 = vadd.f32 %v1489, %v1777
      %v1779 = vpop.f32.mrf.mxu0
      %v1780 = vpop.f32.mrf.mxu0
      %v1781 = vadd.f32 %v1492, %v1780
      %v1782 = vpop.f32.mrf.mxu0
      %1783 = vmatprep.mubr.bf16.mxu0 %v410
      %1784 = vmatmul.mubr.bf16.gmra.mxu0 %v409
      %v1785 = vpop.f32.mrf.mxu0
      %v1786 = vadd.f32 %v1497, %v1785
      %v1787 = vpop.f32.mrf.mxu0
      %v1788 = vpop.f32.mrf.mxu0
      %v1789 = vadd.f32 %v1500, %v1788
      %v1790 = vpop.f32.mrf.mxu0
      %1791 = vmatprep.mubr.bf16.mxu0 %v418
      %1792 = vmatmul.mubr.bf16.gmra.mxu0 %v417
      %v1793 = vpop.f32.mrf.mxu0
      %v1794 = vadd.f32 %v1505, %v1793
      %v1795 = vpop.f32.mrf.mxu0
      %v1796 = vpop.f32.mrf.mxu0
      %v1797 = vadd.f32 %v1508, %v1796
      %v1798 = vpop.f32.mrf.mxu0
      %1799 = vmatprep.mubr.bf16.mxu0 %v426
      %1800 = vmatmul.mubr.bf16.gmra.mxu0 %v425
      %v1801 = vpop.f32.mrf.mxu0
      %v1802 = vadd.f32 %v1513, %v1801
      %v1803 = vpop.f32.mrf.mxu0
      %v1804 = vpop.f32.mrf.mxu0
      %v1805 = vadd.f32 %v1516, %v1804
      %v1806 = vpop.f32.mrf.mxu0
      %1807 = vmatprep.mubr.bf16.mxu0 %v434
      %1808 = vmatmul.mubr.bf16.gmra.mxu0 %v433
      %v1809 = vpop.f32.mrf.mxu0
      %v1810 = vadd.f32 %v1521, %v1809
      %v1811 = vpop.f32.mrf.mxu0
      %v1812 = vpop.f32.mrf.mxu0
      %v1813 = vadd.f32 %v1524, %v1812
      %v1814 = vpop.f32.mrf.mxu0
      %1815 = vmatprep.mubr.bf16.mxu0 %v442
      %1816 = vmatmul.mubr.bf16.gmra.mxu0 %v441
      %v1817 = vpop.f32.mrf.mxu0
      %v1818 = vadd.f32 %v1529, %v1817
      %v1819 = vpop.f32.mrf.mxu0
      %v1820 = vpop.f32.mrf.mxu0
      %v1821 = vadd.f32 %v1532, %v1820
      %v1822 = vpop.f32.mrf.mxu0
      %1823 = vmatprep.mubr.bf16.mxu0 %v450
      %1824 = vmatmul.mubr.bf16.gmra.mxu0 %v449
      %v1825 = vpop.f32.mrf.mxu0
      %v1826 = vadd.f32 %v1537, %v1825
      %v1827 = vpop.f32.mrf.mxu0
      %v1828 = vpop.f32.mrf.mxu0
      %v1829 = vadd.f32 %v1540, %v1828
      %v1830 = vpop.f32.mrf.mxu0
      %1831 = vmatprep.mubr.bf16.mxu0 %v458
      %1832 = vmatmul.mubr.bf16.gmra.mxu0 %v457
      %v1833 = vpop.f32.mrf.mxu0
      %v1834 = vadd.f32 %v1545, %v1833
      %v1835 = vpop.f32.mrf.mxu0
      %v1836 = vpop.f32.mrf.mxu0
      %v1837 = vadd.f32 %v1548, %v1836
      %v1838 = vpop.f32.mrf.mxu0
      %1839 = vmatprep.mubr.bf16.mxu0 %v466
      %1840 = vmatmul.mubr.bf16.gmra.mxu0 %v465
      %v1841 = vpop.f32.mrf.mxu0
      %v1842 = vadd.f32 %v1553, %v1841
      %v1843 = vpop.f32.mrf.mxu0
      %v1844 = vpop.f32.mrf.mxu0
      %v1845 = vadd.f32 %v1556, %v1844
      %v1846 = vpop.f32.mrf.mxu0
      %1847 = vmatprep.mubr.bf16.mxu0 %v474
      %1848 = vmatmul.mubr.bf16.gmra.mxu0 %v473
      %v1849 = vpop.f32.mrf.mxu0
      %v1850 = vadd.f32 %v1561, %v1849
      %v1851 = vpop.f32.mrf.mxu0
      %v1852 = vpop.f32.mrf.mxu0
      %v1853 = vadd.f32 %v1564, %v1852
      %v1854 = vpop.f32.mrf.mxu0
      %1855 = vmatprep.mubr.bf16.mxu0 %v482
      %1856 = vmatmul.mubr.bf16.gmra.mxu0 %v481
      %v1857 = vpop.f32.mrf.mxu0
      %v1858 = vadd.f32 %v1569, %v1857
      %v1859 = vpop.f32.mrf.mxu0
      %v1860 = vpop.f32.mrf.mxu0
      %v1861 = vadd.f32 %v1572, %v1860
      %v1862 = vpop.f32.mrf.mxu0
      %1863 = vmatprep.mubr.bf16.mxu0 %v490
      %1864 = vmatmul.mubr.bf16.gmra.mxu0 %v489
      %v1865 = vpop.f32.mrf.mxu0
      %v1866 = vadd.f32 %v1577, %v1865
      %v1867 = vpop.f32.mrf.mxu0
      %v1868 = vpop.f32.mrf.mxu0
      %v1869 = vadd.f32 %v1580, %v1868
      %v1870 = vpop.f32.mrf.mxu0
      %1871 = vmatprep.mubr.bf16.mxu0 %v498
      %1872 = vmatmul.mubr.bf16.gmra.mxu0 %v497
      %v1873 = vpop.f32.mrf.mxu0
      %v1874 = vadd.f32 %v1585, %v1873
      %v1875 = vpop.f32.mrf.mxu0
      %v1876 = vpop.f32.mrf.mxu0
      %v1877 = vadd.f32 %v1588, %v1876
      %v1878 = vpop.f32.mrf.mxu0
      %1879 = vmatprep.mubr.bf16.mxu0 %v506
      %1880 = vmatmul.mubr.bf16.gmra.mxu0 %v505
      %v1881 = vpop.f32.mrf.mxu0
      %v1882 = vadd.f32 %v1593, %v1881
      %v1883 = vpop.f32.mrf.mxu0
      %v1884 = vpop.f32.mrf.mxu0
      %v1885 = vadd.f32 %v1596, %v1884
      %v1886 = vpop.f32.mrf.mxu0
      %1887 = vmatprep.mubr.bf16.mxu0 %v514
      %1888 = vmatmul.mubr.bf16.gmra.mxu0 %v513
      %v1889 = vpop.f32.mrf.mxu0
      %v1890 = vadd.f32 %v1601, %v1889
      %v1891 = vpop.f32.mrf.mxu0
      %v1892 = vpop.f32.mrf.mxu0
      %v1893 = vadd.f32 %v1604, %v1892
      %v1894 = vpop.f32.mrf.mxu0
      %1895 = vmatprep.mubr.bf16.mxu0 %v522
      %1896 = vmatmul.mubr.bf16.gmra.mxu0 %v521
      %v1897 = vpop.f32.mrf.mxu0
      %v1898 = vadd.f32 %v1609, %v1897
      %v1899 = vpop.f32.mrf.mxu0
      %v1900 = vpop.f32.mrf.mxu0
      %v1901 = vadd.f32 %v1612, %v1900
      %v1902 = vpop.f32.mrf.mxu0
      %1903 = vmatprep.mubr.bf16.mxu0 %v530
      %1904 = vmatmul.mubr.bf16.gmra.mxu0 %v529
      %v1905 = vpop.f32.mrf.mxu0
      %v1906 = vadd.f32 %v1617, %v1905
      %v1907 = vpop.f32.mrf.mxu0
      %v1908 = vpop.f32.mrf.mxu0
      %v1909 = vadd.f32 %v1620, %v1908
      %v1910 = vpop.f32.mrf.mxu0
      %1911 = vmatprep.mubr.bf16.mxu0 %v538
      %1912 = vmatmul.mubr.bf16.gmra.mxu0 %v537
      %v1913 = vpop.f32.mrf.mxu0
      %v1914 = vadd.f32 %v1625, %v1913
      %v1915 = vpop.f32.mrf.mxu0
      %v1916 = vpop.f32.mrf.mxu0
      %v1917 = vadd.f32 %v1628, %v1916
      %v1918 = vpop.f32.mrf.mxu0
      %1919 = vmatprep.mubr.bf16.mxu0 %v546
      %1920 = vmatmul.mubr.bf16.gmra.mxu0 %v545
      %v1921 = vpop.f32.mrf.mxu0
      %v1922 = vadd.f32 %v1633, %v1921
      %v1923 = vpop.f32.mrf.mxu0
      %v1924 = vpop.f32.mrf.mxu0
      %v1925 = vadd.f32 %v1636, %v1924
      %v1926 = vpop.f32.mrf.mxu0
      %1927 = vmatprep.mubr.bf16.mxu0 %v554
      %1928 = vmatmul.mubr.bf16.gmra.mxu0 %v553
      %v1929 = vpop.f32.mrf.mxu0
      %v1930 = vadd.f32 %v1641, %v1929
      %v1931 = vpop.f32.mrf.mxu0
      %v1932 = vpop.f32.mrf.mxu0
      %v1933 = vadd.f32 %v1644, %v1932
      %v1934 = vpop.f32.mrf.mxu0
      %1935 = vmatprep.mubr.bf16.mxu0 %v562
      %1936 = vmatmul.mubr.bf16.gmra.mxu0 %v561
      %v1937 = vpop.f32.mrf.mxu0
      %v1938 = vadd.f32 %v1649, %v1937
      %v1939 = vpop.f32.mrf.mxu0
      %v1940 = vpop.f32.mrf.mxu0
      %v1941 = vadd.f32 %v1652, %v1940
      %v1942 = vpop.f32.mrf.mxu0
      %1943 = vmatprep.mubr.bf16.mxu0 %v570
      %1944 = vmatmul.mubr.bf16.gmra.mxu0 %v569
      %v1945 = vpop.f32.mrf.mxu0
      %v1946 = vadd.f32 %v1657, %v1945
      %v1947 = vpop.f32.mrf.mxu0
      %v1948 = vpop.f32.mrf.mxu0
      %v1949 = vadd.f32 %v1660, %v1948
      %v1950 = vpop.f32.mrf.mxu0
      %1951 = vdwg.mxu0
      %1952 = vmatprep.subr.bf16.mxu0 0
      %1953 = vmatpush1.bf16.msra.mxu0 %v1012
      %1954 = vmatprep.subr.bf16.mxu0 0
      %1955 = vmatpush1.bf16.msra.mxu0 %v1011
      %1956 = vmatprep.subr.bf16.mxu0 0
      %1957 = vmatpush1.bf16.msra.mxu0 %v1010
      %1958 = vmatprep.subr.bf16.mxu0 0
      %1959 = vmatpush1.bf16.msra.mxu0 %v1009
      %1960 = vmatprep.subr.bf16.mxu0 0
      %1961 = vmatpush1.bf16.msra.mxu0 %v1008
      %1962 = vmatprep.subr.bf16.mxu0 0
      %1963 = vmatpush1.bf16.msra.mxu0 %v1007
      %1964 = vmatprep.subr.bf16.mxu0 0
      %1965 = vmatpush1.bf16.msra.mxu0 %v1006
      %1966 = vmatprep.subr.bf16.mxu0 0
      %1967 = vmatpush1.bf16.msra.mxu0 %v1005
      %1968 = vmatprep.subr.bf16.mxu0 0
      %1969 = vmatpush2.bf16.msra.mxu0 %v1020
      %1970 = vmatprep.subr.bf16.mxu0 0
      %1971 = vmatpush2.bf16.msra.mxu0 %v1019
      %1972 = vmatprep.subr.bf16.mxu0 0
      %1973 = vmatpush2.bf16.msra.mxu0 %v1018
      %1974 = vmatprep.subr.bf16.mxu0 0
      %1975 = vmatpush2.bf16.msra.mxu0 %v1017
      %1976 = vmatprep.subr.bf16.mxu0 0
      %1977 = vmatpush2.bf16.msra.mxu0 %v1016
      %1978 = vmatprep.subr.bf16.mxu0 0
      %1979 = vmatpush2.bf16.msra.mxu0 %v1015
      %1980 = vmatprep.subr.bf16.mxu0 0
      %1981 = vmatpush2.bf16.msra.mxu0 %v1014
      %1982 = vmatprep.subr.bf16.mxu0 0
      %1983 = vmatpush2.bf16.msra.mxu0 %v1013
      %1984 = vmatprep.mubr.bf16.mxu0 %v324
      %1985 = vmatmul.mubr.bf16.gmra.mxu0 %v323
      %v1986 = vpop.f32.mrf.mxu0
      %v1987 = vadd.f32 %v1698, %v1986
      %v1988 = vpop.f32.mrf.mxu0
      %v1989 = vpop.f32.mrf.mxu0
      %v1990 = vadd.f32 %v1701, %v1989
      %v1991 = vpop.f32.mrf.mxu0
      %1992 = vmatprep.mubr.bf16.mxu0 %v332
      %1993 = vmatmul.mubr.bf16.gmra.mxu0 %v331
      %v1994 = vpop.f32.mrf.mxu0
      %v1995 = vadd.f32 %v1706, %v1994
      %v1996 = vpop.f32.mrf.mxu0
      %v1997 = vpop.f32.mrf.mxu0
      %v1998 = vadd.f32 %v1709, %v1997
      %v1999 = vpop.f32.mrf.mxu0
      %2000 = vmatprep.mubr.bf16.mxu0 %v340
      %2001 = vmatmul.mubr.bf16.gmra.mxu0 %v339
      %v2002 = vpop.f32.mrf.mxu0
      %v2003 = vadd.f32 %v1714, %v2002
      %v2004 = vpop.f32.mrf.mxu0
      %v2005 = vpop.f32.mrf.mxu0
      %v2006 = vadd.f32 %v1717, %v2005
      %v2007 = vpop.f32.mrf.mxu0
      %2008 = vmatprep.mubr.bf16.mxu0 %v348
      %2009 = vmatmul.mubr.bf16.gmra.mxu0 %v347
      %v2010 = vpop.f32.mrf.mxu0
      %v2011 = vadd.f32 %v1722, %v2010
      %v2012 = vpop.f32.mrf.mxu0
      %v2013 = vpop.f32.mrf.mxu0
      %v2014 = vadd.f32 %v1725, %v2013
      %v2015 = vpop.f32.mrf.mxu0
      %2016 = vmatprep.mubr.bf16.mxu0 %v356
      %2017 = vmatmul.mubr.bf16.gmra.mxu0 %v355
      %v2018 = vpop.f32.mrf.mxu0
      %v2019 = vadd.f32 %v1730, %v2018
      %v2020 = vpop.f32.mrf.mxu0
      %v2021 = vpop.f32.mrf.mxu0
      %v2022 = vadd.f32 %v1733, %v2021
      %v2023 = vpop.f32.mrf.mxu0
      %2024 = vmatprep.mubr.bf16.mxu0 %v364
      %2025 = vmatmul.mubr.bf16.gmra.mxu0 %v363
      %v2026 = vpop.f32.mrf.mxu0
      %v2027 = vadd.f32 %v1738, %v2026
      %v2028 = vpop.f32.mrf.mxu0
      %v2029 = vpop.f32.mrf.mxu0
      %v2030 = vadd.f32 %v1741, %v2029
      %v2031 = vpop.f32.mrf.mxu0
      %2032 = vmatprep.mubr.bf16.mxu0 %v372
      %2033 = vmatmul.mubr.bf16.gmra.mxu0 %v371
      %v2034 = vpop.f32.mrf.mxu0
      %v2035 = vadd.f32 %v1746, %v2034
      %v2036 = vpop.f32.mrf.mxu0
      %v2037 = vpop.f32.mrf.mxu0
      %v2038 = vadd.f32 %v1749, %v2037
      %v2039 = vpop.f32.mrf.mxu0
      %2040 = vmatprep.mubr.bf16.mxu0 %v380
      %2041 = vmatmul.mubr.bf16.gmra.mxu0 %v379
      %v2042 = vpop.f32.mrf.mxu0
      %v2043 = vadd.f32 %v1754, %v2042
      %v2044 = vpop.f32.mrf.mxu0
      %v2045 = vpop.f32.mrf.mxu0
      %v2046 = vadd.f32 %v1757, %v2045
      %v2047 = vpop.f32.mrf.mxu0
      %2048 = vmatprep.mubr.bf16.mxu0 %v388
      %2049 = vmatmul.mubr.bf16.gmra.mxu0 %v387
      %v2050 = vpop.f32.mrf.mxu0
      %v2051 = vadd.f32 %v1762, %v2050
      %v2052 = vpop.f32.mrf.mxu0
      %v2053 = vpop.f32.mrf.mxu0
      %v2054 = vadd.f32 %v1765, %v2053
      %v2055 = vpop.f32.mrf.mxu0
      %2056 = vmatprep.mubr.bf16.mxu0 %v396
      %2057 = vmatmul.mubr.bf16.gmra.mxu0 %v395
      %v2058 = vpop.f32.mrf.mxu0
      %v2059 = vadd.f32 %v1770, %v2058
      %v2060 = vpop.f32.mrf.mxu0
      %v2061 = vpop.f32.mrf.mxu0
      %v2062 = vadd.f32 %v1773, %v2061
      %v2063 = vpop.f32.mrf.mxu0
      %2064 = vmatprep.mubr.bf16.mxu0 %v404
      %2065 = vmatmul.mubr.bf16.gmra.mxu0 %v403
      %v2066 = vpop.f32.mrf.mxu0
      %v2067 = vadd.f32 %v1778, %v2066
      %v2068 = vpop.f32.mrf.mxu0
      %v2069 = vpop.f32.mrf.mxu0
      %v2070 = vadd.f32 %v1781, %v2069
      %v2071 = vpop.f32.mrf.mxu0
      %2072 = vmatprep.mubr.bf16.mxu0 %v412
      %2073 = vmatmul.mubr.bf16.gmra.mxu0 %v411
      %v2074 = vpop.f32.mrf.mxu0
      %v2075 = vadd.f32 %v1786, %v2074
      %v2076 = vpop.f32.mrf.mxu0
      %v2077 = vpop.f32.mrf.mxu0
      %v2078 = vadd.f32 %v1789, %v2077
      %v2079 = vpop.f32.mrf.mxu0
      %2080 = vmatprep.mubr.bf16.mxu0 %v420
      %2081 = vmatmul.mubr.bf16.gmra.mxu0 %v419
      %v2082 = vpop.f32.mrf.mxu0
      %v2083 = vadd.f32 %v1794, %v2082
      %v2084 = vpop.f32.mrf.mxu0
      %v2085 = vpop.f32.mrf.mxu0
      %v2086 = vadd.f32 %v1797, %v2085
      %v2087 = vpop.f32.mrf.mxu0
      %2088 = vmatprep.mubr.bf16.mxu0 %v428
      %2089 = vmatmul.mubr.bf16.gmra.mxu0 %v427
      %v2090 = vpop.f32.mrf.mxu0
      %v2091 = vadd.f32 %v1802, %v2090
      %v2092 = vpop.f32.mrf.mxu0
      %v2093 = vpop.f32.mrf.mxu0
      %v2094 = vadd.f32 %v1805, %v2093
      %v2095 = vpop.f32.mrf.mxu0
      %2096 = vmatprep.mubr.bf16.mxu0 %v436
      %2097 = vmatmul.mubr.bf16.gmra.mxu0 %v435
      %v2098 = vpop.f32.mrf.mxu0
      %v2099 = vadd.f32 %v1810, %v2098
      %v2100 = vpop.f32.mrf.mxu0
      %v2101 = vpop.f32.mrf.mxu0
      %v2102 = vadd.f32 %v1813, %v2101
      %v2103 = vpop.f32.mrf.mxu0
      %2104 = vmatprep.mubr.bf16.mxu0 %v444
      %2105 = vmatmul.mubr.bf16.gmra.mxu0 %v443
      %v2106 = vpop.f32.mrf.mxu0
      %v2107 = vadd.f32 %v1818, %v2106
      %v2108 = vpop.f32.mrf.mxu0
      %v2109 = vpop.f32.mrf.mxu0
      %v2110 = vadd.f32 %v1821, %v2109
      %v2111 = vpop.f32.mrf.mxu0
      %2112 = vmatprep.mubr.bf16.mxu0 %v452
      %2113 = vmatmul.mubr.bf16.gmra.mxu0 %v451
      %v2114 = vpop.f32.mrf.mxu0
      %v2115 = vadd.f32 %v1826, %v2114
      %v2116 = vpop.f32.mrf.mxu0
      %v2117 = vpop.f32.mrf.mxu0
      %v2118 = vadd.f32 %v1829, %v2117
      %v2119 = vpop.f32.mrf.mxu0
      %2120 = vmatprep.mubr.bf16.mxu0 %v460
      %2121 = vmatmul.mubr.bf16.gmra.mxu0 %v459
      %v2122 = vpop.f32.mrf.mxu0
      %v2123 = vadd.f32 %v1834, %v2122
      %v2124 = vpop.f32.mrf.mxu0
      %v2125 = vpop.f32.mrf.mxu0
      %v2126 = vadd.f32 %v1837, %v2125
      %v2127 = vpop.f32.mrf.mxu0
      %2128 = vmatprep.mubr.bf16.mxu0 %v468
      %2129 = vmatmul.mubr.bf16.gmra.mxu0 %v467
      %v2130 = vpop.f32.mrf.mxu0
      %v2131 = vadd.f32 %v1842, %v2130
      %v2132 = vpop.f32.mrf.mxu0
      %v2133 = vpop.f32.mrf.mxu0
      %v2134 = vadd.f32 %v1845, %v2133
      %v2135 = vpop.f32.mrf.mxu0
      %2136 = vmatprep.mubr.bf16.mxu0 %v476
      %2137 = vmatmul.mubr.bf16.gmra.mxu0 %v475
      %v2138 = vpop.f32.mrf.mxu0
      %v2139 = vadd.f32 %v1850, %v2138
      %v2140 = vpop.f32.mrf.mxu0
      %v2141 = vpop.f32.mrf.mxu0
      %v2142 = vadd.f32 %v1853, %v2141
      %v2143 = vpop.f32.mrf.mxu0
      %2144 = vmatprep.mubr.bf16.mxu0 %v484
      %2145 = vmatmul.mubr.bf16.gmra.mxu0 %v483
      %v2146 = vpop.f32.mrf.mxu0
      %v2147 = vadd.f32 %v1858, %v2146
      %v2148 = vpop.f32.mrf.mxu0
      %v2149 = vpop.f32.mrf.mxu0
      %v2150 = vadd.f32 %v1861, %v2149
      %v2151 = vpop.f32.mrf.mxu0
      %2152 = vmatprep.mubr.bf16.mxu0 %v492
      %2153 = vmatmul.mubr.bf16.gmra.mxu0 %v491
      %v2154 = vpop.f32.mrf.mxu0
      %v2155 = vadd.f32 %v1866, %v2154
      %v2156 = vpop.f32.mrf.mxu0
      %v2157 = vpop.f32.mrf.mxu0
      %v2158 = vadd.f32 %v1869, %v2157
      %v2159 = vpop.f32.mrf.mxu0
      %2160 = vmatprep.mubr.bf16.mxu0 %v500
      %2161 = vmatmul.mubr.bf16.gmra.mxu0 %v499
      %v2162 = vpop.f32.mrf.mxu0
      %v2163 = vadd.f32 %v1874, %v2162
      %v2164 = vpop.f32.mrf.mxu0
      %v2165 = vpop.f32.mrf.mxu0
      %v2166 = vadd.f32 %v1877, %v2165
      %v2167 = vpop.f32.mrf.mxu0
      %2168 = vmatprep.mubr.bf16.mxu0 %v508
      %2169 = vmatmul.mubr.bf16.gmra.mxu0 %v507
      %v2170 = vpop.f32.mrf.mxu0
      %v2171 = vadd.f32 %v1882, %v2170
      %v2172 = vpop.f32.mrf.mxu0
      %v2173 = vpop.f32.mrf.mxu0
      %v2174 = vadd.f32 %v1885, %v2173
      %v2175 = vpop.f32.mrf.mxu0
      %2176 = vmatprep.mubr.bf16.mxu0 %v516
      %2177 = vmatmul.mubr.bf16.gmra.mxu0 %v515
      %v2178 = vpop.f32.mrf.mxu0
      %v2179 = vadd.f32 %v1890, %v2178
      %v2180 = vpop.f32.mrf.mxu0
      %v2181 = vpop.f32.mrf.mxu0
      %v2182 = vadd.f32 %v1893, %v2181
      %v2183 = vpop.f32.mrf.mxu0
      %2184 = vmatprep.mubr.bf16.mxu0 %v524
      %2185 = vmatmul.mubr.bf16.gmra.mxu0 %v523
      %v2186 = vpop.f32.mrf.mxu0
      %v2187 = vadd.f32 %v1898, %v2186
      %v2188 = vpop.f32.mrf.mxu0
      %v2189 = vpop.f32.mrf.mxu0
      %v2190 = vadd.f32 %v1901, %v2189
      %v2191 = vpop.f32.mrf.mxu0
      %2192 = vmatprep.mubr.bf16.mxu0 %v532
      %2193 = vmatmul.mubr.bf16.gmra.mxu0 %v531
      %v2194 = vpop.f32.mrf.mxu0
      %v2195 = vadd.f32 %v1906, %v2194
      %v2196 = vpop.f32.mrf.mxu0
      %v2197 = vpop.f32.mrf.mxu0
      %v2198 = vadd.f32 %v1909, %v2197
      %v2199 = vpop.f32.mrf.mxu0
      %2200 = vmatprep.mubr.bf16.mxu0 %v540
      %2201 = vmatmul.mubr.bf16.gmra.mxu0 %v539
      %v2202 = vpop.f32.mrf.mxu0
      %v2203 = vadd.f32 %v1914, %v2202
      %v2204 = vpop.f32.mrf.mxu0
      %v2205 = vpop.f32.mrf.mxu0
      %v2206 = vadd.f32 %v1917, %v2205
      %v2207 = vpop.f32.mrf.mxu0
      %2208 = vmatprep.mubr.bf16.mxu0 %v548
      %2209 = vmatmul.mubr.bf16.gmra.mxu0 %v547
      %v2210 = vpop.f32.mrf.mxu0
      %v2211 = vadd.f32 %v1922, %v2210
      %v2212 = vpop.f32.mrf.mxu0
      %v2213 = vpop.f32.mrf.mxu0
      %v2214 = vadd.f32 %v1925, %v2213
      %v2215 = vpop.f32.mrf.mxu0
      %2216 = vmatprep.mubr.bf16.mxu0 %v556
      %2217 = vmatmul.mubr.bf16.gmra.mxu0 %v555
      %v2218 = vpop.f32.mrf.mxu0
      %v2219 = vadd.f32 %v1930, %v2218
      %v2220 = vpop.f32.mrf.mxu0
      %v2221 = vpop.f32.mrf.mxu0
      %v2222 = vadd.f32 %v1933, %v2221
      %v2223 = vpop.f32.mrf.mxu0
      %2224 = vmatprep.mubr.bf16.mxu0 %v564
      %2225 = vmatmul.mubr.bf16.gmra.mxu0 %v563
      %v2226 = vpop.f32.mrf.mxu0
      %v2227 = vadd.f32 %v1938, %v2226
      %v2228 = vpop.f32.mrf.mxu0
      %v2229 = vpop.f32.mrf.mxu0
      %v2230 = vadd.f32 %v1941, %v2229
      %v2231 = vpop.f32.mrf.mxu0
      %2232 = vmatprep.mubr.bf16.mxu0 %v572
      %2233 = vmatmul.mubr.bf16.gmra.mxu0 %v571
      %v2234 = vpop.f32.mrf.mxu0
      %v2235 = vadd.f32 %v1946, %v2234
      %v2236 = vpop.f32.mrf.mxu0
      %v2237 = vpop.f32.mrf.mxu0
      %v2238 = vadd.f32 %v1949, %v2237
      %v2239 = vpop.f32.mrf.mxu0
      %2240 = vdwg.mxu0
      %v2241 = vpack.c.bf16 %v1990, %v1987
      %v2242 = vpack.c.bf16 %v1998, %v1995
      %v2243 = vpack.c.bf16 %v2006, %v2003
      %v2244 = vpack.c.bf16 %v2014, %v2011
      %v2245 = vpack.c.bf16 %v2022, %v2019
      %v2246 = vpack.c.bf16 %v2030, %v2027
      %v2247 = vpack.c.bf16 %v2038, %v2035
      %v2248 = vpack.c.bf16 %v2046, %v2043
      %v2249 = vpack.c.bf16 %v2054, %v2051
      %v2250 = vpack.c.bf16 %v2062, %v2059
      %v2251 = vpack.c.bf16 %v2070, %v2067
      %v2252 = vpack.c.bf16 %v2078, %v2075
      %v2253 = vpack.c.bf16 %v2086, %v2083
      %v2254 = vpack.c.bf16 %v2094, %v2091
      %v2255 = vpack.c.bf16 %v2102, %v2099
      %v2256 = vpack.c.bf16 %v2110, %v2107
      %v2257 = vpack.c.bf16 %v2118, %v2115
      %v2258 = vpack.c.bf16 %v2126, %v2123
      %v2259 = vpack.c.bf16 %v2134, %v2131
      %v2260 = vpack.c.bf16 %v2142, %v2139
      %v2261 = vpack.c.bf16 %v2150, %v2147
      %v2262 = vpack.c.bf16 %v2158, %v2155
      %v2263 = vpack.c.bf16 %v2166, %v2163
      %v2264 = vpack.c.bf16 %v2174, %v2171
      %v2265 = vpack.c.bf16 %v2182, %v2179
      %v2266 = vpack.c.bf16 %v2190, %v2187
      %v2267 = vpack.c.bf16 %v2198, %v2195
      %v2268 = vpack.c.bf16 %v2206, %v2203
      %v2269 = vpack.c.bf16 %v2214, %v2211
      %v2270 = vpack.c.bf16 %v2222, %v2219
      %v2271 = vpack.c.bf16 %v2230, %v2227
      %v2272 = vpack.c.bf16 %v2238, %v2235
      %v2305 = vunpack.c.l.b16 %v2241
      %v2306 = vunpack.c.h.b16 %v2241
      %v2307 = vunpack.c.l.b16 %v2242
      %v2308 = vunpack.c.h.b16 %v2242
      %v2309 = vunpack.c.l.b16 %v2243
      %v2310 = vunpack.c.h.b16 %v2243
      %v2311 = vunpack.c.l.b16 %v2244
      %v2312 = vunpack.c.h.b16 %v2244
      %v2313 = vunpack.c.l.b16 %v2245
      %v2314 = vunpack.c.h.b16 %v2245
      %v2315 = vunpack.c.l.b16 %v2246
      %v2316 = vunpack.c.h.b16 %v2246
      %v2317 = vunpack.c.l.b16 %v2247
      %v2318 = vunpack.c.h.b16 %v2247
      %v2319 = vunpack.c.l.b16 %v2248
      %v2320 = vunpack.c.h.b16 %v2248
      %v2321 = vunpack.c.l.b16 %v2249
      %v2322 = vunpack.c.h.b16 %v2249
      %v2323 = vunpack.c.l.b16 %v2250
      %v2324 = vunpack.c.h.b16 %v2250
      %v2325 = vunpack.c.l.b16 %v2251
      %v2326 = vunpack.c.h.b16 %v2251
      %v2327 = vunpack.c.l.b16 %v2252
      %v2328 = vunpack.c.h.b16 %v2252
      %v2329 = vunpack.c.l.b16 %v2253
      %v2330 = vunpack.c.h.b16 %v2253
      %v2331 = vunpack.c.l.b16 %v2254
      %v2332 = vunpack.c.h.b16 %v2254
      %v2333 = vunpack.c.l.b16 %v2255
      %v2334 = vunpack.c.h.b16 %v2255
      %v2335 = vunpack.c.l.b16 %v2256
      %v2336 = vunpack.c.h.b16 %v2256
      %v2337 = vunpack.c.l.b16 %v2257
      %v2338 = vunpack.c.h.b16 %v2257
      %v2339 = vunpack.c.l.b16 %v2258
      %v2340 = vunpack.c.h.b16 %v2258
      %v2341 = vunpack.c.l.b16 %v2259
      %v2342 = vunpack.c.h.b16 %v2259
      %v2343 = vunpack.c.l.b16 %v2260
      %v2344 = vunpack.c.h.b16 %v2260
      %v2345 = vunpack.c.l.b16 %v2261
      %v2346 = vunpack.c.h.b16 %v2261
      %v2347 = vunpack.c.l.b16 %v2262
      %v2348 = vunpack.c.h.b16 %v2262
      %v2349 = vunpack.c.l.b16 %v2263
      %v2350 = vunpack.c.h.b16 %v2263
      %v2351 = vunpack.c.l.b16 %v2264
      %v2352 = vunpack.c.h.b16 %v2264
      %v2353 = vunpack.c.l.b16 %v2265
      %v2354 = vunpack.c.h.b16 %v2265
      %v2355 = vunpack.c.l.b16 %v2266
      %v2356 = vunpack.c.h.b16 %v2266
      %v2357 = vunpack.c.l.b16 %v2267
      %v2358 = vunpack.c.h.b16 %v2267
      %v2359 = vunpack.c.l.b16 %v2268
      %v2360 = vunpack.c.h.b16 %v2268
      %v2361 = vunpack.c.l.b16 %v2269
      %v2362 = vunpack.c.h.b16 %v2269
      %v2363 = vunpack.c.l.b16 %v2270
      %v2364 = vunpack.c.h.b16 %v2270
      %v2365 = vunpack.c.l.b16 %v2271
      %v2366 = vunpack.c.h.b16 %v2271
      %v2367 = vunpack.c.l.b16 %v2272
      %v2368 = vunpack.c.h.b16 %v2272
      %v2369 = vpack.c.b16 %v2305, %v2305
      %v2370 = vpack.c.b16 %v2306, %v2306
      %v2371 = vpack.c.b16 %v2307, %v2307
      %v2372 = vpack.c.b16 %v2308, %v2308
      %v2373 = vpack.c.b16 %v2309, %v2309
      %v2374 = vpack.c.b16 %v2310, %v2310
      %v2375 = vpack.c.b16 %v2311, %v2311
      %v2376 = vpack.c.b16 %v2312, %v2312
      %v2377 = vpack.c.b16 %v2313, %v2313
      %v2378 = vpack.c.b16 %v2314, %v2314
      %v2379 = vpack.c.b16 %v2315, %v2315
      %v2380 = vpack.c.b16 %v2316, %v2316
      %v2381 = vpack.c.b16 %v2317, %v2317
      %v2382 = vpack.c.b16 %v2318, %v2318
      %v2383 = vpack.c.b16 %v2319, %v2319
      %v2384 = vpack.c.b16 %v2320, %v2320
      %v2385 = vpack.c.b16 %v2321, %v2321
      %v2386 = vpack.c.b16 %v2322, %v2322
      %v2387 = vpack.c.b16 %v2323, %v2323
      %v2388 = vpack.c.b16 %v2324, %v2324
      %v2389 = vpack.c.b16 %v2325, %v2325
      %v2390 = vpack.c.b16 %v2326, %v2326
      %v2391 = vpack.c.b16 %v2327, %v2327
      %v2392 = vpack.c.b16 %v2328, %v2328
      %v2393 = vpack.c.b16 %v2329, %v2329
      %v2394 = vpack.c.b16 %v2330, %v2330
      %v2395 = vpack.c.b16 %v2331, %v2331
      %v2396 = vpack.c.b16 %v2332, %v2332
      %v2397 = vpack.c.b16 %v2333, %v2333
      %v2398 = vpack.c.b16 %v2334, %v2334
      %v2399 = vpack.c.b16 %v2335, %v2335
      %v2400 = vpack.c.b16 %v2336, %v2336
      %v2401 = vpack.c.b16 %v2337, %v2337
      %v2402 = vpack.c.b16 %v2338, %v2338
      %v2403 = vpack.c.b16 %v2339, %v2339
      %v2404 = vpack.c.b16 %v2340, %v2340
      %v2405 = vpack.c.b16 %v2341, %v2341
      %v2406 = vpack.c.b16 %v2342, %v2342
      %v2407 = vpack.c.b16 %v2343, %v2343
      %v2408 = vpack.c.b16 %v2344, %v2344
      %v2409 = vpack.c.b16 %v2345, %v2345
      %v2410 = vpack.c.b16 %v2346, %v2346
      %v2411 = vpack.c.b16 %v2347, %v2347
      %v2412 = vpack.c.b16 %v2348, %v2348
      %v2413 = vpack.c.b16 %v2349, %v2349
      %v2414 = vpack.c.b16 %v2350, %v2350
      %v2415 = vpack.c.b16 %v2351, %v2351
      %v2416 = vpack.c.b16 %v2352, %v2352
      %v2417 = vpack.c.b16 %v2353, %v2353
      %v2418 = vpack.c.b16 %v2354, %v2354
      %v2419 = vpack.c.b16 %v2355, %v2355
      %v2420 = vpack.c.b16 %v2356, %v2356
      %v2421 = vpack.c.b16 %v2357, %v2357
      %v2422 = vpack.c.b16 %v2358, %v2358
      %v2423 = vpack.c.b16 %v2359, %v2359
      %v2424 = vpack.c.b16 %v2360, %v2360
      %v2425 = vpack.c.b16 %v2361, %v2361
      %v2426 = vpack.c.b16 %v2362, %v2362
      %v2427 = vpack.c.b16 %v2363, %v2363
      %v2428 = vpack.c.b16 %v2364, %v2364
      %v2429 = vpack.c.b16 %v2365, %v2365
      %v2430 = vpack.c.b16 %v2366, %v2366
      %v2431 = vpack.c.b16 %v2367, %v2367
      %v2432 = vpack.c.b16 %v2368, %v2368
      %2497 = vst [vmem:[%s182] sm:$0xf] %v2369
      %2498 = vst [vmem:[%s182 + $0x4] sm:$0xf] %v2370
      %2499 = vst [vmem:[%s182 + $0x8] sm:$0xf] %v2371
      %2500 = vst [vmem:[%s182 + $0xc] sm:$0xf] %v2372
      %2501 = vst [vmem:[%s182 + $0x10] sm:$0xf] %v2373
      %2502 = vst [vmem:[%s182 + $0x14] sm:$0xf] %v2374
      %2503 = vst [vmem:[%s182 + $0x18] sm:$0xf] %v2375
      %2504 = vst [vmem:[%s182 + $0x1c] sm:$0xf] %v2376
      %2505 = vst [vmem:[%s182 + $0x20] sm:$0xf] %v2377
      %2506 = vst [vmem:[%s182 + $0x24] sm:$0xf] %v2378
      %2507 = vst [vmem:[%s182 + $0x28] sm:$0xf] %v2379
      %2508 = vst [vmem:[%s182 + $0x2c] sm:$0xf] %v2380
      %2509 = vst [vmem:[%s182 + $0x30] sm:$0xf] %v2381
      %2510 = vst [vmem:[%s182 + $0x34] sm:$0xf] %v2382
      %2511 = vst [vmem:[%s182 + $0x38] sm:$0xf] %v2383
      %2512 = vst [vmem:[%s182 + $0x3c] sm:$0xf] %v2384
      %2513 = vst [vmem:[%s182 + $0x40] sm:$0xf] %v2385
      %2514 = vst [vmem:[%s182 + $0x44] sm:$0xf] %v2386
      %2515 = vst [vmem:[%s182 + $0x48] sm:$0xf] %v2387
      %2516 = vst [vmem:[%s182 + $0x4c] sm:$0xf] %v2388
      %2517 = vst [vmem:[%s182 + $0x50] sm:$0xf] %v2389
      %2518 = vst [vmem:[%s182 + $0x54] sm:$0xf] %v2390
      %2519 = vst [vmem:[%s182 + $0x58] sm:$0xf] %v2391
      %2520 = vst [vmem:[%s182 + $0x5c] sm:$0xf] %v2392
      %2521 = vst [vmem:[%s182 + $0x60] sm:$0xf] %v2393
      %2522 = vst [vmem:[%s182 + $0x64] sm:$0xf] %v2394
      %2523 = vst [vmem:[%s182 + $0x68] sm:$0xf] %v2395
      %2524 = vst [vmem:[%s182 + $0x6c] sm:$0xf] %v2396
      %2525 = vst [vmem:[%s182 + $0x70] sm:$0xf] %v2397
      %2526 = vst [vmem:[%s182 + $0x74] sm:$0xf] %v2398
      %2527 = vst [vmem:[%s182 + $0x78] sm:$0xf] %v2399
      %2528 = vst [vmem:[%s182 + $0x7c] sm:$0xf] %v2400
      %2529 = vst [vmem:[%s182 + $0x80] sm:$0xf] %v2401
      %2530 = vst [vmem:[%s182 + $0x84] sm:$0xf] %v2402
      %2531 = vst [vmem:[%s182 + $0x88] sm:$0xf] %v2403
      %2532 = vst [vmem:[%s182 + $0x8c] sm:$0xf] %v2404
      %2533 = vst [vmem:[%s182 + $0x90] sm:$0xf] %v2405
      %2534 = vst [vmem:[%s182 + $0x94] sm:$0xf] %v2406
      %2535 = vst [vmem:[%s182 + $0x98] sm:$0xf] %v2407
      %2536 = vst [vmem:[%s182 + $0x9c] sm:$0xf] %v2408
      %2537 = vst [vmem:[%s182 + $0xa0] sm:$0xf] %v2409
      %2538 = vst [vmem:[%s182 + $0xa4] sm:$0xf] %v2410
      %2539 = vst [vmem:[%s182 + $0xa8] sm:$0xf] %v2411
      %2540 = vst [vmem:[%s182 + $0xac] sm:$0xf] %v2412
      %2541 = vst [vmem:[%s182 + $0xb0] sm:$0xf] %v2413
      %2542 = vst [vmem:[%s182 + $0xb4] sm:$0xf] %v2414
      %2543 = vst [vmem:[%s182 + $0xb8] sm:$0xf] %v2415
      %2544 = vst [vmem:[%s182 + $0xbc] sm:$0xf] %v2416
      %2545 = vst [vmem:[%s182 + $0xc0] sm:$0xf] %v2417
      %2546 = vst [vmem:[%s182 + $0xc4] sm:$0xf] %v2418
      %2547 = vst [vmem:[%s182 + $0xc8] sm:$0xf] %v2419
      %2548 = vst [vmem:[%s182 + $0xcc] sm:$0xf] %v2420
      %2549 = vst [vmem:[%s182 + $0xd0] sm:$0xf] %v2421
      %2550 = vst [vmem:[%s182 + $0xd4] sm:$0xf] %v2422
      %2551 = vst [vmem:[%s182 + $0xd8] sm:$0xf] %v2423
      %2552 = vst [vmem:[%s182 + $0xdc] sm:$0xf] %v2424
      %2553 = vst [vmem:[%s182 + $0xe0] sm:$0xf] %v2425
      %2554 = vst [vmem:[%s182 + $0xe4] sm:$0xf] %v2426
      %2555 = vst [vmem:[%s182 + $0xe8] sm:$0xf] %v2427
      %2556 = vst [vmem:[%s182 + $0xec] sm:$0xf] %v2428
      %2557 = vst [vmem:[%s182 + $0xf0] sm:$0xf] %v2429
      %2558 = vst [vmem:[%s182 + $0xf4] sm:$0xf] %v2430
      %2559 = vst [vmem:[%s182 + $0xf8] sm:$0xf] %v2431
      %2560 = vst [vmem:[%s182 + $0xfc] sm:$0xf] %v2432
      %2561 = vst [vmem:[%s187] sm:$0xff] 0.0
      %v2562 = vadd.f32 %v1987, %v1990
      %v2563 = vadd.f32 %v2562, %v1995
      %v2564 = vadd.f32 %v2563, %v1998
      %v2565 = vadd.f32 %v2564, %v2003
      %v2566 = vadd.f32 %v2565, %v2006
      %v2567 = vadd.f32 %v2566, %v2011
      %v2568 = vadd.f32 %v2567, %v2014
      %v2569 = vadd.f32 %v2568, %v2019
      %v2570 = vadd.f32 %v2569, %v2022
      %v2571 = vadd.f32 %v2570, %v2027
      %v2572 = vadd.f32 %v2571, %v2030
      %v2573 = vadd.f32 %v2572, %v2035
      %v2574 = vadd.f32 %v2573, %v2038
      %v2575 = vadd.f32 %v2574, %v2043
      %v2576 = vadd.f32 %v2575, %v2046
      %v2577 = vadd.f32 %v2576, %v2051
      %v2578 = vadd.f32 %v2577, %v2054
      %v2579 = vadd.f32 %v2578, %v2059
      %v2580 = vadd.f32 %v2579, %v2062
      %v2581 = vadd.f32 %v2580, %v2067
      %v2582 = vadd.f32 %v2581, %v2070
      %v2583 = vadd.f32 %v2582, %v2075
      %v2584 = vadd.f32 %v2583, %v2078
      %v2585 = vadd.f32 %v2584, %v2083
      %v2586 = vadd.f32 %v2585, %v2086
      %v2587 = vadd.f32 %v2586, %v2091
      %v2588 = vadd.f32 %v2587, %v2094
      %v2589 = vadd.f32 %v2588, %v2099
      %v2590 = vadd.f32 %v2589, %v2102
      %v2591 = vadd.f32 %v2590, %v2107
      %v2592 = vadd.f32 %v2591, %v2110
      %v2593 = vadd.f32 %v2592, %v2115
      %v2594 = vadd.f32 %v2593, %v2118
      %v2595 = vadd.f32 %v2594, %v2123
      %v2596 = vadd.f32 %v2595, %v2126
      %v2597 = vadd.f32 %v2596, %v2131
      %v2598 = vadd.f32 %v2597, %v2134
      %v2599 = vadd.f32 %v2598, %v2139
      %v2600 = vadd.f32 %v2599, %v2142
      %v2601 = vadd.f32 %v2600, %v2147
      %v2602 = vadd.f32 %v2601, %v2150
      %v2603 = vadd.f32 %v2602, %v2155
      %v2604 = vadd.f32 %v2603, %v2158
      %v2605 = vadd.f32 %v2604, %v2163
      %v2606 = vadd.f32 %v2605, %v2166
      %v2607 = vadd.f32 %v2606, %v2171
      %v2608 = vadd.f32 %v2607, %v2174
      %v2609 = vadd.f32 %v2608, %v2179
      %v2610 = vadd.f32 %v2609, %v2182
      %v2611 = vadd.f32 %v2610, %v2187
      %v2612 = vadd.f32 %v2611, %v2190
      %v2613 = vadd.f32 %v2612, %v2195
      %v2614 = vadd.f32 %v2613, %v2198
      %v2615 = vadd.f32 %v2614, %v2203
      %v2616 = vadd.f32 %v2615, %v2206
      %v2617 = vadd.f32 %v2616, %v2211
      %v2618 = vadd.f32 %v2617, %v2214
      %v2619 = vadd.f32 %v2618, %v2219
      %v2620 = vadd.f32 %v2619, %v2222
      %v2621 = vadd.f32 %v2620, %v2227
      %v2622 = vadd.f32 %v2621, %v2230
      %v2623 = vadd.f32 %v2622, %v2235
      %v2624 = vadd.f32 %v2623, %v2238
      %v2625 = vrot.slane %v2624, 4
      %v2626 = vadd.f32 %v2624, %v2625
      %v2627 = vrot.slane %v2626, 2
      %v2628 = vadd.f32 %v2626, %v2627
      %v2629 = vrot.slane %v2628, 1
      %v2630 = vadd.f32 %v2628, %v2629
      %2631 = vst [vmem:[%s187] sm:$0x1] %v2630
      %v2632 = vmul.f32 %v1987, %v1987
      %v2633 = vmul.f32 %v1990, %v1990
      %v2634 = vmul.f32 %v1995, %v1995
      %v2635 = vmul.f32 %v1998, %v1998
      %v2636 = vmul.f32 %v2003, %v2003
      %v2637 = vmul.f32 %v2006, %v2006
      %v2638 = vmul.f32 %v2011, %v2011
      %v2639 = vmul.f32 %v2014, %v2014
      %v2640 = vmul.f32 %v2019, %v2019
      %v2641 = vmul.f32 %v2022, %v2022
      %v2642 = vmul.f32 %v2027, %v2027
      %v2643 = vmul.f32 %v2030, %v2030
      %v2644 = vmul.f32 %v2035, %v2035
      %v2645 = vmul.f32 %v2038, %v2038
      %v2646 = vmul.f32 %v2043, %v2043
      %v2647 = vmul.f32 %v2046, %v2046
      %v2648 = vmul.f32 %v2051, %v2051
      %v2649 = vmul.f32 %v2054, %v2054
      %v2650 = vmul.f32 %v2059, %v2059
      %v2651 = vmul.f32 %v2062, %v2062
      %v2652 = vmul.f32 %v2067, %v2067
      %v2653 = vmul.f32 %v2070, %v2070
      %v2654 = vmul.f32 %v2075, %v2075
      %v2655 = vmul.f32 %v2078, %v2078
      %v2656 = vmul.f32 %v2083, %v2083
      %v2657 = vmul.f32 %v2086, %v2086
      %v2658 = vmul.f32 %v2091, %v2091
      %v2659 = vmul.f32 %v2094, %v2094
      %v2660 = vmul.f32 %v2099, %v2099
      %v2661 = vmul.f32 %v2102, %v2102
      %v2662 = vmul.f32 %v2107, %v2107
      %v2663 = vmul.f32 %v2110, %v2110
      %v2664 = vmul.f32 %v2115, %v2115
      %v2665 = vmul.f32 %v2118, %v2118
      %v2666 = vmul.f32 %v2123, %v2123
      %v2667 = vmul.f32 %v2126, %v2126
      %v2668 = vmul.f32 %v2131, %v2131
      %v2669 = vmul.f32 %v2134, %v2134
      %v2670 = vmul.f32 %v2139, %v2139
      %v2671 = vmul.f32 %v2142, %v2142
      %v2672 = vmul.f32 %v2147, %v2147
      %v2673 = vmul.f32 %v2150, %v2150
      %v2674 = vmul.f32 %v2155, %v2155
      %v2675 = vmul.f32 %v2158, %v2158
      %v2676 = vmul.f32 %v2163, %v2163
      %v2677 = vmul.f32 %v2166, %v2166
      %v2678 = vmul.f32 %v2171, %v2171
      %v2679 = vmul.f32 %v2174, %v2174
      %v2680 = vmul.f32 %v2179, %v2179
      %v2681 = vmul.f32 %v2182, %v2182
      %v2682 = vmul.f32 %v2187, %v2187
      %v2683 = vmul.f32 %v2190, %v2190
      %v2684 = vmul.f32 %v2195, %v2195
      %v2685 = vmul.f32 %v2198, %v2198
      %v2686 = vmul.f32 %v2203, %v2203
      %v2687 = vmul.f32 %v2206, %v2206
      %v2688 = vmul.f32 %v2211, %v2211
      %v2689 = vmul.f32 %v2214, %v2214
      %v2690 = vmul.f32 %v2219, %v2219
      %v2691 = vmul.f32 %v2222, %v2222
      %v2692 = vmul.f32 %v2227, %v2227
      %v2693 = vmul.f32 %v2230, %v2230
      %v2694 = vmul.f32 %v2235, %v2235
      %v2695 = vmul.f32 %v2238, %v2238
      %v2696 = vadd.f32 %v2632, %v2633
      %v2697 = vadd.f32 %v2696, %v2634
      %v2698 = vadd.f32 %v2697, %v2635
      %v2699 = vadd.f32 %v2698, %v2636
      %v2700 = vadd.f32 %v2699, %v2637
      %v2701 = vadd.f32 %v2700, %v2638
      %v2702 = vadd.f32 %v2701, %v2639
      %v2703 = vadd.f32 %v2702, %v2640
      %v2704 = vadd.f32 %v2703, %v2641
      %v2705 = vadd.f32 %v2704, %v2642
      %v2706 = vadd.f32 %v2705, %v2643
      %v2707 = vadd.f32 %v2706, %v2644
      %v2708 = vadd.f32 %v2707, %v2645
      %v2709 = vadd.f32 %v2708, %v2646
      %v2710 = vadd.f32 %v2709, %v2647
      %v2711 = vadd.f32 %v2710, %v2648
      %v2712 = vadd.f32 %v2711, %v2649
      %v2713 = vadd.f32 %v2712, %v2650
      %v2714 = vadd.f32 %v2713, %v2651
      %v2715 = vadd.f32 %v2714, %v2652
      %v2716 = vadd.f32 %v2715, %v2653
      %v2717 = vadd.f32 %v2716, %v2654
      %v2718 = vadd.f32 %v2717, %v2655
      %v2719 = vadd.f32 %v2718, %v2656
      %v2720 = vadd.f32 %v2719, %v2657
      %v2721 = vadd.f32 %v2720, %v2658
      %v2722 = vadd.f32 %v2721, %v2659
      %v2723 = vadd.f32 %v2722, %v2660
      %v2724 = vadd.f32 %v2723, %v2661
      %v2725 = vadd.f32 %v2724, %v2662
      %v2726 = vadd.f32 %v2725, %v2663
      %v2727 = vadd.f32 %v2726, %v2664
      %v2728 = vadd.f32 %v2727, %v2665
      %v2729 = vadd.f32 %v2728, %v2666
      %v2730 = vadd.f32 %v2729, %v2667
      %v2731 = vadd.f32 %v2730, %v2668
      %v2732 = vadd.f32 %v2731, %v2669
      %v2733 = vadd.f32 %v2732, %v2670
      %v2734 = vadd.f32 %v2733, %v2671
      %v2735 = vadd.f32 %v2734, %v2672
      %v2736 = vadd.f32 %v2735, %v2673
      %v2737 = vadd.f32 %v2736, %v2674
      %v2738 = vadd.f32 %v2737, %v2675
      %v2739 = vadd.f32 %v2738, %v2676
      %v2740 = vadd.f32 %v2739, %v2677
      %v2741 = vadd.f32 %v2740, %v2678
      %v2742 = vadd.f32 %v2741, %v2679
      %v2743 = vadd.f32 %v2742, %v2680
      %v2744 = vadd.f32 %v2743, %v2681
      %v2745 = vadd.f32 %v2744, %v2682
      %v2746 = vadd.f32 %v2745, %v2683
      %v2747 = vadd.f32 %v2746, %v2684
      %v2748 = vadd.f32 %v2747, %v2685
      %v2749 = vadd.f32 %v2748, %v2686
      %v2750 = vadd.f32 %v2749, %v2687
      %v2751 = vadd.f32 %v2750, %v2688
      %v2752 = vadd.f32 %v2751, %v2689
      %v2753 = vadd.f32 %v2752, %v2690
      %v2754 = vadd.f32 %v2753, %v2691
      %v2755 = vadd.f32 %v2754, %v2692
      %v2756 = vadd.f32 %v2755, %v2693
      %v2757 = vadd.f32 %v2756, %v2694
      %v2758 = vadd.f32 %v2757, %v2695
      %v2759 = vrot.slane %v2758, 4
      %v2760 = vadd.f32 %v2758, %v2759
      %v2761 = vrot.slane %v2760, 2
      %v2762 = vadd.f32 %v2760, %v2761
      %v2763 = vrot.slane %v2762, 1
      %v2764 = vadd.f32 %v2762, %v2763
      %2765 = vst [vmem:[%s187 + $0x1] sm:$0x1] %v2764
      %s2766 = smul.u32 64, %s15
      %p2767 = scmp.lt.s32.totalorder %s2766, 127
      %s2768 = scalar_select %p2767, %s2766, 127
      %s2769 = smul.addr %s2768, 4
      %s2770 = scalar_lea.vmem %s2, %s2769
      %p2771 = scmp.lt.s32.totalorder %s15, 1
      %s2772 = scalar_select %p2771, %s15, 1
      %s2773 = smul.addr %s2772, 8
      %s2774 = scalar_lea.vmem %s3, %s2773
      // Predicated region
      $region29: #{dgnn_layer_forward.3} parent=27 // pred_check
        %p2775 = pneg %p80
      $region30: #{dgnn_layer_forward.3} parent=27 // pred_check_branch
        %2777 = sbr.rel (%p2775) target = $region32
      $region31: #{dgnn_layer_forward.3} parent=27 // pred_region
        %s2778 = smul.u32 64, %s15
      $region32: #{dgnn_layer_forward.3} parent=27 // pred_fallthru
        _
      // Predicated region
      $region33: #{dgnn_layer_forward.3} parent=27 // pred_check
        %p2779 = pneg %p106
      $region34: #{dgnn_layer_forward.3} parent=27 // pred_check_branch
        %2781 = sbr.rel (%p2779) target = $region36
      $region35: #{dgnn_layer_forward.3} parent=27 // pred_region
        _
      $region36: #{dgnn_layer_forward.3} parent=27 // pred_fallthru
        _
    $region28: #{dgnn_layer_forward.3} parent=5 // pred_fallthru
      _
    %p2782 = scmp.le.s32.totalorder 2, %s10
    // Predicated region
    $region37: #{dgnn_layer_forward.3} parent=5 // pred_check
      %p2783 = pneg %p2782
    $region38: #{dgnn_layer_forward.3} parent=5 // pred_check_branch
      %2785 = sbr.rel (%p2783) target = $region40
    $region39: #{dgnn_layer_forward.3} parent=5 // pred_region
      %s2786 = ssub.s32 %s10, 2
      // Predicated region
      $region41: #{dgnn_layer_forward.3} parent=39 // pred_check
        %p2787 = pneg %p86
      $region42: #{dgnn_layer_forward.3} parent=39 // pred_check_branch
        %2789 = sbr.rel (%p2787) target = $region44
      $region43: #{dgnn_layer_forward.3} parent=39 // pred_region
        %s2790 = smul.u32 64, %s16
        %p2791 = scmp.lt.s32.totalorder %s2790, 127
        %s2792 = scalar_select %p2791, %s2790, 127
        %s2793 = smul.addr %s2792, 4
        %s2794 = scalar_lea.vmem %s2, %s2793
      $region44: #{dgnn_layer_forward.3} parent=39 // pred_fallthru
        _
      // Predicated region
      $region45: #{dgnn_layer_forward.3} parent=39 // pred_check
        %p2795 = pneg %p112
      $region46: #{dgnn_layer_forward.3} parent=39 // pred_check_branch
        %2797 = sbr.rel (%p2795) target = $region48
      $region47: #{dgnn_layer_forward.3} parent=39 // pred_region
        %p2798 = scmp.lt.s32.totalorder %s16, 1
        %s2799 = scalar_select %p2798, %s16, 1
        %s2800 = smul.addr %s2799, 8
        %s2801 = scalar_lea.vmem %s3, %s2800
      $region48: #{dgnn_layer_forward.3} parent=39 // pred_fallthru
        _
    $region40: #{dgnn_layer_forward.3} parent=5 // pred_fallthru
      _
  $region6: #{dgnn_layer_forward.3} parent=0 // loop_footer
    %s14 = sadd.s32 1, %s10
  $region7: #{dgnn_layer_forward.3} parent=0 // loop_footer_branch
    %9 = sbr.rel target = $region3
  $region8: #{dgnn_layer_forward.3} parent=0 // loop_exit
    _

</llo_original>
